<compile_context>
chip_gen: v7x
topology: tpu7x:2x2x1
jax: 0.10.0
libtpu: 0.0.40
codegen_flags: <defaults>
</compile_context>

<pallas_src>
import functools

import jax
import jax.numpy as jnp
from jax.experimental import pallas as pl
from jax.experimental.pallas import tpu as pltpu


# ----------------------------------------------------------------- constants ---

IMG_FEAT = 512       # resnet18 output feature dim (fc = Identity)
TXT_FEAT = 768       # BERT pooled_output dim
HIDDEN = 256         # classifier hidden dim
EMB_DIM = 32         # stand-in token embedding dim
VOCAB = 128          # stand-in vocab size
PAD_CLASSES = 128    # lane-dense padded logits width (sliced to num_classes outside)


def _round_up(x, m):
    return ((x + m - 1) // m) * m


# -------------------------------------------------------------- fused kernel ---

def _fused_forward_kernel(
    img_ref,          # (TB, C*H*W)       bf16
    ids_ref,          # (TB, S)           int32
    mask_ref,         # (TB, S)           f32
    fused_tbl_ref,    # (VOCAB, 768)      bf16   (= emb_table @ w_pool, precomputed)
    b_pool_ref,       # (1, 768)          f32
    w_img_ref,        # (C*H*W, 512)      bf16
    b_img_ref,        # (1, 512)          f32
    w1_img_ref,       # (512, 256)        bf16
    w1_txt_ref,       # (768, 256)        bf16
    b1_ref,           # (1, 256)          f32
    w2_ref,           # (256, 128)        bf16 (zero-padded beyond num_classes)
    b2_ref,           # (1, 128)          f32  (zero-padded beyond num_classes)
    o_ref,            # (TB, 128)         f32
):
    TB, S = ids_ref.shape
    V = fused_tbl_ref.shape[0]

    # ---- text branch: one-hot "gather" + masked mean pool + tanh pooler ----
    # TODO(synk): one-hot matmul gather only viable for toy VOCAB=128; a real BERT
    # vocab (~30k) needs a scalar-prefetched row-DMA gather instead.
    ids = ids_ref[...]                                          # (TB, S) int32
    mask = mask_ref[...]                                        # (TB, S) f32
    vocab_iota = jax.lax.broadcasted_iota(jnp.int32, (TB, S, V), 2)
    onehot_w = jnp.sum(
        (ids[..., None] == vocab_iota).astype(jnp.float32) * mask[..., None],
        axis=1)                                                 # (TB, V) masked token counts
    denom = jnp.maximum(jnp.sum(mask, axis=1, keepdims=True), 1.0)
    inv_denom = pl.reciprocal(denom, approx=True)               # EUP, not VALU
    txt_feat = jnp.tanh(
        jnp.dot(onehot_w.astype(jnp.bfloat16), fused_tbl_ref[...],
                preferred_element_type=jnp.float32) * inv_denom
        + b_pool_ref[...])                                      # (TB, 768)

    # ---- image branch (stand-in for resnet18 with fc = Identity) ----
    # TODO(synk): if the flattened image dim grows to real sizes (e.g. 150528),
    # add a K-reduction grid axis ("arbitrary") with an f32 acc scratch so w_img
    # streams instead of requiring full VMEM residency.
    img_feat = jnp.maximum(
        jnp.dot(img_ref[...], w_img_ref[...],
                preferred_element_type=jnp.float32) + b_img_ref[...], 0.0)  # (TB, 512)

    # ---- classifier head: concat replaced by split dots into one f32 accumulator ----
    h = (jnp.dot(img_feat.astype(jnp.bfloat16), w1_img_ref[...],
                 preferred_element_type=jnp.float32)
         + jnp.dot(txt_feat.astype(jnp.bfloat16), w1_txt_ref[...],
                   preferred_element_type=jnp.float32)
         + b1_ref[...])                                                     # (TB, 256)
    h = jnp.maximum(h, 0.0)
    # TODO(synk): train-mode Dropout(p=0.3) via pltpu.prng_seed/prng_random_bits;
    # eval-mode dropout is the identity, which is what is computed here.
    logits = jnp.dot(h.astype(jnp.bfloat16), w2_ref[...],
                     preferred_element_type=jnp.float32) + b2_ref[...]      # (TB, 128)
    o_ref[...] = logits.astype(o_ref.dtype)


def _fused_forward(img_flat, input_ids, attention_mask, p, tb):
    b_pad, chw = img_flat.shape
    seq = input_ids.shape[1]
    grid = (b_pad // tb,)

    def batch_map(i):
        return (i, 0)

    def const_map(i):
        return (0, 0)

    def w_spec(shape):
        return pl.BlockSpec(shape, const_map)

    return pl.pallas_call(
        _fused_forward_kernel,
        out_shape=jax.ShapeDtypeStruct((b_pad, PAD_CLASSES), jnp.float32),
        grid=grid,
        in_specs=[
            pl.BlockSpec((tb, chw), batch_map),                  # image (bf16)
            pl.BlockSpec((tb, seq), batch_map),                  # input_ids
            pl.BlockSpec((tb, seq), batch_map),                  # attention_mask
            w_spec((VOCAB, TXT_FEAT)),                           # fused emb/pooler table
            w_spec((1, TXT_FEAT)),                               # b_pool
            w_spec((chw, IMG_FEAT)),                             # w_img
            w_spec((1, IMG_FEAT)),                               # b_img
            w_spec((IMG_FEAT, HIDDEN)),                          # w1_img
            w_spec((TXT_FEAT, HIDDEN)),                          # w1_txt
            w_spec((1, HIDDEN)),                                 # b1
            w_spec((HIDDEN, PAD_CLASSES)),                       # w2 (padded)
            w_spec((1, PAD_CLASSES)),                            # b2 (padded)
        ],
        out_specs=pl.BlockSpec((tb, PAD_CLASSES), batch_map),
        compiler_params=pltpu.CompilerParams(
            dimension_semantics=("parallel",),
            vmem_limit_bytes=48 * 1024 * 1024,
        ),
    )(
        img_flat, input_ids, attention_mask,
        p["fused_table"], p["b_pool"],
        p["w_img"], p["b_img"],
        p["w1_img"], p["w1_txt"], p["b1"],
        p["w2_pad"], p["b2_pad"],
    )


# ---------------------------------------------------------------- full model ---

def init_params(num_classes, img_flat_dim, key):
    ks = jax.random.split(key, 8)
    scale = 0.02
    w2 = scale * jax.random.normal(ks[4], (HIDDEN, num_classes), jnp.float32)
    w2_pad = jnp.zeros((HIDDEN, PAD_CLASSES), jnp.float32).at[:, :num_classes].set(w2)
    # stand-in backbones (TODO(synk): real resnet18 / BERT weights not reproducible in-script)
    emb_table = scale * jax.random.normal(ks[1], (VOCAB, EMB_DIM), jnp.float32)
    w_pool = scale * jax.random.normal(ks[2], (EMB_DIM, TXT_FEAT), jnp.float32)
    fused_table = jnp.dot(emb_table, w_pool)                     # fold emb matmul into pooler
    return {
        "w_img": (scale * jax.random.normal(ks[0], (img_flat_dim, IMG_FEAT), jnp.float32)
                  ).astype(jnp.bfloat16),
        "b_img": jnp.zeros((1, IMG_FEAT), jnp.float32),
        "fused_table": fused_table.astype(jnp.bfloat16),
        "b_pool": jnp.zeros((1, TXT_FEAT), jnp.float32),
        # classifier head (exact semantics; w1 split to avoid lane-axis concat)
        "w1_img": (scale * jax.random.normal(ks[3], (IMG_FEAT, HIDDEN), jnp.float32)
                   ).astype(jnp.bfloat16),
        "w1_txt": (scale * jax.random.normal(ks[5], (TXT_FEAT, HIDDEN), jnp.float32)
                   ).astype(jnp.bfloat16),
        "b1": jnp.zeros((1, HIDDEN), jnp.float32),
        "w2_pad": w2_pad.astype(jnp.bfloat16),
        "b2_pad": jnp.zeros((1, PAD_CLASSES), jnp.float32),
    }


@functools.partial(jax.jit, static_argnames=("num_classes",))
def hybrid_model_forward(params, image, input_ids, attention_mask, num_classes):
    B = image.shape[0]
    # bf16 image activations (halves the dominant HBM->VMEM stream); NCHW -> (B, C*H*W)
    img_flat = image.reshape(B, -1).astype(jnp.bfloat16)

    # batch tile: >=8 sublanes, capped at the MXU height (256 on v6e/v7x)
    tb = min(256, _round_up(B, 8))
    b_pad = _round_up(B, tb)
    pad_b = b_pad - B

    img_flat = jnp.pad(img_flat, ((0, pad_b), (0, 0)))
    ids = jnp.pad(input_ids.astype(jnp.int32), ((0, pad_b), (0, 0)))
    mask = jnp.pad(attention_mask.astype(jnp.float32), ((0, pad_b), (0, 0)))

    padded_logits = _fused_forward(img_flat, ids, mask, params, tb)   # (b_pad, 128)
    return padded_logits[:B, :num_classes]                            # (B, num_classes)


# --------------------------------------------------------------------- main ---

if __name__ == "__main__":
    key = jax.random.PRNGKey(0)
    k_img, k_ids, k_params = jax.random.split(key, 3)

    B, C, H, W = 2, 3, 16, 16
    SEQ = 8
    NUM_CLASSES = 10

    image = jax.random.normal(k_img, (B, C, H, W), jnp.float32)          # NCHW
    input_ids = jax.random.randint(k_ids, (B, SEQ), 0, VOCAB, jnp.int32)
    attention_mask = jnp.ones((B, SEQ), jnp.int32).at[:, SEQ // 2:].set(
        jnp.array([1, 0], jnp.int32)[:, None])                           # ragged-ish mask

    params = init_params(NUM_CLASSES, C * H * W, k_params)

    logits = hybrid_model_forward(params, image, input_ids, attention_mask, NUM_CLASSES)
    jax.block_until_ready(logits)

    assert logits.shape == (B, NUM_CLASSES)
    assert logits.dtype == jnp.float32
    print("KERNEL_OK")
</pallas_src>

<mosaic_0001>
module attributes {stable_mosaic.version = 11 : i64} {
  func.func @_fused_forward_kernel(%arg0: i32, %arg1: memref<8x768xbf16, #tpu.memory_space<vmem>>, %arg2: memref<8x8xi32, #tpu.memory_space<vmem>>, %arg3: memref<8x8xf32, #tpu.memory_space<vmem>>, %arg4: memref<128x768xbf16, #tpu.memory_space<vmem>>, %arg5: memref<1x768xf32, #tpu.memory_space<vmem>>, %arg6: memref<768x512xbf16, #tpu.memory_space<vmem>>, %arg7: memref<1x512xf32, #tpu.memory_space<vmem>>, %arg8: memref<512x256xbf16, #tpu.memory_space<vmem>>, %arg9: memref<768x256xbf16, #tpu.memory_space<vmem>>, %arg10: memref<1x256xf32, #tpu.memory_space<vmem>>, %arg11: memref<256x128xbf16, #tpu.memory_space<vmem>>, %arg12: memref<1x128xf32, #tpu.memory_space<vmem>>, %arg13: memref<8x128xf32, #tpu.memory_space<vmem>>) attributes {dimension_semantics = [#tpu.dimension_semantics<parallel>], iteration_bounds = array<i64: 1>, scalar_prefetch = 0 : i64, scratch_operands = 0 : i64, tpu.core_type = #tpu.core_type<tc>, window_params = [{transform_indices = @transform_0, window_bounds = array<i64: 8, 768>}, {transform_indices = @transform_1, window_bounds = array<i64: 8, 8>}, {transform_indices = @transform_2, window_bounds = array<i64: 8, 8>}, {pipeline_mode = #tpu.pipeline_mode<synchronous>, transform_indices = @transform_3, window_bounds = array<i64: 128, 768>}, {pipeline_mode = #tpu.pipeline_mode<synchronous>, transform_indices = @transform_4, window_bounds = array<i64: 1, 768>}, {pipeline_mode = #tpu.pipeline_mode<synchronous>, transform_indices = @transform_5, window_bounds = array<i64: 768, 512>}, {pipeline_mode = #tpu.pipeline_mode<synchronous>, transform_indices = @transform_6, window_bounds = array<i64: 1, 512>}, {pipeline_mode = #tpu.pipeline_mode<synchronous>, transform_indices = @transform_7, window_bounds = array<i64: 512, 256>}, {pipeline_mode = #tpu.pipeline_mode<synchronous>, transform_indices = @transform_8, window_bounds = array<i64: 768, 256>}, {pipeline_mode = #tpu.pipeline_mode<synchronous>, transform_indices = @transform_9, window_bounds = array<i64: 1, 256>}, {pipeline_mode = #tpu.pipeline_mode<synchronous>, transform_indices = @transform_10, window_bounds = array<i64: 256, 128>}, {pipeline_mode = #tpu.pipeline_mode<synchronous>, transform_indices = @transform_11, window_bounds = array<i64: 1, 128>}, {transform_indices = @transform_12, window_bounds = array<i64: 8, 128>}]} {
    %c0 = arith.constant 0 : index
    %c0_0 = arith.constant 0 : index
    %0 = vector.load %arg2[%c0, %c0_0] : memref<8x8xi32, #tpu.memory_space<vmem>>, vector<8x8xi32>
    %c0_1 = arith.constant 0 : index
    %c0_2 = arith.constant 0 : index
    %1 = vector.load %arg3[%c0_1, %c0_2] : memref<8x8xf32, #tpu.memory_space<vmem>>, vector<8x8xf32>
    %2 = tpu.iota {dimensions = array<i32: 2>} : vector<8x8x128xi32>
    %3 = vector.shape_cast %0 : vector<8x8xi32> to vector<8x8x1xi32>
    %4 = vector.broadcast %3 : vector<8x8x1xi32> to vector<8x8x128xi32>
    %5 = arith.cmpi eq, %4, %2 : vector<8x8x128xi32>
    %6 = arith.extui %5 : vector<8x8x128xi1> to vector<8x8x128xi32>
    %7 = arith.sitofp %6 : vector<8x8x128xi32> to vector<8x8x128xf32>
    %8 = vector.shape_cast %1 : vector<8x8xf32> to vector<8x8x1xf32>
    %9 = vector.broadcast %8 : vector<8x8x1xf32> to vector<8x8x128xf32>
    %10 = arith.mulf %7, %9 : vector<8x8x128xf32>
    %cst = arith.constant dense<0.000000e+00> : vector<8x128xf32>
    %11 = vector.multi_reduction <add>, %10, %cst [1] : vector<8x8x128xf32> to vector<8x128xf32>
    %cst_3 = arith.constant dense<0.000000e+00> : vector<8xf32>
    %12 = vector.multi_reduction <add>, %1, %cst_3 [1] : vector<8x8xf32> to vector<8xf32>
    %13 = vector.shape_cast %12 : vector<8xf32> to vector<8x1xf32>
    %cst_4 = arith.constant 1.000000e+00 : f32
    %14 = vector.broadcast %cst_4 : f32 to vector<8x1xf32>
    %15 = arith.maximumf %13, %14 : vector<8x1xf32>
    %16 = tpu.reciprocal %15 {approx = true} : vector<8x1xf32> -> vector<8x1xf32>
    %17 = arith.truncf %11 : vector<8x128xf32> to vector<8x128xbf16>
    %c0_5 = arith.constant 0 : index
    %c0_6 = arith.constant 0 : index
    %18 = vector.load %arg4[%c0_5, %c0_6] : memref<128x768xbf16, #tpu.memory_space<vmem>>, vector<128x768xbf16>
    %cst_7 = arith.constant dense<0.000000e+00> : vector<8x768xf32>
    %19 = tpu.matmul %17, %18, %cst_7 {dimension_numbers = #tpu.dot_dimension_numbers<[1], [0], [0], [1], [0, 0, 1, 1], [], []>} : vector<8x128xbf16>, vector<128x768xbf16>, vector<8x768xf32> -> vector<8x768xf32>
    %20 = vector.broadcast %16 : vector<8x1xf32> to vector<8x768xf32>
    %21 = arith.mulf %19, %20 : vector<8x768xf32>
    %c0_8 = arith.constant 0 : index
    %c0_9 = arith.constant 0 : index
    %22 = vector.load %arg5[%c0_8, %c0_9] : memref<1x768xf32, #tpu.memory_space<vmem>>, vector<1x768xf32>
    %23 = vector.broadcast %22 : vector<1x768xf32> to vector<8x768xf32>
    %24 = arith.addf %21, %23 : vector<8x768xf32>
    %25 = math.tanh %24 : vector<8x768xf32>
    %c0_10 = arith.constant 0 : index
    %c0_11 = arith.constant 0 : index
    %26 = vector.load %arg1[%c0_10, %c0_11] : memref<8x768xbf16, #tpu.memory_space<vmem>>, vector<8x768xbf16>
    %c0_12 = arith.constant 0 : index
    %c0_13 = arith.constant 0 : index
    %27 = vector.load %arg6[%c0_12, %c0_13] : memref<768x512xbf16, #tpu.memory_space<vmem>>, vector<768x512xbf16>
    %cst_14 = arith.constant dense<0.000000e+00> : vector<8x512xf32>
    %28 = tpu.matmul %26, %27, %cst_14 {dimension_numbers = #tpu.dot_dimension_numbers<[1], [0], [0], [1], [0, 0, 1, 1], [], []>} : vector<8x768xbf16>, vector<768x512xbf16>, vector<8x512xf32> -> vector<8x512xf32>
    %c0_15 = arith.constant 0 : index
    %c0_16 = arith.constant 0 : index
    %29 = vector.load %arg7[%c0_15, %c0_16] : memref<1x512xf32, #tpu.memory_space<vmem>>, vector<1x512xf32>
    %30 = vector.broadcast %29 : vector<1x512xf32> to vector<8x512xf32>
    %31 = arith.addf %28, %30 : vector<8x512xf32>
    %cst_17 = arith.constant 0.000000e+00 : f32
    %32 = vector.broadcast %cst_17 : f32 to vector<8x512xf32>
    %33 = arith.maximumf %31, %32 : vector<8x512xf32>
    %34 = arith.truncf %33 : vector<8x512xf32> to vector<8x512xbf16>
    %c0_18 = arith.constant 0 : index
    %c0_19 = arith.constant 0 : index
    %35 = vector.load %arg8[%c0_18, %c0_19] : memref<512x256xbf16, #tpu.memory_space<vmem>>, vector<512x256xbf16>
    %cst_20 = arith.constant dense<0.000000e+00> : vector<8x256xf32>
    %36 = tpu.matmul %34, %35, %cst_20 {dimension_numbers = #tpu.dot_dimension_numbers<[1], [0], [0], [1], [0, 0, 1, 1], [], []>} : vector<8x512xbf16>, vector<512x256xbf16>, vector<8x256xf32> -> vector<8x256xf32>
    %37 = arith.truncf %25 : vector<8x768xf32> to vector<8x768xbf16>
    %c0_21 = arith.constant 0 : index
    %c0_22 = arith.constant 0 : index
    %38 = vector.load %arg9[%c0_21, %c0_22] : memref<768x256xbf16, #tpu.memory_space<vmem>>, vector<768x256xbf16>
    %cst_23 = arith.constant dense<0.000000e+00> : vector<8x256xf32>
    %39 = tpu.matmul %37, %38, %cst_23 {dimension_numbers = #tpu.dot_dimension_numbers<[1], [0], [0], [1], [0, 0, 1, 1], [], []>} : vector<8x768xbf16>, vector<768x256xbf16>, vector<8x256xf32> -> vector<8x256xf32>
    %40 = arith.addf %36, %39 : vector<8x256xf32>
    %c0_24 = arith.constant 0 : index
    %c0_25 = arith.constant 0 : index
    %41 = vector.load %arg10[%c0_24, %c0_25] : memref<1x256xf32, #tpu.memory_space<vmem>>, vector<1x256xf32>
    %42 = vector.broadcast %41 : vector<1x256xf32> to vector<8x256xf32>
    %43 = arith.addf %40, %42 : vector<8x256xf32>
    %cst_26 = arith.constant 0.000000e+00 : f32
    %44 = vector.broadcast %cst_26 : f32 to vector<8x256xf32>
    %45 = arith.maximumf %43, %44 : vector<8x256xf32>
    %46 = arith.truncf %45 : vector<8x256xf32> to vector<8x256xbf16>
    %c0_27 = arith.constant 0 : index
    %c0_28 = arith.constant 0 : index
    %47 = vector.load %arg11[%c0_27, %c0_28] : memref<256x128xbf16, #tpu.memory_space<vmem>>, vector<256x128xbf16>
    %cst_29 = arith.constant dense<0.000000e+00> : vector<8x128xf32>
    %48 = tpu.matmul %46, %47, %cst_29 {dimension_numbers = #tpu.dot_dimension_numbers<[1], [0], [0], [1], [0, 0, 1, 1], [], []>} : vector<8x256xbf16>, vector<256x128xbf16>, vector<8x128xf32> -> vector<8x128xf32>
    %c0_30 = arith.constant 0 : index
    %c0_31 = arith.constant 0 : index
    %49 = vector.load %arg12[%c0_30, %c0_31] : memref<1x128xf32, #tpu.memory_space<vmem>>, vector<1x128xf32>
    %50 = vector.broadcast %49 : vector<1x128xf32> to vector<8x128xf32>
    %51 = arith.addf %48, %50 : vector<8x128xf32>
    %c0_32 = arith.constant 0 : index
    %c0_33 = arith.constant 0 : index
    %52 = vector.load %arg13[%c0_32, %c0_33] : memref<8x128xf32, #tpu.memory_space<vmem>>, vector<8x128xf32>
    tpu.vector_store %arg13[%c0_32, %c0_33], %51 {strides = array<i32>} : memref<8x128xf32, #tpu.memory_space<vmem>>, vector<8x128xf32>,
    return
  }
  func.func @transform_0(%arg0: i32) -> (i32, i32) {
    %c0_i32 = arith.constant 0 : i32
    %c0_i32_0 = arith.constant 0 : i32
    return %arg0, %c0_i32 : i32, i32
  }
  func.func @transform_1(%arg0: i32) -> (i32, i32) {
    %c0_i32 = arith.constant 0 : i32
    %c0_i32_0 = arith.constant 0 : i32
    return %arg0, %c0_i32 : i32, i32
  }
  func.func @transform_2(%arg0: i32) -> (i32, i32) {
    %c0_i32 = arith.constant 0 : i32
    %c0_i32_0 = arith.constant 0 : i32
    return %arg0, %c0_i32 : i32, i32
  }
  func.func @transform_3(%arg0: i32) -> (i32, i32) {
    %c0_i32 = arith.constant 0 : i32
    %c0_i32_0 = arith.constant 0 : i32
    %c0_i32_1 = arith.constant 0 : i32
    return %c0_i32, %c0_i32_0 : i32, i32
  }
  func.func @transform_4(%arg0: i32) -> (i32, i32) {
    %c0_i32 = arith.constant 0 : i32
    %c0_i32_0 = arith.constant 0 : i32
    %c0_i32_1 = arith.constant 0 : i32
    return %c0_i32, %c0_i32_0 : i32, i32
  }
  func.func @transform_5(%arg0: i32) -> (i32, i32) {
    %c0_i32 = arith.constant 0 : i32
    %c0_i32_0 = arith.constant 0 : i32
    %c0_i32_1 = arith.constant 0 : i32
    return %c0_i32, %c0_i32_0 : i32, i32
  }
  func.func @transform_6(%arg0: i32) -> (i32, i32) {
    %c0_i32 = arith.constant 0 : i32
    %c0_i32_0 = arith.constant 0 : i32
    %c0_i32_1 = arith.constant 0 : i32
    return %c0_i32, %c0_i32_0 : i32, i32
  }
  func.func @transform_7(%arg0: i32) -> (i32, i32) {
    %c0_i32 = arith.constant 0 : i32
    %c0_i32_0 = arith.constant 0 : i32
    %c0_i32_1 = arith.constant 0 : i32
    return %c0_i32, %c0_i32_0 : i32, i32
  }
  func.func @transform_8(%arg0: i32) -> (i32, i32) {
    %c0_i32 = arith.constant 0 : i32
    %c0_i32_0 = arith.constant 0 : i32
    %c0_i32_1 = arith.constant 0 : i32
    return %c0_i32, %c0_i32_0 : i32, i32
  }
  func.func @transform_9(%arg0: i32) -> (i32, i32) {
    %c0_i32 = arith.constant 0 : i32
    %c0_i32_0 = arith.constant 0 : i32
    %c0_i32_1 = arith.constant 0 : i32
    return %c0_i32, %c0_i32_0 : i32, i32
  }
  func.func @transform_10(%arg0: i32) -> (i32, i32) {
    %c0_i32 = arith.constant 0 : i32
    %c0_i32_0 = arith.constant 0 : i32
    %c0_i32_1 = arith.constant 0 : i32
    return %c0_i32, %c0_i32_0 : i32, i32
  }
  func.func @transform_11(%arg0: i32) -> (i32, i32) {
    %c0_i32 = arith.constant 0 : i32
    %c0_i32_0 = arith.constant 0 : i32
    %c0_i32_1 = arith.constant 0 : i32
    return %c0_i32, %c0_i32_0 : i32, i32
  }
  func.func @transform_12(%arg0: i32) -> (i32, i32) {
    %c0_i32 = arith.constant 0 : i32
    %c0_i32_0 = arith.constant 0 : i32
    return %arg0, %c0_i32 : i32, i32
  }
}

</mosaic_0001>

<llo_original>
// kernel: hybrid_model_forward.1
$region0: #{hybrid_model_forward.1}
  #allocation0 [shape = 'u32[]', space=smem, size = 0x4, offset = 0x4, fixed_abs, tag = 'smem constant byte address 0x4 - core index']
  #allocation1 [shape = 'u32[144,128]{1,0:T(1,128)}', space=vmem, size = 0x12000, scoped, tag = 'internal scratch']
  %s0 = inlined_call_operand.vmem [shape: bf16[8,768], index: 0, kind: input, shape index: {}]
  %s1 = inlined_call_operand.vmem [shape: s32[8,8], index: 1, kind: input, shape index: {}]
  %s2 = inlined_call_operand.vmem [shape: f32[8,8], index: 2, kind: input, shape index: {}]
  %s3 = inlined_call_operand.hbm [shape: bf16[128,768], index: 3, kind: input, shape index: {}]
  %s4 = inlined_call_operand.vmem [shape: f32[1,768], index: 4, kind: input, shape index: {}]
  %s5 = inlined_call_operand.hbm [shape: bf16[768,512], index: 5, kind: input, shape index: {}]
  %s6 = inlined_call_operand.vmem [shape: f32[1,512], index: 6, kind: input, shape index: {}]
  %s7 = inlined_call_operand.hbm [shape: bf16[512,256], index: 7, kind: input, shape index: {}]
  %s8 = inlined_call_operand.hbm [shape: bf16[768,256], index: 8, kind: input, shape index: {}]
  %s9 = inlined_call_operand.vmem [shape: f32[1,256], index: 9, kind: input, shape index: {}]
  %s10 = inlined_call_operand.vmem [shape: bf16[256,128], index: 10, kind: input, shape index: {}]
  %s11 = inlined_call_operand.vmem [shape: f32[1,128], index: 11, kind: input, shape index: {}]
  %s12 = inlined_call_operand.vmem [shape: f32[8,128], index: 12, kind: output, shape index: {}]
  %s13 = sld [smem:[#allocation0]]
  $region74: #{hybrid_model_forward.1} parent=0
    _
  %s15 = ssub.s32 1, %s13
  %s16 = scalar_select 0, %s15, %s13
  $region1: #{hybrid_model_forward.1} parent=0
    #allocation2 [shape = 'u8[196608]{0}', space=vmem, size = 0x30000, scoped, tag = 'input window, operand 3, single buffered']
    #allocation3 [shape = 's32[1]{0}', space=sflag, size = 0x4, scoped, tag = 'scoped memory for hybrid_model_forward.1']
    #allocation4 [shape = 'u8[786432]{0}', space=vmem, size = 0xc0000, scoped, tag = 'input window, operand 5, single buffered']
    #allocation5 [shape = 's32[1]{0}', space=sflag, size = 0x4, scoped, tag = 'scoped memory for hybrid_model_forward.1']
    #allocation6 [shape = 'u8[262144]{0}', space=vmem, size = 0x40000, scoped, tag = 'input window, operand 7, single buffered']
    #allocation7 [shape = 'u8[393216]{0}', space=vmem, size = 0x60000, scoped, tag = 'input window, operand 8, single buffered']
    #allocation8 [shape = 's32[1]{0}', space=sflag, size = 0x4, scoped, tag = 'scoped memory for hybrid_model_forward.1']
    %17 = vsyncpa [#allocation3], 0
    %18 = vsyncpa [#allocation5], 0
    %19 = vsyncpa [#allocation8], 0
    // Predicated region
    $region2: #{hybrid_model_forward.1} parent=1 // pred_check
      _
    $region3: #{hybrid_model_forward.1} parent=1 // pred_check_branch
      %21 = sbr.rel (0) target = $region5
    $region4: #{hybrid_model_forward.1} parent=1 // pred_region
      _
    $region5: #{hybrid_model_forward.1} parent=1 // pred_fallthru
      _
    // Predicated region
    $region6: #{hybrid_model_forward.1} parent=1 // pred_check
      _
    $region7: #{hybrid_model_forward.1} parent=1 // pred_check_branch
      %23 = sbr.rel (0) target = $region9
    $region8: #{hybrid_model_forward.1} parent=1 // pred_region
      _
    $region9: #{hybrid_model_forward.1} parent=1 // pred_fallthru
      _
    // Predicated region
    $region10: #{hybrid_model_forward.1} parent=1 // pred_check
      _
    $region11: #{hybrid_model_forward.1} parent=1 // pred_check_branch
      %25 = sbr.rel (0) target = $region13
    $region12: #{hybrid_model_forward.1} parent=1 // pred_region
      _
    $region13: #{hybrid_model_forward.1} parent=1 // pred_fallthru
      _
    // Predicated region
    $region14: #{hybrid_model_forward.1} parent=1 // pred_check
      _
    $region15: #{hybrid_model_forward.1} parent=1 // pred_check_branch
      %27 = sbr.rel (0) target = $region17
    $region16: #{hybrid_model_forward.1} parent=1 // pred_region
      %s29 = ssub.s32 6144, 6144
      %30 = vsyncadd [#allocation3], %s29
      %s31 = sshll.u32 [#allocation2], 4
      %s32 = int_to_ptr.vmem [resolvable:$true] %s31
      %37 = dma.hbm_to_vmem [thread:$0]  %s3, 6144, %s32, [#allocation3], 384, 384, 24
    $region17: #{hybrid_model_forward.1} parent=1 // pred_fallthru
      _
    // Predicated region
    $region18: #{hybrid_model_forward.1} parent=1 // pred_check
      _
    $region19: #{hybrid_model_forward.1} parent=1 // pred_check_branch
      %39 = sbr.rel (0) target = $region21
    $region20: #{hybrid_model_forward.1} parent=1 // pred_region
      _
    $region21: #{hybrid_model_forward.1} parent=1 // pred_fallthru
      _
    // Predicated region
    $region22: #{hybrid_model_forward.1} parent=1 // pred_check
      _
    $region23: #{hybrid_model_forward.1} parent=1 // pred_check_branch
      %41 = sbr.rel (0) target = $region25
    $region24: #{hybrid_model_forward.1} parent=1 // pred_region
      %s43 = ssub.s32 24576, 24576
      %44 = vsyncadd [#allocation5], %s43
      %s45 = sshll.u32 [#allocation4], 4
      %s46 = int_to_ptr.vmem [resolvable:$true] %s45
      %51 = dma.hbm_to_vmem [thread:$0]  %s5, 24576, %s46, [#allocation5], 256, 256, 16
    $region25: #{hybrid_model_forward.1} parent=1 // pred_fallthru
      _
    // Predicated region
    $region26: #{hybrid_model_forward.1} parent=1 // pred_check
      _
    $region27: #{hybrid_model_forward.1} parent=1 // pred_check_branch
      %53 = sbr.rel (0) target = $region29
    $region28: #{hybrid_model_forward.1} parent=1 // pred_region
      _
    $region29: #{hybrid_model_forward.1} parent=1 // pred_fallthru
      _
    // Predicated region
    $region30: #{hybrid_model_forward.1} parent=1 // pred_check
      _
    $region31: #{hybrid_model_forward.1} parent=1 // pred_check_branch
      %55 = sbr.rel (0) target = $region33
    $region32: #{hybrid_model_forward.1} parent=1 // pred_region
      %s57 = ssub.s32 8192, 8192
      %58 = vsyncadd [#allocation5], %s57
      %s59 = sshll.u32 [#allocation6], 4
      %s60 = int_to_ptr.vmem [resolvable:$true] %s59
      %65 = dma.hbm_to_vmem [thread:$0]  %s7, 8192, %s60, [#allocation5], 128, 128, 8
    $region33: #{hybrid_model_forward.1} parent=1 // pred_fallthru
      _
    // Predicated region
    $region34: #{hybrid_model_forward.1} parent=1 // pred_check
      _
    $region35: #{hybrid_model_forward.1} parent=1 // pred_check_branch
      %67 = sbr.rel (0) target = $region37
    $region36: #{hybrid_model_forward.1} parent=1 // pred_region
      %s69 = ssub.s32 12288, 12288
      %70 = vsyncadd [#allocation8], %s69
      %s71 = sshll.u32 [#allocation7], 4
      %s72 = int_to_ptr.vmem [resolvable:$true] %s71
      %77 = dma.hbm_to_vmem [thread:$0]  %s8, 12288, %s72, [#allocation8], 128, 128, 8
    $region37: #{hybrid_model_forward.1} parent=1 // pred_fallthru
      _
    // Predicated region
    $region38: #{hybrid_model_forward.1} parent=1 // pred_check
      _
    $region39: #{hybrid_model_forward.1} parent=1 // pred_check_branch
      %79 = sbr.rel (0) target = $region41
    $region40: #{hybrid_model_forward.1} parent=1 // pred_region
      _
    $region41: #{hybrid_model_forward.1} parent=1 // pred_fallthru
      _
    // Predicated region
    $region42: #{hybrid_model_forward.1} parent=1 // pred_check
      _
    $region43: #{hybrid_model_forward.1} parent=1 // pred_check_branch
      %81 = sbr.rel (0) target = $region45
    $region44: #{hybrid_model_forward.1} parent=1 // pred_region
      _
    $region45: #{hybrid_model_forward.1} parent=1 // pred_fallthru
      _
    // Predicated region
    $region46: #{hybrid_model_forward.1} parent=1 // pred_check
      _
    $region47: #{hybrid_model_forward.1} parent=1 // pred_check_branch
      %83 = sbr.rel (0) target = $region49
    $region48: #{hybrid_model_forward.1} parent=1 // pred_region
      _
    $region49: #{hybrid_model_forward.1} parent=1 // pred_fallthru
      _
    // Predicated region
    $region50: #{hybrid_model_forward.1} parent=1 // pred_check
      _
    $region51: #{hybrid_model_forward.1} parent=1 // pred_check_branch
      %85 = sbr.rel (0) target = $region53
    $region52: #{hybrid_model_forward.1} parent=1 // pred_region
      %86 = dma.done [#allocation3], 6144
    $region53: #{hybrid_model_forward.1} parent=1 // pred_fallthru
      _
    // Predicated region
    $region54: #{hybrid_model_forward.1} parent=1 // pred_check
      _
    $region55: #{hybrid_model_forward.1} parent=1 // pred_check_branch
      %88 = sbr.rel (0) target = $region57
    $region56: #{hybrid_model_forward.1} parent=1 // pred_region
      %89 = dma.done [#allocation5], 24576
    $region57: #{hybrid_model_forward.1} parent=1 // pred_fallthru
      _
    // Predicated region
    $region58: #{hybrid_model_forward.1} parent=1 // pred_check
      _
    $region59: #{hybrid_model_forward.1} parent=1 // pred_check_branch
      %91 = sbr.rel (0) target = $region61
    $region60: #{hybrid_model_forward.1} parent=1 // pred_region
      %92 = dma.done [#allocation5], 8192
    $region61: #{hybrid_model_forward.1} parent=1 // pred_fallthru
      _
    // Predicated region
    $region62: #{hybrid_model_forward.1} parent=1 // pred_check
      _
    $region63: #{hybrid_model_forward.1} parent=1 // pred_check_branch
      %94 = sbr.rel (0) target = $region65
    $region64: #{hybrid_model_forward.1} parent=1 // pred_region
      %95 = dma.done [#allocation8], 12288
    $region65: #{hybrid_model_forward.1} parent=1 // pred_fallthru
      _
    %v97 = vld [vmem:[%s1] sm:$0xff]
    %v98 = vld [vmem:[%s2] sm:$0xff]
    %v99 = vlaneseq
    %v100 = vand.u32 %v99, 127
    %v101 = vlaneseq
    %v102 = vshrl.u32 %v101, 7
    %v103 = vsub.s32 0, %v102
    %v104 = vrot.slane %v97, %v103
    %106 = vbcast.lane.b32.xlu0 %v104, 256
    %v107 = vpop.permute.xlu0 %106
    %v108 = vlaneseq
    %v109 = vshrl.u32 %v108, 7
    %v110 = vsub.s32 1, %v109
    %v111 = vrot.slane %v97, %v110
    %113 = vbcast.lane.b32.xlu0 %v111, 256
    %v114 = vpop.permute.xlu0 %113
    %v115 = vlaneseq
    %v116 = vshrl.u32 %v115, 7
    %v117 = vsub.s32 2, %v116
    %v118 = vrot.slane %v97, %v117
    %120 = vbcast.lane.b32.xlu0 %v118, 256
    %v121 = vpop.permute.xlu0 %120
    %v122 = vlaneseq
    %v123 = vshrl.u32 %v122, 7
    %v124 = vsub.s32 3, %v123
    %v125 = vrot.slane %v97, %v124
    %127 = vbcast.lane.b32.xlu0 %v125, 256
    %v128 = vpop.permute.xlu0 %127
    %v129 = vlaneseq
    %v130 = vshrl.u32 %v129, 7
    %v131 = vsub.s32 4, %v130
    %v132 = vrot.slane %v97, %v131
    %134 = vbcast.lane.b32.xlu0 %v132, 256
    %v135 = vpop.permute.xlu0 %134
    %v136 = vlaneseq
    %v137 = vshrl.u32 %v136, 7
    %v138 = vsub.s32 5, %v137
    %v139 = vrot.slane %v97, %v138
    %141 = vbcast.lane.b32.xlu0 %v139, 256
    %v142 = vpop.permute.xlu0 %141
    %v143 = vlaneseq
    %v144 = vshrl.u32 %v143, 7
    %v145 = vsub.s32 6, %v144
    %v146 = vrot.slane %v97, %v145
    %148 = vbcast.lane.b32.xlu0 %v146, 256
    %v149 = vpop.permute.xlu0 %148
    %v150 = vlaneseq
    %v151 = vshrl.u32 %v150, 7
    %v152 = vsub.s32 7, %v151
    %v153 = vrot.slane %v97, %v152
    %155 = vbcast.lane.b32.xlu0 %v153, 256
    %v156 = vpop.permute.xlu0 %155
    %vm157 = vcmp.eq.s32.totalorder %v107, %v100
    %vm158 = vcmp.eq.s32.totalorder %v114, %v100
    %vm159 = vcmp.eq.s32.totalorder %v121, %v100
    %vm160 = vcmp.eq.s32.totalorder %v128, %v100
    %vm161 = vcmp.eq.s32.totalorder %v135, %v100
    %vm162 = vcmp.eq.s32.totalorder %v142, %v100
    %vm163 = vcmp.eq.s32.totalorder %v149, %v100
    %vm164 = vcmp.eq.s32.totalorder %v156, %v100
    %v165 = vsel %vm157, 1, 0
    %v166 = vsel %vm158, 1, 0
    %v167 = vsel %vm159, 1, 0
    %v168 = vsel %vm160, 1, 0
    %v169 = vsel %vm161, 1, 0
    %v170 = vsel %vm162, 1, 0
    %v171 = vsel %vm163, 1, 0
    %v172 = vsel %vm164, 1, 0
    %v173 = vcvt.s32.f32 %v165
    %v174 = vcvt.s32.f32 %v166
    %v175 = vcvt.s32.f32 %v167
    %v176 = vcvt.s32.f32 %v168
    %v177 = vcvt.s32.f32 %v169
    %v178 = vcvt.s32.f32 %v170
    %v179 = vcvt.s32.f32 %v171
    %v180 = vcvt.s32.f32 %v172
    %v181 = vlaneseq
    %v182 = vshrl.u32 %v181, 7
    %v183 = vsub.s32 0, %v182
    %v184 = vrot.slane %v98, %v183
    %186 = vbcast.lane.b32.xlu0 %v184, 256
    %v187 = vpop.permute.xlu0 %186
    %v188 = vlaneseq
    %v189 = vshrl.u32 %v188, 7
    %v190 = vsub.s32 1, %v189
    %v191 = vrot.slane %v98, %v190
    %193 = vbcast.lane.b32.xlu0 %v191, 256
    %v194 = vpop.permute.xlu0 %193
    %v195 = vlaneseq
    %v196 = vshrl.u32 %v195, 7
    %v197 = vsub.s32 2, %v196
    %v198 = vrot.slane %v98, %v197
    %200 = vbcast.lane.b32.xlu0 %v198, 256
    %v201 = vpop.permute.xlu0 %200
    %v202 = vlaneseq
    %v203 = vshrl.u32 %v202, 7
    %v204 = vsub.s32 3, %v203
    %v205 = vrot.slane %v98, %v204
    %207 = vbcast.lane.b32.xlu0 %v205, 256
    %v208 = vpop.permute.xlu0 %207
    %v209 = vlaneseq
    %v210 = vshrl.u32 %v209, 7
    %v211 = vsub.s32 4, %v210
    %v212 = vrot.slane %v98, %v211
    %214 = vbcast.lane.b32.xlu0 %v212, 256
    %v215 = vpop.permute.xlu0 %214
    %v216 = vlaneseq
    %v217 = vshrl.u32 %v216, 7
    %v218 = vsub.s32 5, %v217
    %v219 = vrot.slane %v98, %v218
    %221 = vbcast.lane.b32.xlu0 %v219, 256
    %v222 = vpop.permute.xlu0 %221
    %v223 = vlaneseq
    %v224 = vshrl.u32 %v223, 7
    %v225 = vsub.s32 6, %v224
    %v226 = vrot.slane %v98, %v225
    %228 = vbcast.lane.b32.xlu0 %v226, 256
    %v229 = vpop.permute.xlu0 %228
    %v230 = vlaneseq
    %v231 = vshrl.u32 %v230, 7
    %v232 = vsub.s32 7, %v231
    %v233 = vrot.slane %v98, %v232
    %235 = vbcast.lane.b32.xlu0 %v233, 256
    %v236 = vpop.permute.xlu0 %235
    %v237 = vmul.f32 %v173, %v187
    %v238 = vmul.f32 %v174, %v194
    %v239 = vmul.f32 %v175, %v201
    %v240 = vmul.f32 %v176, %v208
    %v241 = vmul.f32 %v177, %v215
    %v242 = vmul.f32 %v178, %v222
    %v243 = vmul.f32 %v179, %v229
    %v244 = vmul.f32 %v180, %v236
    %v245 = vrot.slane %v237, 4
    %v246 = vadd.f32 %v237, %v245
    %v247 = vrot.slane %v246, 2
    %v248 = vadd.f32 %v246, %v247
    %v249 = vrot.slane %v248, 1
    %v250 = vadd.f32 %v248, %v249
    %v251 = vrot.slane %v238, 4
    %v252 = vadd.f32 %v238, %v251
    %v253 = vrot.slane %v252, 2
    %v254 = vadd.f32 %v252, %v253
    %v255 = vrot.slane %v254, 1
    %v256 = vadd.f32 %v254, %v255
    %v257 = vrot.slane %v239, 4
    %v258 = vadd.f32 %v239, %v257
    %v259 = vrot.slane %v258, 2
    %v260 = vadd.f32 %v258, %v259
    %v261 = vrot.slane %v260, 1
    %v262 = vadd.f32 %v260, %v261
    %v263 = vrot.slane %v240, 4
    %v264 = vadd.f32 %v240, %v263
    %v265 = vrot.slane %v264, 2
    %v266 = vadd.f32 %v264, %v265
    %v267 = vrot.slane %v266, 1
    %v268 = vadd.f32 %v266, %v267
    %v269 = vrot.slane %v241, 4
    %v270 = vadd.f32 %v241, %v269
    %v271 = vrot.slane %v270, 2
    %v272 = vadd.f32 %v270, %v271
    %v273 = vrot.slane %v272, 1
    %v274 = vadd.f32 %v272, %v273
    %v275 = vrot.slane %v242, 4
    %v276 = vadd.f32 %v242, %v275
    %v277 = vrot.slane %v276, 2
    %v278 = vadd.f32 %v276, %v277
    %v279 = vrot.slane %v278, 1
    %v280 = vadd.f32 %v278, %v279
    %v281 = vrot.slane %v243, 4
    %v282 = vadd.f32 %v243, %v281
    %v283 = vrot.slane %v282, 2
    %v284 = vadd.f32 %v282, %v283
    %v285 = vrot.slane %v284, 1
    %v286 = vadd.f32 %v284, %v285
    %v287 = vrot.slane %v244, 4
    %v288 = vadd.f32 %v244, %v287
    %v289 = vrot.slane %v288, 2
    %v290 = vadd.f32 %v288, %v289
    %v291 = vrot.slane %v290, 1
    %v292 = vadd.f32 %v290, %v291
    %vm293 = vcmask 64512
    %v294 = vsel %vm293, %v98, 0.0
    %295 = vadd.xlane.f32.xlu0 %v294
    %v296 = vpop.xlane.xlu0 %295
    %v297 = vmax.f32 %v296, 1.0
    %v298 = vrcp.pop %v297
    %v299 = vpack.c.bf16 %v250, %v250
    %v300 = vpack.c.bf16 %v256, %v256
    %v301 = vpack.c.bf16 %v262, %v262
    %v302 = vpack.c.bf16 %v268, %v268
    %v303 = vpack.c.bf16 %v274, %v274
    %v304 = vpack.c.bf16 %v280, %v280
    %v305 = vpack.c.bf16 %v286, %v286
    %v306 = vpack.c.bf16 %v292, %v292
    %v307 = vld [vmem:[#allocation2] sm:$0xff]
    %v308 = vld [vmem:[#allocation2 + $0x8] sm:$0xff]
    %v309 = vld [vmem:[#allocation2 + $0x10] sm:$0xff]
    %v310 = vld [vmem:[#allocation2 + $0x18] sm:$0xff]
    %v311 = vld [vmem:[#allocation2 + $0x20] sm:$0xff]
    %v312 = vld [vmem:[#allocation2 + $0x28] sm:$0xff]
    %v313 = vld [vmem:[#allocation2 + $0x30] sm:$0xff]
    %v314 = vld [vmem:[#allocation2 + $0x38] sm:$0xff]
    %v315 = vld [vmem:[#allocation2 + $0x40] sm:$0xff]
    %v316 = vld [vmem:[#allocation2 + $0x48] sm:$0xff]
    %v317 = vld [vmem:[#allocation2 + $0x50] sm:$0xff]
    %v318 = vld [vmem:[#allocation2 + $0x58] sm:$0xff]
    %v319 = vld [vmem:[#allocation2 + $0x60] sm:$0xff]
    %v320 = vld [vmem:[#allocation2 + $0x68] sm:$0xff]
    %v321 = vld [vmem:[#allocation2 + $0x70] sm:$0xff]
    %v322 = vld [vmem:[#allocation2 + $0x78] sm:$0xff]
    %v323 = vld [vmem:[#allocation2 + $0x80] sm:$0xff]
    %v324 = vld [vmem:[#allocation2 + $0x88] sm:$0xff]
    %v325 = vld [vmem:[#allocation2 + $0x90] sm:$0xff]
    %v326 = vld [vmem:[#allocation2 + $0x98] sm:$0xff]
    %v327 = vld [vmem:[#allocation2 + $0xa0] sm:$0xff]
    %v328 = vld [vmem:[#allocation2 + $0xa8] sm:$0xff]
    %v329 = vld [vmem:[#allocation2 + $0xb0] sm:$0xff]
    %v330 = vld [vmem:[#allocation2 + $0xb8] sm:$0xff]
    %v331 = vld [vmem:[#allocation2 + $0xc0] sm:$0xff]
    %v332 = vld [vmem:[#allocation2 + $0xc8] sm:$0xff]
    %v333 = vld [vmem:[#allocation2 + $0xd0] sm:$0xff]
    %v334 = vld [vmem:[#allocation2 + $0xd8] sm:$0xff]
    %v335 = vld [vmem:[#allocation2 + $0xe0] sm:$0xff]
    %v336 = vld [vmem:[#allocation2 + $0xe8] sm:$0xff]
    %v337 = vld [vmem:[#allocation2 + $0xf0] sm:$0xff]
    %v338 = vld [vmem:[#allocation2 + $0xf8] sm:$0xff]
    %v339 = vld [vmem:[#allocation2 + $0x100] sm:$0xff]
    %v340 = vld [vmem:[#allocation2 + $0x108] sm:$0xff]
    %v341 = vld [vmem:[#allocation2 + $0x110] sm:$0xff]
    %v342 = vld [vmem:[#allocation2 + $0x118] sm:$0xff]
    %v343 = vld [vmem:[#allocation2 + $0x120] sm:$0xff]
    %v344 = vld [vmem:[#allocation2 + $0x128] sm:$0xff]
    %v345 = vld [vmem:[#allocation2 + $0x130] sm:$0xff]
    %v346 = vld [vmem:[#allocation2 + $0x138] sm:$0xff]
    %v347 = vld [vmem:[#allocation2 + $0x140] sm:$0xff]
    %v348 = vld [vmem:[#allocation2 + $0x148] sm:$0xff]
    %v349 = vld [vmem:[#allocation2 + $0x150] sm:$0xff]
    %v350 = vld [vmem:[#allocation2 + $0x158] sm:$0xff]
    %v351 = vld [vmem:[#allocation2 + $0x160] sm:$0xff]
    %v352 = vld [vmem:[#allocation2 + $0x168] sm:$0xff]
    %v353 = vld [vmem:[#allocation2 + $0x170] sm:$0xff]
    %v354 = vld [vmem:[#allocation2 + $0x178] sm:$0xff]
    %v363 = vunpack.c.l.b16 %v299
    %v364 = vunpack.c.l.b16 %v300
    %v365 = vunpack.c.l.b16 %v301
    %v366 = vunpack.c.l.b16 %v302
    %v367 = vunpack.c.l.b16 %v303
    %v368 = vunpack.c.l.b16 %v304
    %v369 = vunpack.c.l.b16 %v305
    %v370 = vunpack.c.l.b16 %v306
    %vm371 = vcmask 1041409
    %v372 = vsel %vm371, %v364, %v363
    %vm373 = vcmask 1042434
    %v374 = vsel %vm373, %v365, %v372
    %vm375 = vcmask 1043459
    %v376 = vsel %vm375, %v366, %v374
    %vm377 = vcmask 1044484
    %v378 = vsel %vm377, %v367, %v376
    %vm379 = vcmask 1045509
    %v380 = vsel %vm379, %v368, %v378
    %vm381 = vcmask 1046534
    %v382 = vsel %vm381, %v369, %v380
    %vm383 = vcmask 1047559
    %v384 = vsel %vm383, %v370, %v382
    %v385 = vpack.c.b16 %v384, %v384
    %v435 = vunpack.c.l.b16 %v307
    %v436 = vunpack.c.h.b16 %v307
    %v437 = vunpack.c.l.b16 %v308
    %v438 = vunpack.c.h.b16 %v308
    %v439 = vunpack.c.l.b16 %v309
    %v440 = vunpack.c.h.b16 %v309
    %v441 = vunpack.c.l.b16 %v310
    %v442 = vunpack.c.h.b16 %v310
    %v443 = vunpack.c.l.b16 %v311
    %v444 = vunpack.c.h.b16 %v311
    %v445 = vunpack.c.l.b16 %v312
    %v446 = vunpack.c.h.b16 %v312
    %v447 = vunpack.c.l.b16 %v313
    %v448 = vunpack.c.h.b16 %v313
    %v449 = vunpack.c.l.b16 %v314
    %v450 = vunpack.c.h.b16 %v314
    %v451 = vunpack.c.l.b16 %v315
    %v452 = vunpack.c.h.b16 %v315
    %v453 = vunpack.c.l.b16 %v316
    %v454 = vunpack.c.h.b16 %v316
    %v455 = vunpack.c.l.b16 %v317
    %v456 = vunpack.c.h.b16 %v317
    %v457 = vunpack.c.l.b16 %v318
    %v458 = vunpack.c.h.b16 %v318
    %v459 = vunpack.c.l.b16 %v319
    %v460 = vunpack.c.h.b16 %v319
    %v461 = vunpack.c.l.b16 %v320
    %v462 = vunpack.c.h.b16 %v320
    %v463 = vunpack.c.l.b16 %v321
    %v464 = vunpack.c.h.b16 %v321
    %v465 = vunpack.c.l.b16 %v322
    %v466 = vunpack.c.h.b16 %v322
    %v467 = vunpack.c.l.b16 %v323
    %v468 = vunpack.c.h.b16 %v323
    %v469 = vunpack.c.l.b16 %v324
    %v470 = vunpack.c.h.b16 %v324
    %v471 = vunpack.c.l.b16 %v325
    %v472 = vunpack.c.h.b16 %v325
    %v473 = vunpack.c.l.b16 %v326
    %v474 = vunpack.c.h.b16 %v326
    %v475 = vunpack.c.l.b16 %v327
    %v476 = vunpack.c.h.b16 %v327
    %v477 = vunpack.c.l.b16 %v328
    %v478 = vunpack.c.h.b16 %v328
    %v479 = vunpack.c.l.b16 %v329
    %v480 = vunpack.c.h.b16 %v329
    %v481 = vunpack.c.l.b16 %v330
    %v482 = vunpack.c.h.b16 %v330
    %v483 = vunpack.c.l.b16 %v331
    %v484 = vunpack.c.h.b16 %v331
    %v485 = vunpack.c.l.b16 %v332
    %v486 = vunpack.c.h.b16 %v332
    %v487 = vunpack.c.l.b16 %v333
    %v488 = vunpack.c.h.b16 %v333
    %v489 = vunpack.c.l.b16 %v334
    %v490 = vunpack.c.h.b16 %v334
    %v491 = vunpack.c.l.b16 %v335
    %v492 = vunpack.c.h.b16 %v335
    %v493 = vunpack.c.l.b16 %v336
    %v494 = vunpack.c.h.b16 %v336
    %v495 = vunpack.c.l.b16 %v337
    %v496 = vunpack.c.h.b16 %v337
    %v497 = vunpack.c.l.b16 %v338
    %v498 = vunpack.c.h.b16 %v338
    %v499 = vunpack.c.l.b16 %v339
    %v500 = vunpack.c.h.b16 %v339
    %v501 = vunpack.c.l.b16 %v340
    %v502 = vunpack.c.h.b16 %v340
    %v503 = vunpack.c.l.b16 %v341
    %v504 = vunpack.c.h.b16 %v341
    %v505 = vunpack.c.l.b16 %v342
    %v506 = vunpack.c.h.b16 %v342
    %v507 = vunpack.c.l.b16 %v343
    %v508 = vunpack.c.h.b16 %v343
    %v509 = vunpack.c.l.b16 %v344
    %v510 = vunpack.c.h.b16 %v344
    %v511 = vunpack.c.l.b16 %v345
    %v512 = vunpack.c.h.b16 %v345
    %v513 = vunpack.c.l.b16 %v346
    %v514 = vunpack.c.h.b16 %v346
    %v515 = vunpack.c.l.b16 %v347
    %v516 = vunpack.c.h.b16 %v347
    %v517 = vunpack.c.l.b16 %v348
    %v518 = vunpack.c.h.b16 %v348
    %v519 = vunpack.c.l.b16 %v349
    %v520 = vunpack.c.h.b16 %v349
    %v521 = vunpack.c.l.b16 %v350
    %v522 = vunpack.c.h.b16 %v350
    %v523 = vunpack.c.l.b16 %v351
    %v524 = vunpack.c.h.b16 %v351
    %v525 = vunpack.c.l.b16 %v352
    %v526 = vunpack.c.h.b16 %v352
    %v527 = vunpack.c.l.b16 %v353
    %v528 = vunpack.c.h.b16 %v353
    %v529 = vunpack.c.l.b16 %v354
    %v530 = vunpack.c.h.b16 %v354
    %v531 = vpack.c.b16 %v441, %v435
    %v532 = vpack.c.b16 %v442, %v436
    %v533 = vpack.c.b16 %v443, %v437
    %v534 = vpack.c.b16 %v444, %v438
    %v535 = vpack.c.b16 %v445, %v439
    %v536 = vpack.c.b16 %v446, %v440
    %v537 = vpack.c.b16 %v453, %v447
    %v538 = vpack.c.b16 %v454, %v448
    %v539 = vpack.c.b16 %v455, %v449
    %v540 = vpack.c.b16 %v456, %v450
    %v541 = vpack.c.b16 %v457, %v451
    %v542 = vpack.c.b16 %v458, %v452
    %v543 = vpack.c.b16 %v465, %v459
    %v544 = vpack.c.b16 %v466, %v460
    %v545 = vpack.c.b16 %v467, %v461
    %v546 = vpack.c.b16 %v468, %v462
    %v547 = vpack.c.b16 %v469, %v463
    %v548 = vpack.c.b16 %v470, %v464
    %v549 = vpack.c.b16 %v477, %v471
    %v550 = vpack.c.b16 %v478, %v472
    %v551 = vpack.c.b16 %v479, %v473
    %v552 = vpack.c.b16 %v480, %v474
    %v553 = vpack.c.b16 %v481, %v475
    %v554 = vpack.c.b16 %v482, %v476
    %v555 = vpack.c.b16 %v489, %v483
    %v556 = vpack.c.b16 %v490, %v484
    %v557 = vpack.c.b16 %v491, %v485
    %v558 = vpack.c.b16 %v492, %v486
    %v559 = vpack.c.b16 %v493, %v487
    %v560 = vpack.c.b16 %v494, %v488
    %v561 = vpack.c.b16 %v501, %v495
    %v562 = vpack.c.b16 %v502, %v496
    %v563 = vpack.c.b16 %v503, %v497
    %v564 = vpack.c.b16 %v504, %v498
    %v565 = vpack.c.b16 %v505, %v499
    %v566 = vpack.c.b16 %v506, %v500
    %v567 = vpack.c.b16 %v513, %v507
    %v568 = vpack.c.b16 %v514, %v508
    %v569 = vpack.c.b16 %v515, %v509
    %v570 = vpack.c.b16 %v516, %v510
    %v571 = vpack.c.b16 %v517, %v511
    %v572 = vpack.c.b16 %v518, %v512
    %v573 = vpack.c.b16 %v525, %v519
    %v574 = vpack.c.b16 %v526, %v520
    %v575 = vpack.c.b16 %v527, %v521
    %v576 = vpack.c.b16 %v528, %v522
    %v577 = vpack.c.b16 %v529, %v523
    %v578 = vpack.c.b16 %v530, %v524
    %627 = vmatprep.subr.bf16.mxu0 %v532
    %628 = vmatpush1.bf16.msra.mxu0 %v531
    %629 = vmatprep.subr.bf16.mxu0 %v538
    %630 = vmatpush1.bf16.msra.mxu0 %v537
    %631 = vmatprep.subr.bf16.mxu0 %v544
    %632 = vmatpush1.bf16.msra.mxu0 %v543
    %633 = vmatprep.subr.bf16.mxu0 %v550
    %634 = vmatpush1.bf16.msra.mxu0 %v549
    %635 = vmatprep.subr.bf16.mxu0 %v556
    %636 = vmatpush1.bf16.msra.mxu0 %v555
    %637 = vmatprep.subr.bf16.mxu0 %v562
    %638 = vmatpush1.bf16.msra.mxu0 %v561
    %639 = vmatprep.subr.bf16.mxu0 %v568
    %640 = vmatpush1.bf16.msra.mxu0 %v567
    %641 = vmatprep.subr.bf16.mxu0 %v574
    %642 = vmatpush1.bf16.msra.mxu0 %v573
    %643 = vmatprep.subr.bf16.mxu0 0
    %644 = vmatpush1.bf16.msra.mxu0 0
    %645 = vmatprep.subr.bf16.mxu0 0
    %646 = vmatpush1.bf16.msra.mxu0 0
    %647 = vmatprep.subr.bf16.mxu0 0
    %648 = vmatpush1.bf16.msra.mxu0 0
    %649 = vmatprep.subr.bf16.mxu0 0
    %650 = vmatpush1.bf16.msra.mxu0 0
    %651 = vmatprep.subr.bf16.mxu0 0
    %652 = vmatpush1.bf16.msra.mxu0 0
    %653 = vmatprep.subr.bf16.mxu0 0
    %654 = vmatpush1.bf16.msra.mxu0 0
    %655 = vmatprep.subr.bf16.mxu0 0
    %656 = vmatpush1.bf16.msra.mxu0 0
    %657 = vmatprep.subr.bf16.mxu0 0
    %658 = vmatpush1.bf16.msra.mxu0 0
    %659 = vmatprep.mubr.bf16.mxu0 0
    %660 = vmatmul.mubr.bf16.gmra.mrb[0].mxu0 %v385
    %v661 = vpop.f32.mrb[0].mxu0
    %v662 = vadd.f32 0.0, %v661
    %v663 = vpop.f32.mrb[0].mxu0
    %v664 = vadd.f32 0.0, %v663
    %v665 = vpop.f32.mrb[0].mxu0
    %v666 = vpop.f32.mrb[0].mxu0
    %667 = vdwg.mxu0
    %668 = vmatprep.subr.bf16.mxu0 %v534
    %669 = vmatpush1.bf16.msra.mxu0 %v533
    %670 = vmatprep.subr.bf16.mxu0 %v540
    %671 = vmatpush1.bf16.msra.mxu0 %v539
    %672 = vmatprep.subr.bf16.mxu0 %v546
    %673 = vmatpush1.bf16.msra.mxu0 %v545
    %674 = vmatprep.subr.bf16.mxu0 %v552
    %675 = vmatpush1.bf16.msra.mxu0 %v551
    %676 = vmatprep.subr.bf16.mxu0 %v558
    %677 = vmatpush1.bf16.msra.mxu0 %v557
    %678 = vmatprep.subr.bf16.mxu0 %v564
    %679 = vmatpush1.bf16.msra.mxu0 %v563
    %680 = vmatprep.subr.bf16.mxu0 %v570
    %681 = vmatpush1.bf16.msra.mxu0 %v569
    %682 = vmatprep.subr.bf16.mxu0 %v576
    %683 = vmatpush1.bf16.msra.mxu0 %v575
    %684 = vmatprep.subr.bf16.mxu0 0
    %685 = vmatpush1.bf16.msra.mxu0 0
    %686 = vmatprep.subr.bf16.mxu0 0
    %687 = vmatpush1.bf16.msra.mxu0 0
    %688 = vmatprep.subr.bf16.mxu0 0
    %689 = vmatpush1.bf16.msra.mxu0 0
    %690 = vmatprep.subr.bf16.mxu0 0
    %691 = vmatpush1.bf16.msra.mxu0 0
    %692 = vmatprep.subr.bf16.mxu0 0
    %693 = vmatpush1.bf16.msra.mxu0 0
    %694 = vmatprep.subr.bf16.mxu0 0
    %695 = vmatpush1.bf16.msra.mxu0 0
    %696 = vmatprep.subr.bf16.mxu0 0
    %697 = vmatpush1.bf16.msra.mxu0 0
    %698 = vmatprep.subr.bf16.mxu0 0
    %699 = vmatpush1.bf16.msra.mxu0 0
    %700 = vmatprep.mubr.bf16.mxu0 0
    %701 = vmatmul.mubr.bf16.gmra.mrb[0].mxu0 %v385
    %v702 = vpop.f32.mrb[0].mxu0
    %v703 = vadd.f32 0.0, %v702
    %v704 = vpop.f32.mrb[0].mxu0
    %v705 = vadd.f32 0.0, %v704
    %v706 = vpop.f32.mrb[0].mxu0
    %v707 = vpop.f32.mrb[0].mxu0
    %708 = vdwg.mxu0
    %709 = vmatprep.subr.bf16.mxu0 %v536
    %710 = vmatpush1.bf16.msra.mxu0 %v535
    %711 = vmatprep.subr.bf16.mxu0 %v542
    %712 = vmatpush1.bf16.msra.mxu0 %v541
    %713 = vmatprep.subr.bf16.mxu0 %v548
    %714 = vmatpush1.bf16.msra.mxu0 %v547
    %715 = vmatprep.subr.bf16.mxu0 %v554
    %716 = vmatpush1.bf16.msra.mxu0 %v553
    %717 = vmatprep.subr.bf16.mxu0 %v560
    %718 = vmatpush1.bf16.msra.mxu0 %v559
    %719 = vmatprep.subr.bf16.mxu0 %v566
    %720 = vmatpush1.bf16.msra.mxu0 %v565
    %721 = vmatprep.subr.bf16.mxu0 %v572
    %722 = vmatpush1.bf16.msra.mxu0 %v571
    %723 = vmatprep.subr.bf16.mxu0 %v578
    %724 = vmatpush1.bf16.msra.mxu0 %v577
    %725 = vmatprep.subr.bf16.mxu0 0
    %726 = vmatpush1.bf16.msra.mxu0 0
    %727 = vmatprep.subr.bf16.mxu0 0
    %728 = vmatpush1.bf16.msra.mxu0 0
    %729 = vmatprep.subr.bf16.mxu0 0
    %730 = vmatpush1.bf16.msra.mxu0 0
    %731 = vmatprep.subr.bf16.mxu0 0
    %732 = vmatpush1.bf16.msra.mxu0 0
    %733 = vmatprep.subr.bf16.mxu0 0
    %734 = vmatpush1.bf16.msra.mxu0 0
    %735 = vmatprep.subr.bf16.mxu0 0
    %736 = vmatpush1.bf16.msra.mxu0 0
    %737 = vmatprep.subr.bf16.mxu0 0
    %738 = vmatpush1.bf16.msra.mxu0 0
    %739 = vmatprep.subr.bf16.mxu0 0
    %740 = vmatpush1.bf16.msra.mxu0 0
    %741 = vmatprep.mubr.bf16.mxu0 0
    %742 = vmatmul.mubr.bf16.gmra.mrb[0].mxu0 %v385
    %v743 = vpop.f32.mrb[0].mxu0
    %v744 = vadd.f32 0.0, %v743
    %v745 = vpop.f32.mrb[0].mxu0
    %v746 = vadd.f32 0.0, %v745
    %v747 = vpop.f32.mrb[0].mxu0
    %v748 = vpop.f32.mrb[0].mxu0
    %749 = vdwg.mxu0
    %v750 = vmul.f32 %v662, %v298
    %v751 = vmul.f32 %v664, %v298
    %v752 = vmul.f32 %v703, %v298
    %v753 = vmul.f32 %v705, %v298
    %v754 = vmul.f32 %v744, %v298
    %v755 = vmul.f32 %v746, %v298
    %v756 = vld [vmem:[%s4] sm:$0x3f]
    %v758 = vlaneseq
    %v759 = vshrl.u32 %v758, 7
    %v760 = vsub.s32 0, %v759
    %v761 = vrot.slane %v756, %v760
    %v762 = vlaneseq
    %v763 = vshrl.u32 %v762, 7
    %v764 = vsub.s32 1, %v763
    %v765 = vrot.slane %v756, %v764
    %v766 = vlaneseq
    %v767 = vshrl.u32 %v766, 7
    %v768 = vsub.s32 2, %v767
    %v769 = vrot.slane %v756, %v768
    %v770 = vlaneseq
    %v771 = vshrl.u32 %v770, 7
    %v772 = vsub.s32 3, %v771
    %v773 = vrot.slane %v756, %v772
    %v774 = vlaneseq
    %v775 = vshrl.u32 %v774, 7
    %v776 = vsub.s32 4, %v775
    %v777 = vrot.slane %v756, %v776
    %v778 = vlaneseq
    %v779 = vshrl.u32 %v778, 7
    %v780 = vsub.s32 5, %v779
    %v781 = vrot.slane %v756, %v780
    %v788 = vadd.f32 %v750, %v761
    %v789 = vadd.f32 %v751, %v765
    %v790 = vadd.f32 %v752, %v769
    %v791 = vadd.f32 %v753, %v773
    %v792 = vadd.f32 %v754, %v777
    %v793 = vadd.f32 %v755, %v781
    %v794 = vtanh.pop %v788
    %v795 = vtanh.pop %v789
    %v796 = vtanh.pop %v790
    %v797 = vtanh.pop %v791
    %v798 = vtanh.pop %v792
    %v799 = vtanh.pop %v793
    %v800 = vld [vmem:[%s0] sm:$0xff]
    %v801 = vld [vmem:[%s0 + $0x8] sm:$0xff]
    %v802 = vld [vmem:[%s0 + $0x10] sm:$0xff]
    %v803 = vld [vmem:[#allocation4] sm:$0xff]
    %v804 = vld [vmem:[#allocation4 + $0x8] sm:$0xff]
    %v805 = vld [vmem:[#allocation4 + $0x10] sm:$0xff]
    %v806 = vld [vmem:[#allocation4 + $0x18] sm:$0xff]
    %v807 = vld [vmem:[#allocation4 + $0x20] sm:$0xff]
    %v808 = vld [vmem:[#allocation4 + $0x28] sm:$0xff]
    %v809 = vld [vmem:[#allocation4 + $0x30] sm:$0xff]
    %v810 = vld [vmem:[#allocation4 + $0x38] sm:$0xff]
    %v811 = vld [vmem:[#allocation4 + $0x40] sm:$0xff]
    %v812 = vld [vmem:[#allocation4 + $0x48] sm:$0xff]
    %v813 = vld [vmem:[#allocation4 + $0x50] sm:$0xff]
    %v814 = vld [vmem:[#allocation4 + $0x58] sm:$0xff]
    %v815 = vld [vmem:[#allocation4 + $0x60] sm:$0xff]
    %v816 = vld [vmem:[#allocation4 + $0x68] sm:$0xff]
    %v817 = vld [vmem:[#allocation4 + $0x70] sm:$0xff]
    %v818 = vld [vmem:[#allocation4 + $0x78] sm:$0xff]
    %v819 = vld [vmem:[#allocation4 + $0x80] sm:$0xff]
    %v820 = vld [vmem:[#allocation4 + $0x88] sm:$0xff]
    %v821 = vld [vmem:[#allocation4 + $0x90] sm:$0xff]
    %v822 = vld [vmem:[#allocation4 + $0x98] sm:$0xff]
    %v823 = vld [vmem:[#allocation4 + $0xa0] sm:$0xff]
    %v824 = vld [vmem:[#allocation4 + $0xa8] sm:$0xff]
    %v825 = vld [vmem:[#allocation4 + $0xb0] sm:$0xff]
    %v826 = vld [vmem:[#allocation4 + $0xb8] sm:$0xff]
    %v827 = vld [vmem:[#allocation4 + $0xc0] sm:$0xff]
    %v828 = vld [vmem:[#allocation4 + $0xc8] sm:$0xff]
    %v829 = vld [vmem:[#allocation4 + $0xd0] sm:$0xff]
    %v830 = vld [vmem:[#allocation4 + $0xd8] sm:$0xff]
    %v831 = vld [vmem:[#allocation4 + $0xe0] sm:$0xff]
    %v832 = vld [vmem:[#allocation4 + $0xe8] sm:$0xff]
    %v833 = vld [vmem:[#allocation4 + $0xf0] sm:$0xff]
    %v834 = vld [vmem:[#allocation4 + $0xf8] sm:$0xff]
    %v835 = vld [vmem:[#allocation4 + $0x100] sm:$0xff]
    %v836 = vld [vmem:[#allocation4 + $0x108] sm:$0xff]
    %v837 = vld [vmem:[#allocation4 + $0x110] sm:$0xff]
    %v838 = vld [vmem:[#allocation4 + $0x118] sm:$0xff]
    %v839 = vld [vmem:[#allocation4 + $0x120] sm:$0xff]
    %v840 = vld [vmem:[#allocation4 + $0x128] sm:$0xff]
    %v841 = vld [vmem:[#allocation4 + $0x130] sm:$0xff]
    %v842 = vld [vmem:[#allocation4 + $0x138] sm:$0xff]
    %v843 = vld [vmem:[#allocation4 + $0x140] sm:$0xff]
    %v844 = vld [vmem:[#allocation4 + $0x148] sm:$0xff]
    %v845 = vld [vmem:[#allocation4 + $0x150] sm:$0xff]
    %v846 = vld [vmem:[#allocation4 + $0x158] sm:$0xff]
    %v847 = vld [vmem:[#allocation4 + $0x160] sm:$0xff]
    %v848 = vld [vmem:[#allocation4 + $0x168] sm:$0xff]
    %v849 = vld [vmem:[#allocation4 + $0x170] sm:$0xff]
    %v850 = vld [vmem:[#allocation4 + $0x178] sm:$0xff]
    %v851 = vld [vmem:[#allocation4 + $0x180] sm:$0xff]
    %v852 = vld [vmem:[#allocation4 + $0x188] sm:$0xff]
    %v853 = vld [vmem:[#allocation4 + $0x190] sm:$0xff]
    %v854 = vld [vmem:[#allocation4 + $0x198] sm:$0xff]
    %v855 = vld [vmem:[#allocation4 + $0x1a0] sm:$0xff]
    %v856 = vld [vmem:[#allocation4 + $0x1a8] sm:$0xff]
    %v857 = vld [vmem:[#allocation4 + $0x1b0] sm:$0xff]
    %v858 = vld [vmem:[#allocation4 + $0x1b8] sm:$0xff]
    %v859 = vld [vmem:[#allocation4 + $0x1c0] sm:$0xff]
    %v860 = vld [vmem:[#allocation4 + $0x1c8] sm:$0xff]
    %v861 = vld [vmem:[#allocation4 + $0x1d0] sm:$0xff]
    %v862 = vld [vmem:[#allocation4 + $0x1d8] sm:$0xff]
    %v863 = vld [vmem:[#allocation4 + $0x1e0] sm:$0xff]
    %v864 = vld [vmem:[#allocation4 + $0x1e8] sm:$0xff]
    %v865 = vld [vmem:[#allocation4 + $0x1f0] sm:$0xff]
    %v866 = vld [vmem:[#allocation4 + $0x1f8] sm:$0xff]
    %v867 = vld [vmem:[#allocation4 + $0x200] sm:$0xff]
    %v868 = vld [vmem:[#allocation4 + $0x208] sm:$0xff]
    %v869 = vld [vmem:[#allocation4 + $0x210] sm:$0xff]
    %v870 = vld [vmem:[#allocation4 + $0x218] sm:$0xff]
    %v871 = vld [vmem:[#allocation4 + $0x220] sm:$0xff]
    %v872 = vld [vmem:[#allocation4 + $0x228] sm:$0xff]
    %v873 = vld [vmem:[#allocation4 + $0x230] sm:$0xff]
    %v874 = vld [vmem:[#allocation4 + $0x238] sm:$0xff]
    %v875 = vld [vmem:[#allocation4 + $0x240] sm:$0xff]
    %v876 = vld [vmem:[#allocation4 + $0x248] sm:$0xff]
    %v877 = vld [vmem:[#allocation4 + $0x250] sm:$0xff]
    %v878 = vld [vmem:[#allocation4 + $0x258] sm:$0xff]
    %v879 = vld [vmem:[#allocation4 + $0x260] sm:$0xff]
    %v880 = vld [vmem:[#allocation4 + $0x268] sm:$0xff]
    %v881 = vld [vmem:[#allocation4 + $0x270] sm:$0xff]
    %v882 = vld [vmem:[#allocation4 + $0x278] sm:$0xff]
    %v883 = vld [vmem:[#allocation4 + $0x280] sm:$0xff]
    %v884 = vld [vmem:[#allocation4 + $0x288] sm:$0xff]
    %v885 = vld [vmem:[#allocation4 + $0x290] sm:$0xff]
    %v886 = vld [vmem:[#allocation4 + $0x298] sm:$0xff]
    %v887 = vld [vmem:[#allocation4 + $0x2a0] sm:$0xff]
    %v888 = vld [vmem:[#allocation4 + $0x2a8] sm:$0xff]
    %v889 = vld [vmem:[#allocation4 + $0x2b0] sm:$0xff]
    %v890 = vld [vmem:[#allocation4 + $0x2b8] sm:$0xff]
    %v891 = vld [vmem:[#allocation4 + $0x2c0] sm:$0xff]
    %v892 = vld [vmem:[#allocation4 + $0x2c8] sm:$0xff]
    %v893 = vld [vmem:[#allocation4 + $0x2d0] sm:$0xff]
    %v894 = vld [vmem:[#allocation4 + $0x2d8] sm:$0xff]
    %v895 = vld [vmem:[#allocation4 + $0x2e0] sm:$0xff]
    %v896 = vld [vmem:[#allocation4 + $0x2e8] sm:$0xff]
    %v897 = vld [vmem:[#allocation4 + $0x2f0] sm:$0xff]
    %v898 = vld [vmem:[#allocation4 + $0x2f8] sm:$0xff]
    %v899 = vld [vmem:[#allocation4 + $0x300] sm:$0xff]
    %v900 = vld [vmem:[#allocation4 + $0x308] sm:$0xff]
    %v901 = vld [vmem:[#allocation4 + $0x310] sm:$0xff]
    %v902 = vld [vmem:[#allocation4 + $0x318] sm:$0xff]
    %v903 = vld [vmem:[#allocation4 + $0x320] sm:$0xff]
    %v904 = vld [vmem:[#allocation4 + $0x328] sm:$0xff]
    %v905 = vld [vmem:[#allocation4 + $0x330] sm:$0xff]
    %v906 = vld [vmem:[#allocation4 + $0x338] sm:$0xff]
    %v907 = vld [vmem:[#allocation4 + $0x340] sm:$0xff]
    %v908 = vld [vmem:[#allocation4 + $0x348] sm:$0xff]
    %v909 = vld [vmem:[#allocation4 + $0x350] sm:$0xff]
    %v910 = vld [vmem:[#allocation4 + $0x358] sm:$0xff]
    %v911 = vld [vmem:[#allocation4 + $0x360] sm:$0xff]
    %v912 = vld [vmem:[#allocation4 + $0x368] sm:$0xff]
    %v913 = vld [vmem:[#allocation4 + $0x370] sm:$0xff]
    %v914 = vld [vmem:[#allocation4 + $0x378] sm:$0xff]
    %v915 = vld [vmem:[#allocation4 + $0x380] sm:$0xff]
    %v916 = vld [vmem:[#allocation4 + $0x388] sm:$0xff]
    %v917 = vld [vmem:[#allocation4 + $0x390] sm:$0xff]
    %v918 = vld [vmem:[#allocation4 + $0x398] sm:$0xff]
    %v919 = vld [vmem:[#allocation4 + $0x3a0] sm:$0xff]
    %v920 = vld [vmem:[#allocation4 + $0x3a8] sm:$0xff]
    %v921 = vld [vmem:[#allocation4 + $0x3b0] sm:$0xff]
    %v922 = vld [vmem:[#allocation4 + $0x3b8] sm:$0xff]
    %v923 = vld [vmem:[#allocation4 + $0x3c0] sm:$0xff]
    %v924 = vld [vmem:[#allocation4 + $0x3c8] sm:$0xff]
    %v925 = vld [vmem:[#allocation4 + $0x3d0] sm:$0xff]
    %v926 = vld [vmem:[#allocation4 + $0x3d8] sm:$0xff]
    %v927 = vld [vmem:[#allocation4 + $0x3e0] sm:$0xff]
    %v928 = vld [vmem:[#allocation4 + $0x3e8] sm:$0xff]
    %v929 = vld [vmem:[#allocation4 + $0x3f0] sm:$0xff]
    %v930 = vld [vmem:[#allocation4 + $0x3f8] sm:$0xff]
    %v931 = vld [vmem:[#allocation4 + $0x400] sm:$0xff]
    %v932 = vld [vmem:[#allocation4 + $0x408] sm:$0xff]
    %v933 = vld [vmem:[#allocation4 + $0x410] sm:$0xff]
    %v934 = vld [vmem:[#allocation4 + $0x418] sm:$0xff]
    %v935 = vld [vmem:[#allocation4 + $0x420] sm:$0xff]
    %v936 = vld [vmem:[#allocation4 + $0x428] sm:$0xff]
    %v937 = vld [vmem:[#allocation4 + $0x430] sm:$0xff]
    %v938 = vld [vmem:[#allocation4 + $0x438] sm:$0xff]
    %v939 = vld [vmem:[#allocation4 + $0x440] sm:$0xff]
    %v940 = vld [vmem:[#allocation4 + $0x448] sm:$0xff]
    %v941 = vld [vmem:[#allocation4 + $0x450] sm:$0xff]
    %v942 = vld [vmem:[#allocation4 + $0x458] sm:$0xff]
    %v943 = vld [vmem:[#allocation4 + $0x460] sm:$0xff]
    %v944 = vld [vmem:[#allocation4 + $0x468] sm:$0xff]
    %v945 = vld [vmem:[#allocation4 + $0x470] sm:$0xff]
    %v946 = vld [vmem:[#allocation4 + $0x478] sm:$0xff]
    %v947 = vld [vmem:[#allocation4 + $0x480] sm:$0xff]
    %v948 = vld [vmem:[#allocation4 + $0x488] sm:$0xff]
    %v949 = vld [vmem:[#allocation4 + $0x490] sm:$0xff]
    %v950 = vld [vmem:[#allocation4 + $0x498] sm:$0xff]
    %v951 = vld [vmem:[#allocation4 + $0x4a0] sm:$0xff]
    %v952 = vld [vmem:[#allocation4 + $0x4a8] sm:$0xff]
    %v953 = vld [vmem:[#allocation4 + $0x4b0] sm:$0xff]
    %v954 = vld [vmem:[#allocation4 + $0x4b8] sm:$0xff]
    %v955 = vld [vmem:[#allocation4 + $0x4c0] sm:$0xff]
    %v956 = vld [vmem:[#allocation4 + $0x4c8] sm:$0xff]
    %v957 = vld [vmem:[#allocation4 + $0x4d0] sm:$0xff]
    %v958 = vld [vmem:[#allocation4 + $0x4d8] sm:$0xff]
    %v959 = vld [vmem:[#allocation4 + $0x4e0] sm:$0xff]
    %v960 = vld [vmem:[#allocation4 + $0x4e8] sm:$0xff]
    %v961 = vld [vmem:[#allocation4 + $0x4f0] sm:$0xff]
    %v962 = vld [vmem:[#allocation4 + $0x4f8] sm:$0xff]
    %v963 = vld [vmem:[#allocation4 + $0x500] sm:$0xff]
    %v964 = vld [vmem:[#allocation4 + $0x508] sm:$0xff]
    %v965 = vld [vmem:[#allocation4 + $0x510] sm:$0xff]
    %v966 = vld [vmem:[#allocation4 + $0x518] sm:$0xff]
    %v967 = vld [vmem:[#allocation4 + $0x520] sm:$0xff]
    %v968 = vld [vmem:[#allocation4 + $0x528] sm:$0xff]
    %v969 = vld [vmem:[#allocation4 + $0x530] sm:$0xff]
    %v970 = vld [vmem:[#allocation4 + $0x538] sm:$0xff]
    %v971 = vld [vmem:[#allocation4 + $0x540] sm:$0xff]
    %v972 = vld [vmem:[#allocation4 + $0x548] sm:$0xff]
    %v973 = vld [vmem:[#allocation4 + $0x550] sm:$0xff]
    %v974 = vld [vmem:[#allocation4 + $0x558] sm:$0xff]
    %v975 = vld [vmem:[#allocation4 + $0x560] sm:$0xff]
    %v976 = vld [vmem:[#allocation4 + $0x568] sm:$0xff]
    %v977 = vld [vmem:[#allocation4 + $0x570] sm:$0xff]
    %v978 = vld [vmem:[#allocation4 + $0x578] sm:$0xff]
    %v979 = vld [vmem:[#allocation4 + $0x580] sm:$0xff]
    %v980 = vld [vmem:[#allocation4 + $0x588] sm:$0xff]
    %v981 = vld [vmem:[#allocation4 + $0x590] sm:$0xff]
    %v982 = vld [vmem:[#allocation4 + $0x598] sm:$0xff]
    %v983 = vld [vmem:[#allocation4 + $0x5a0] sm:$0xff]
    %v984 = vld [vmem:[#allocation4 + $0x5a8] sm:$0xff]
    %v985 = vld [vmem:[#allocation4 + $0x5b0] sm:$0xff]
    %v986 = vld [vmem:[#allocation4 + $0x5b8] sm:$0xff]
    %v987 = vld [vmem:[#allocation4 + $0x5c0] sm:$0xff]
    %v988 = vld [vmem:[#allocation4 + $0x5c8] sm:$0xff]
    %v989 = vld [vmem:[#allocation4 + $0x5d0] sm:$0xff]
    %v990 = vld [vmem:[#allocation4 + $0x5d8] sm:$0xff]
    %v991 = vld [vmem:[#allocation4 + $0x5e0] sm:$0xff]
    %v992 = vld [vmem:[#allocation4 + $0x5e8] sm:$0xff]
    %v993 = vld [vmem:[#allocation4 + $0x5f0] sm:$0xff]
    %v994 = vld [vmem:[#allocation4 + $0x5f8] sm:$0xff]
    %v995 = vld [vmem:[%s6] sm:$0xf]
    %v997 = vlaneseq
    %v998 = vshrl.u32 %v997, 7
    %v999 = vsub.s32 0, %v998
    %v1000 = vrot.slane %v995, %v999
    %v1001 = vlaneseq
    %v1002 = vshrl.u32 %v1001, 7
    %v1003 = vsub.s32 1, %v1002
    %v1004 = vrot.slane %v995, %v1003
    %v1005 = vlaneseq
    %v1006 = vshrl.u32 %v1005, 7
    %v1007 = vsub.s32 2, %v1006
    %v1008 = vrot.slane %v995, %v1007
    %v1009 = vlaneseq
    %v1010 = vshrl.u32 %v1009, 7
    %v1011 = vsub.s32 3, %v1010
    %v1012 = vrot.slane %v995, %v1011
    %v1020 = vunpack.c.l.b16 %v800
    %v1021 = vunpack.c.h.b16 %v800
    %v1022 = vunpack.c.l.b16 %v801
    %v1023 = vunpack.c.h.b16 %v801
    %v1024 = vunpack.c.l.b16 %v802
    %v1025 = vunpack.c.h.b16 %v802
    %v1026 = vpack.c.b16 %v1020, %v1020
    %v1027 = vpack.c.b16 %v1021, %v1021
    %v1028 = vpack.c.b16 %v1022, %v1022
    %v1029 = vpack.c.b16 %v1023, %v1023
    %v1030 = vpack.c.b16 %v1024, %v1024
    %v1031 = vpack.c.b16 %v1025, %v1025
    %v1230 = vunpack.c.l.b16 %v803
    %v1231 = vunpack.c.h.b16 %v803
    %v1232 = vunpack.c.l.b16 %v804
    %v1233 = vunpack.c.h.b16 %v804
    %v1234 = vunpack.c.l.b16 %v805
    %v1235 = vunpack.c.h.b16 %v805
    %v1236 = vunpack.c.l.b16 %v806
    %v1237 = vunpack.c.h.b16 %v806
    %v1238 = vunpack.c.l.b16 %v807
    %v1239 = vunpack.c.h.b16 %v807
    %v1240 = vunpack.c.l.b16 %v808
    %v1241 = vunpack.c.h.b16 %v808
    %v1242 = vunpack.c.l.b16 %v809
    %v1243 = vunpack.c.h.b16 %v809
    %v1244 = vunpack.c.l.b16 %v810
    %v1245 = vunpack.c.h.b16 %v810
    %v1246 = vunpack.c.l.b16 %v811
    %v1247 = vunpack.c.h.b16 %v811
    %v1248 = vunpack.c.l.b16 %v812
    %v1249 = vunpack.c.h.b16 %v812
    %v1250 = vunpack.c.l.b16 %v813
    %v1251 = vunpack.c.h.b16 %v813
    %v1252 = vunpack.c.l.b16 %v814
    %v1253 = vunpack.c.h.b16 %v814
    %v1254 = vunpack.c.l.b16 %v815
    %v1255 = vunpack.c.h.b16 %v815
    %v1256 = vunpack.c.l.b16 %v816
    %v1257 = vunpack.c.h.b16 %v816
    %v1258 = vunpack.c.l.b16 %v817
    %v1259 = vunpack.c.h.b16 %v817
    %v1260 = vunpack.c.l.b16 %v818
    %v1261 = vunpack.c.h.b16 %v818
    %v1262 = vunpack.c.l.b16 %v819
    %v1263 = vunpack.c.h.b16 %v819
    %v1264 = vunpack.c.l.b16 %v820
    %v1265 = vunpack.c.h.b16 %v820
    %v1266 = vunpack.c.l.b16 %v821
    %v1267 = vunpack.c.h.b16 %v821
    %v1268 = vunpack.c.l.b16 %v822
    %v1269 = vunpack.c.h.b16 %v822
    %v1270 = vunpack.c.l.b16 %v823
    %v1271 = vunpack.c.h.b16 %v823
    %v1272 = vunpack.c.l.b16 %v824
    %v1273 = vunpack.c.h.b16 %v824
    %v1274 = vunpack.c.l.b16 %v825
    %v1275 = vunpack.c.h.b16 %v825
    %v1276 = vunpack.c.l.b16 %v826
    %v1277 = vunpack.c.h.b16 %v826
    %v1278 = vunpack.c.l.b16 %v827
    %v1279 = vunpack.c.h.b16 %v827
    %v1280 = vunpack.c.l.b16 %v828
    %v1281 = vunpack.c.h.b16 %v828
    %v1282 = vunpack.c.l.b16 %v829
    %v1283 = vunpack.c.h.b16 %v829
    %v1284 = vunpack.c.l.b16 %v830
    %v1285 = vunpack.c.h.b16 %v830
    %v1286 = vunpack.c.l.b16 %v831
    %v1287 = vunpack.c.h.b16 %v831
    %v1288 = vunpack.c.l.b16 %v832
    %v1289 = vunpack.c.h.b16 %v832
    %v1290 = vunpack.c.l.b16 %v833
    %v1291 = vunpack.c.h.b16 %v833
    %v1292 = vunpack.c.l.b16 %v834
    %v1293 = vunpack.c.h.b16 %v834
    %v1294 = vunpack.c.l.b16 %v835
    %v1295 = vunpack.c.h.b16 %v835
    %v1296 = vunpack.c.l.b16 %v836
    %v1297 = vunpack.c.h.b16 %v836
    %v1298 = vunpack.c.l.b16 %v837
    %v1299 = vunpack.c.h.b16 %v837
    %v1300 = vunpack.c.l.b16 %v838
    %v1301 = vunpack.c.h.b16 %v838
    %v1302 = vunpack.c.l.b16 %v839
    %v1303 = vunpack.c.h.b16 %v839
    %v1304 = vunpack.c.l.b16 %v840
    %v1305 = vunpack.c.h.b16 %v840
    %v1306 = vunpack.c.l.b16 %v841
    %v1307 = vunpack.c.h.b16 %v841
    %v1308 = vunpack.c.l.b16 %v842
    %v1309 = vunpack.c.h.b16 %v842
    %v1310 = vunpack.c.l.b16 %v843
    %v1311 = vunpack.c.h.b16 %v843
    %v1312 = vunpack.c.l.b16 %v844
    %v1313 = vunpack.c.h.b16 %v844
    %v1314 = vunpack.c.l.b16 %v845
    %v1315 = vunpack.c.h.b16 %v845
    %v1316 = vunpack.c.l.b16 %v846
    %v1317 = vunpack.c.h.b16 %v846
    %v1318 = vunpack.c.l.b16 %v847
    %v1319 = vunpack.c.h.b16 %v847
    %v1320 = vunpack.c.l.b16 %v848
    %v1321 = vunpack.c.h.b16 %v848
    %v1322 = vunpack.c.l.b16 %v849
    %v1323 = vunpack.c.h.b16 %v849
    %v1324 = vunpack.c.l.b16 %v850
    %v1325 = vunpack.c.h.b16 %v850
    %v1326 = vunpack.c.l.b16 %v851
    %v1327 = vunpack.c.h.b16 %v851
    %v1328 = vunpack.c.l.b16 %v852
    %v1329 = vunpack.c.h.b16 %v852
    %v1330 = vunpack.c.l.b16 %v853
    %v1331 = vunpack.c.h.b16 %v853
    %v1332 = vunpack.c.l.b16 %v854
    %v1333 = vunpack.c.h.b16 %v854
    %v1334 = vunpack.c.l.b16 %v855
    %v1335 = vunpack.c.h.b16 %v855
    %v1336 = vunpack.c.l.b16 %v856
    %v1337 = vunpack.c.h.b16 %v856
    %v1338 = vunpack.c.l.b16 %v857
    %v1339 = vunpack.c.h.b16 %v857
    %v1340 = vunpack.c.l.b16 %v858
    %v1341 = vunpack.c.h.b16 %v858
    %v1342 = vunpack.c.l.b16 %v859
    %v1343 = vunpack.c.h.b16 %v859
    %v1344 = vunpack.c.l.b16 %v860
    %v1345 = vunpack.c.h.b16 %v860
    %v1346 = vunpack.c.l.b16 %v861
    %v1347 = vunpack.c.h.b16 %v861
    %v1348 = vunpack.c.l.b16 %v862
    %v1349 = vunpack.c.h.b16 %v862
    %v1350 = vunpack.c.l.b16 %v863
    %v1351 = vunpack.c.h.b16 %v863
    %v1352 = vunpack.c.l.b16 %v864
    %v1353 = vunpack.c.h.b16 %v864
    %v1354 = vunpack.c.l.b16 %v865
    %v1355 = vunpack.c.h.b16 %v865
    %v1356 = vunpack.c.l.b16 %v866
    %v1357 = vunpack.c.h.b16 %v866
    %v1358 = vunpack.c.l.b16 %v867
    %v1359 = vunpack.c.h.b16 %v867
    %v1360 = vunpack.c.l.b16 %v868
    %v1361 = vunpack.c.h.b16 %v868
    %v1362 = vunpack.c.l.b16 %v869
    %v1363 = vunpack.c.h.b16 %v869
    %v1364 = vunpack.c.l.b16 %v870
    %v1365 = vunpack.c.h.b16 %v870
    %v1366 = vunpack.c.l.b16 %v871
    %v1367 = vunpack.c.h.b16 %v871
    %v1368 = vunpack.c.l.b16 %v872
    %v1369 = vunpack.c.h.b16 %v872
    %v1370 = vunpack.c.l.b16 %v873
    %v1371 = vunpack.c.h.b16 %v873
    %v1372 = vunpack.c.l.b16 %v874
    %v1373 = vunpack.c.h.b16 %v874
    %v1374 = vunpack.c.l.b16 %v875
    %v1375 = vunpack.c.h.b16 %v875
    %v1376 = vunpack.c.l.b16 %v876
    %v1377 = vunpack.c.h.b16 %v876
    %v1378 = vunpack.c.l.b16 %v877
    %v1379 = vunpack.c.h.b16 %v877
    %v1380 = vunpack.c.l.b16 %v878
    %v1381 = vunpack.c.h.b16 %v878
    %v1382 = vunpack.c.l.b16 %v879
    %v1383 = vunpack.c.h.b16 %v879
    %v1384 = vunpack.c.l.b16 %v880
    %v1385 = vunpack.c.h.b16 %v880
    %v1386 = vunpack.c.l.b16 %v881
    %v1387 = vunpack.c.h.b16 %v881
    %v1388 = vunpack.c.l.b16 %v882
    %v1389 = vunpack.c.h.b16 %v882
    %v1390 = vunpack.c.l.b16 %v883
    %v1391 = vunpack.c.h.b16 %v883
    %v1392 = vunpack.c.l.b16 %v884
    %v1393 = vunpack.c.h.b16 %v884
    %v1394 = vunpack.c.l.b16 %v885
    %v1395 = vunpack.c.h.b16 %v885
    %v1396 = vunpack.c.l.b16 %v886
    %v1397 = vunpack.c.h.b16 %v886
    %v1398 = vunpack.c.l.b16 %v887
    %v1399 = vunpack.c.h.b16 %v887
    %v1400 = vunpack.c.l.b16 %v888
    %v1401 = vunpack.c.h.b16 %v888
    %v1402 = vunpack.c.l.b16 %v889
    %v1403 = vunpack.c.h.b16 %v889
    %v1404 = vunpack.c.l.b16 %v890
    %v1405 = vunpack.c.h.b16 %v890
    %v1406 = vunpack.c.l.b16 %v891
    %v1407 = vunpack.c.h.b16 %v891
    %v1408 = vunpack.c.l.b16 %v892
    %v1409 = vunpack.c.h.b16 %v892
    %v1410 = vunpack.c.l.b16 %v893
    %v1411 = vunpack.c.h.b16 %v893
    %v1412 = vunpack.c.l.b16 %v894
    %v1413 = vunpack.c.h.b16 %v894
    %v1414 = vunpack.c.l.b16 %v895
    %v1415 = vunpack.c.h.b16 %v895
    %v1416 = vunpack.c.l.b16 %v896
    %v1417 = vunpack.c.h.b16 %v896
    %v1418 = vunpack.c.l.b16 %v897
    %v1419 = vunpack.c.h.b16 %v897
    %v1420 = vunpack.c.l.b16 %v898
    %v1421 = vunpack.c.h.b16 %v898
    %v1422 = vunpack.c.l.b16 %v899
    %v1423 = vunpack.c.h.b16 %v899
    %v1424 = vunpack.c.l.b16 %v900
    %v1425 = vunpack.c.h.b16 %v900
    %v1426 = vunpack.c.l.b16 %v901
    %v1427 = vunpack.c.h.b16 %v901
    %v1428 = vunpack.c.l.b16 %v902
    %v1429 = vunpack.c.h.b16 %v902
    %v1430 = vunpack.c.l.b16 %v903
    %v1431 = vunpack.c.h.b16 %v903
    %v1432 = vunpack.c.l.b16 %v904
    %v1433 = vunpack.c.h.b16 %v904
    %v1434 = vunpack.c.l.b16 %v905
    %v1435 = vunpack.c.h.b16 %v905
    %v1436 = vunpack.c.l.b16 %v906
    %v1437 = vunpack.c.h.b16 %v906
    %v1438 = vunpack.c.l.b16 %v907
    %v1439 = vunpack.c.h.b16 %v907
    %v1440 = vunpack.c.l.b16 %v908
    %v1441 = vunpack.c.h.b16 %v908
    %v1442 = vunpack.c.l.b16 %v909
    %v1443 = vunpack.c.h.b16 %v909
    %v1444 = vunpack.c.l.b16 %v910
    %v1445 = vunpack.c.h.b16 %v910
    %v1446 = vunpack.c.l.b16 %v911
    %v1447 = vunpack.c.h.b16 %v911
    %v1448 = vunpack.c.l.b16 %v912
    %v1449 = vunpack.c.h.b16 %v912
    %v1450 = vunpack.c.l.b16 %v913
    %v1451 = vunpack.c.h.b16 %v913
    %v1452 = vunpack.c.l.b16 %v914
    %v1453 = vunpack.c.h.b16 %v914
    %v1454 = vunpack.c.l.b16 %v915
    %v1455 = vunpack.c.h.b16 %v915
    %v1456 = vunpack.c.l.b16 %v916
    %v1457 = vunpack.c.h.b16 %v916
    %v1458 = vunpack.c.l.b16 %v917
    %v1459 = vunpack.c.h.b16 %v917
    %v1460 = vunpack.c.l.b16 %v918
    %v1461 = vunpack.c.h.b16 %v918
    %v1462 = vunpack.c.l.b16 %v919
    %v1463 = vunpack.c.h.b16 %v919
    %v1464 = vunpack.c.l.b16 %v920
    %v1465 = vunpack.c.h.b16 %v920
    %v1466 = vunpack.c.l.b16 %v921
    %v1467 = vunpack.c.h.b16 %v921
    %v1468 = vunpack.c.l.b16 %v922
    %v1469 = vunpack.c.h.b16 %v922
    %v1470 = vunpack.c.l.b16 %v923
    %v1471 = vunpack.c.h.b16 %v923
    %v1472 = vunpack.c.l.b16 %v924
    %v1473 = vunpack.c.h.b16 %v924
    %v1474 = vunpack.c.l.b16 %v925
    %v1475 = vunpack.c.h.b16 %v925
    %v1476 = vunpack.c.l.b16 %v926
    %v1477 = vunpack.c.h.b16 %v926
    %v1478 = vunpack.c.l.b16 %v927
    %v1479 = vunpack.c.h.b16 %v927
    %v1480 = vunpack.c.l.b16 %v928
    %v1481 = vunpack.c.h.b16 %v928
    %v1482 = vunpack.c.l.b16 %v929
    %v1483 = vunpack.c.h.b16 %v929
    %v1484 = vunpack.c.l.b16 %v930
    %v1485 = vunpack.c.h.b16 %v930
    %v1486 = vunpack.c.l.b16 %v931
    %v1487 = vunpack.c.h.b16 %v931
    %v1488 = vunpack.c.l.b16 %v932
    %v1489 = vunpack.c.h.b16 %v932
    %v1490 = vunpack.c.l.b16 %v933
    %v1491 = vunpack.c.h.b16 %v933
    %v1492 = vunpack.c.l.b16 %v934
    %v1493 = vunpack.c.h.b16 %v934
    %v1494 = vunpack.c.l.b16 %v935
    %v1495 = vunpack.c.h.b16 %v935
    %v1496 = vunpack.c.l.b16 %v936
    %v1497 = vunpack.c.h.b16 %v936
    %v1498 = vunpack.c.l.b16 %v937
    %v1499 = vunpack.c.h.b16 %v937
    %v1500 = vunpack.c.l.b16 %v938
    %v1501 = vunpack.c.h.b16 %v938
    %v1502 = vunpack.c.l.b16 %v939
    %v1503 = vunpack.c.h.b16 %v939
    %v1504 = vunpack.c.l.b16 %v940
    %v1505 = vunpack.c.h.b16 %v940
    %v1506 = vunpack.c.l.b16 %v941
    %v1507 = vunpack.c.h.b16 %v941
    %v1508 = vunpack.c.l.b16 %v942
    %v1509 = vunpack.c.h.b16 %v942
    %v1510 = vunpack.c.l.b16 %v943
    %v1511 = vunpack.c.h.b16 %v943
    %v1512 = vunpack.c.l.b16 %v944
    %v1513 = vunpack.c.h.b16 %v944
    %v1514 = vunpack.c.l.b16 %v945
    %v1515 = vunpack.c.h.b16 %v945
    %v1516 = vunpack.c.l.b16 %v946
    %v1517 = vunpack.c.h.b16 %v946
    %v1518 = vunpack.c.l.b16 %v947
    %v1519 = vunpack.c.h.b16 %v947
    %v1520 = vunpack.c.l.b16 %v948
    %v1521 = vunpack.c.h.b16 %v948
    %v1522 = vunpack.c.l.b16 %v949
    %v1523 = vunpack.c.h.b16 %v949
    %v1524 = vunpack.c.l.b16 %v950
    %v1525 = vunpack.c.h.b16 %v950
    %v1526 = vunpack.c.l.b16 %v951
    %v1527 = vunpack.c.h.b16 %v951
    %v1528 = vunpack.c.l.b16 %v952
    %v1529 = vunpack.c.h.b16 %v952
    %v1530 = vunpack.c.l.b16 %v953
    %v1531 = vunpack.c.h.b16 %v953
    %v1532 = vunpack.c.l.b16 %v954
    %v1533 = vunpack.c.h.b16 %v954
    %v1534 = vunpack.c.l.b16 %v955
    %v1535 = vunpack.c.h.b16 %v955
    %v1536 = vunpack.c.l.b16 %v956
    %v1537 = vunpack.c.h.b16 %v956
    %v1538 = vunpack.c.l.b16 %v957
    %v1539 = vunpack.c.h.b16 %v957
    %v1540 = vunpack.c.l.b16 %v958
    %v1541 = vunpack.c.h.b16 %v958
    %v1542 = vunpack.c.l.b16 %v959
    %v1543 = vunpack.c.h.b16 %v959
    %v1544 = vunpack.c.l.b16 %v960
    %v1545 = vunpack.c.h.b16 %v960
    %v1546 = vunpack.c.l.b16 %v961
    %v1547 = vunpack.c.h.b16 %v961
    %v1548 = vunpack.c.l.b16 %v962
    %v1549 = vunpack.c.h.b16 %v962
    %v1550 = vunpack.c.l.b16 %v963
    %v1551 = vunpack.c.h.b16 %v963
    %v1552 = vunpack.c.l.b16 %v964
    %v1553 = vunpack.c.h.b16 %v964
    %v1554 = vunpack.c.l.b16 %v965
    %v1555 = vunpack.c.h.b16 %v965
    %v1556 = vunpack.c.l.b16 %v966
    %v1557 = vunpack.c.h.b16 %v966
    %v1558 = vunpack.c.l.b16 %v967
    %v1559 = vunpack.c.h.b16 %v967
    %v1560 = vunpack.c.l.b16 %v968
    %v1561 = vunpack.c.h.b16 %v968
    %v1562 = vunpack.c.l.b16 %v969
    %v1563 = vunpack.c.h.b16 %v969
    %v1564 = vunpack.c.l.b16 %v970
    %v1565 = vunpack.c.h.b16 %v970
    %v1566 = vunpack.c.l.b16 %v971
    %v1567 = vunpack.c.h.b16 %v971
    %v1568 = vunpack.c.l.b16 %v972
    %v1569 = vunpack.c.h.b16 %v972
    %v1570 = vunpack.c.l.b16 %v973
    %v1571 = vunpack.c.h.b16 %v973
    %v1572 = vunpack.c.l.b16 %v974
    %v1573 = vunpack.c.h.b16 %v974
    %v1574 = vunpack.c.l.b16 %v975
    %v1575 = vunpack.c.h.b16 %v975
    %v1576 = vunpack.c.l.b16 %v976
    %v1577 = vunpack.c.h.b16 %v976
    %v1578 = vunpack.c.l.b16 %v977
    %v1579 = vunpack.c.h.b16 %v977
    %v1580 = vunpack.c.l.b16 %v978
    %v1581 = vunpack.c.h.b16 %v978
    %v1582 = vunpack.c.l.b16 %v979
    %v1583 = vunpack.c.h.b16 %v979
    %v1584 = vunpack.c.l.b16 %v980
    %v1585 = vunpack.c.h.b16 %v980
    %v1586 = vunpack.c.l.b16 %v981
    %v1587 = vunpack.c.h.b16 %v981
    %v1588 = vunpack.c.l.b16 %v982
    %v1589 = vunpack.c.h.b16 %v982
    %v1590 = vunpack.c.l.b16 %v983
    %v1591 = vunpack.c.h.b16 %v983
    %v1592 = vunpack.c.l.b16 %v984
    %v1593 = vunpack.c.h.b16 %v984
    %v1594 = vunpack.c.l.b16 %v985
    %v1595 = vunpack.c.h.b16 %v985
    %v1596 = vunpack.c.l.b16 %v986
    %v1597 = vunpack.c.h.b16 %v986
    %v1598 = vunpack.c.l.b16 %v987
    %v1599 = vunpack.c.h.b16 %v987
    %v1600 = vunpack.c.l.b16 %v988
    %v1601 = vunpack.c.h.b16 %v988
    %v1602 = vunpack.c.l.b16 %v989
    %v1603 = vunpack.c.h.b16 %v989
    %v1604 = vunpack.c.l.b16 %v990
    %v1605 = vunpack.c.h.b16 %v990
    %v1606 = vunpack.c.l.b16 %v991
    %v1607 = vunpack.c.h.b16 %v991
    %v1608 = vunpack.c.l.b16 %v992
    %v1609 = vunpack.c.h.b16 %v992
    %v1610 = vunpack.c.l.b16 %v993
    %v1611 = vunpack.c.h.b16 %v993
    %v1612 = vunpack.c.l.b16 %v994
    %v1613 = vunpack.c.h.b16 %v994
    %v1614 = vpack.c.b16 %v1234, %v1230
    %v1615 = vpack.c.b16 %v1235, %v1231
    %v1616 = vpack.c.b16 %v1236, %v1232
    %v1617 = vpack.c.b16 %v1237, %v1233
    %v1618 = vpack.c.b16 %v1242, %v1238
    %v1619 = vpack.c.b16 %v1243, %v1239
    %v1620 = vpack.c.b16 %v1244, %v1240
    %v1621 = vpack.c.b16 %v1245, %v1241
    %v1622 = vpack.c.b16 %v1250, %v1246
    %v1623 = vpack.c.b16 %v1251, %v1247
    %v1624 = vpack.c.b16 %v1252, %v1248
    %v1625 = vpack.c.b16 %v1253, %v1249
    %v1626 = vpack.c.b16 %v1258, %v1254
    %v1627 = vpack.c.b16 %v1259, %v1255
    %v1628 = vpack.c.b16 %v1260, %v1256
    %v1629 = vpack.c.b16 %v1261, %v1257
    %v1630 = vpack.c.b16 %v1266, %v1262
    %v1631 = vpack.c.b16 %v1267, %v1263
    %v1632 = vpack.c.b16 %v1268, %v1264
    %v1633 = vpack.c.b16 %v1269, %v1265
    %v1634 = vpack.c.b16 %v1274, %v1270
    %v1635 = vpack.c.b16 %v1275, %v1271
    %v1636 = vpack.c.b16 %v1276, %v1272
    %v1637 = vpack.c.b16 %v1277, %v1273
    %v1638 = vpack.c.b16 %v1282, %v1278
    %v1639 = vpack.c.b16 %v1283, %v1279
    %v1640 = vpack.c.b16 %v1284, %v1280
    %v1641 = vpack.c.b16 %v1285, %v1281
    %v1642 = vpack.c.b16 %v1290, %v1286
    %v1643 = vpack.c.b16 %v1291, %v1287
    %v1644 = vpack.c.b16 %v1292, %v1288
    %v1645 = vpack.c.b16 %v1293, %v1289
    %v1646 = vpack.c.b16 %v1298, %v1294
    %v1647 = vpack.c.b16 %v1299, %v1295
    %v1648 = vpack.c.b16 %v1300, %v1296
    %v1649 = vpack.c.b16 %v1301, %v1297
    %v1650 = vpack.c.b16 %v1306, %v1302
    %v1651 = vpack.c.b16 %v1307, %v1303
    %v1652 = vpack.c.b16 %v1308, %v1304
    %v1653 = vpack.c.b16 %v1309, %v1305
    %v1654 = vpack.c.b16 %v1314, %v1310
    %v1655 = vpack.c.b16 %v1315, %v1311
    %v1656 = vpack.c.b16 %v1316, %v1312
    %v1657 = vpack.c.b16 %v1317, %v1313
    %v1658 = vpack.c.b16 %v1322, %v1318
    %v1659 = vpack.c.b16 %v1323, %v1319
    %v1660 = vpack.c.b16 %v1324, %v1320
    %v1661 = vpack.c.b16 %v1325, %v1321
    %v1662 = vpack.c.b16 %v1330, %v1326
    %v1663 = vpack.c.b16 %v1331, %v1327
    %v1664 = vpack.c.b16 %v1332, %v1328
    %v1665 = vpack.c.b16 %v1333, %v1329
    %v1666 = vpack.c.b16 %v1338, %v1334
    %v1667 = vpack.c.b16 %v1339, %v1335
    %v1668 = vpack.c.b16 %v1340, %v1336
    %v1669 = vpack.c.b16 %v1341, %v1337
    %v1670 = vpack.c.b16 %v1346, %v1342
    %v1671 = vpack.c.b16 %v1347, %v1343
    %v1672 = vpack.c.b16 %v1348, %v1344
    %v1673 = vpack.c.b16 %v1349, %v1345
    %v1674 = vpack.c.b16 %v1354, %v1350
    %v1675 = vpack.c.b16 %v1355, %v1351
    %v1676 = vpack.c.b16 %v1356, %v1352
    %v1677 = vpack.c.b16 %v1357, %v1353
    %v1678 = vpack.c.b16 %v1362, %v1358
    %v1679 = vpack.c.b16 %v1363, %v1359
    %v1680 = vpack.c.b16 %v1364, %v1360
    %v1681 = vpack.c.b16 %v1365, %v1361
    %v1682 = vpack.c.b16 %v1370, %v1366
    %v1683 = vpack.c.b16 %v1371, %v1367
    %v1684 = vpack.c.b16 %v1372, %v1368
    %v1685 = vpack.c.b16 %v1373, %v1369
    %v1686 = vpack.c.b16 %v1378, %v1374
    %v1687 = vpack.c.b16 %v1379, %v1375
    %v1688 = vpack.c.b16 %v1380, %v1376
    %v1689 = vpack.c.b16 %v1381, %v1377
    %v1690 = vpack.c.b16 %v1386, %v1382
    %v1691 = vpack.c.b16 %v1387, %v1383
    %v1692 = vpack.c.b16 %v1388, %v1384
    %v1693 = vpack.c.b16 %v1389, %v1385
    %v1694 = vpack.c.b16 %v1394, %v1390
    %v1695 = vpack.c.b16 %v1395, %v1391
    %v1696 = vpack.c.b16 %v1396, %v1392
    %v1697 = vpack.c.b16 %v1397, %v1393
    %v1698 = vpack.c.b16 %v1402, %v1398
    %v1699 = vpack.c.b16 %v1403, %v1399
    %v1700 = vpack.c.b16 %v1404, %v1400
    %v1701 = vpack.c.b16 %v1405, %v1401
    %v1702 = vpack.c.b16 %v1410, %v1406
    %v1703 = vpack.c.b16 %v1411, %v1407
    %v1704 = vpack.c.b16 %v1412, %v1408
    %v1705 = vpack.c.b16 %v1413, %v1409
    %v1706 = vpack.c.b16 %v1418, %v1414
    %v1707 = vpack.c.b16 %v1419, %v1415
    %v1708 = vpack.c.b16 %v1420, %v1416
    %v1709 = vpack.c.b16 %v1421, %v1417
    %v1710 = vpack.c.b16 %v1426, %v1422
    %v1711 = vpack.c.b16 %v1427, %v1423
    %v1712 = vpack.c.b16 %v1428, %v1424
    %v1713 = vpack.c.b16 %v1429, %v1425
    %v1714 = vpack.c.b16 %v1434, %v1430
    %v1715 = vpack.c.b16 %v1435, %v1431
    %v1716 = vpack.c.b16 %v1436, %v1432
    %v1717 = vpack.c.b16 %v1437, %v1433
    %v1718 = vpack.c.b16 %v1442, %v1438
    %v1719 = vpack.c.b16 %v1443, %v1439
    %v1720 = vpack.c.b16 %v1444, %v1440
    %v1721 = vpack.c.b16 %v1445, %v1441
    %v1722 = vpack.c.b16 %v1450, %v1446
    %v1723 = vpack.c.b16 %v1451, %v1447
    %v1724 = vpack.c.b16 %v1452, %v1448
    %v1725 = vpack.c.b16 %v1453, %v1449
    %v1726 = vpack.c.b16 %v1458, %v1454
    %v1727 = vpack.c.b16 %v1459, %v1455
    %v1728 = vpack.c.b16 %v1460, %v1456
    %v1729 = vpack.c.b16 %v1461, %v1457
    %v1730 = vpack.c.b16 %v1466, %v1462
    %v1731 = vpack.c.b16 %v1467, %v1463
    %v1732 = vpack.c.b16 %v1468, %v1464
    %v1733 = vpack.c.b16 %v1469, %v1465
    %v1734 = vpack.c.b16 %v1474, %v1470
    %v1735 = vpack.c.b16 %v1475, %v1471
    %v1736 = vpack.c.b16 %v1476, %v1472
    %v1737 = vpack.c.b16 %v1477, %v1473
    %v1738 = vpack.c.b16 %v1482, %v1478
    %v1739 = vpack.c.b16 %v1483, %v1479
    %v1740 = vpack.c.b16 %v1484, %v1480
    %v1741 = vpack.c.b16 %v1485, %v1481
    %v1742 = vpack.c.b16 %v1490, %v1486
    %v1743 = vpack.c.b16 %v1491, %v1487
    %v1744 = vpack.c.b16 %v1492, %v1488
    %v1745 = vpack.c.b16 %v1493, %v1489
    %v1746 = vpack.c.b16 %v1498, %v1494
    %v1747 = vpack.c.b16 %v1499, %v1495
    %v1748 = vpack.c.b16 %v1500, %v1496
    %v1749 = vpack.c.b16 %v1501, %v1497
    %v1750 = vpack.c.b16 %v1506, %v1502
    %v1751 = vpack.c.b16 %v1507, %v1503
    %v1752 = vpack.c.b16 %v1508, %v1504
    %v1753 = vpack.c.b16 %v1509, %v1505
    %v1754 = vpack.c.b16 %v1514, %v1510
    %v1755 = vpack.c.b16 %v1515, %v1511
    %v1756 = vpack.c.b16 %v1516, %v1512
    %v1757 = vpack.c.b16 %v1517, %v1513
    %v1758 = vpack.c.b16 %v1522, %v1518
    %v1759 = vpack.c.b16 %v1523, %v1519
    %v1760 = vpack.c.b16 %v1524, %v1520
    %v1761 = vpack.c.b16 %v1525, %v1521
    %v1762 = vpack.c.b16 %v1530, %v1526
    %v1763 = vpack.c.b16 %v1531, %v1527
    %v1764 = vpack.c.b16 %v1532, %v1528
    %v1765 = vpack.c.b16 %v1533, %v1529
    %v1766 = vpack.c.b16 %v1538, %v1534
    %v1767 = vpack.c.b16 %v1539, %v1535
    %v1768 = vpack.c.b16 %v1540, %v1536
    %v1769 = vpack.c.b16 %v1541, %v1537
    %v1770 = vpack.c.b16 %v1546, %v1542
    %v1771 = vpack.c.b16 %v1547, %v1543
    %v1772 = vpack.c.b16 %v1548, %v1544
    %v1773 = vpack.c.b16 %v1549, %v1545
    %v1774 = vpack.c.b16 %v1554, %v1550
    %v1775 = vpack.c.b16 %v1555, %v1551
    %v1776 = vpack.c.b16 %v1556, %v1552
    %v1777 = vpack.c.b16 %v1557, %v1553
    %v1778 = vpack.c.b16 %v1562, %v1558
    %v1779 = vpack.c.b16 %v1563, %v1559
    %v1780 = vpack.c.b16 %v1564, %v1560
    %v1781 = vpack.c.b16 %v1565, %v1561
    %v1782 = vpack.c.b16 %v1570, %v1566
    %v1783 = vpack.c.b16 %v1571, %v1567
    %v1784 = vpack.c.b16 %v1572, %v1568
    %v1785 = vpack.c.b16 %v1573, %v1569
    %v1786 = vpack.c.b16 %v1578, %v1574
    %v1787 = vpack.c.b16 %v1579, %v1575
    %v1788 = vpack.c.b16 %v1580, %v1576
    %v1789 = vpack.c.b16 %v1581, %v1577
    %v1790 = vpack.c.b16 %v1586, %v1582
    %v1791 = vpack.c.b16 %v1587, %v1583
    %v1792 = vpack.c.b16 %v1588, %v1584
    %v1793 = vpack.c.b16 %v1589, %v1585
    %v1794 = vpack.c.b16 %v1594, %v1590
    %v1795 = vpack.c.b16 %v1595, %v1591
    %v1796 = vpack.c.b16 %v1596, %v1592
    %v1797 = vpack.c.b16 %v1597, %v1593
    %v1798 = vpack.c.b16 %v1602, %v1598
    %v1799 = vpack.c.b16 %v1603, %v1599
    %v1800 = vpack.c.b16 %v1604, %v1600
    %v1801 = vpack.c.b16 %v1605, %v1601
    %v1802 = vpack.c.b16 %v1610, %v1606
    %v1803 = vpack.c.b16 %v1611, %v1607
    %v1804 = vpack.c.b16 %v1612, %v1608
    %v1805 = vpack.c.b16 %v1613, %v1609
    %1998 = vmatprep.subr.bf16.mxu0 %v1615
    %1999 = vmatpush1.bf16.msra.mxu0 %v1614
    %2000 = vmatprep.subr.bf16.mxu0 %v1619
    %2001 = vmatpush1.bf16.msra.mxu0 %v1618
    %2002 = vmatprep.subr.bf16.mxu0 %v1623
    %2003 = vmatpush1.bf16.msra.mxu0 %v1622
    %2004 = vmatprep.subr.bf16.mxu0 %v1627
    %2005 = vmatpush1.bf16.msra.mxu0 %v1626
    %2006 = vmatprep.subr.bf16.mxu0 %v1631
    %2007 = vmatpush1.bf16.msra.mxu0 %v1630
    %2008 = vmatprep.subr.bf16.mxu0 %v1635
    %2009 = vmatpush1.bf16.msra.mxu0 %v1634
    %2010 = vmatprep.subr.bf16.mxu0 %v1639
    %2011 = vmatpush1.bf16.msra.mxu0 %v1638
    %2012 = vmatprep.subr.bf16.mxu0 %v1643
    %2013 = vmatpush1.bf16.msra.mxu0 %v1642
    %2014 = vmatprep.subr.bf16.mxu0 %v1647
    %2015 = vmatpush1.bf16.msra.mxu0 %v1646
    %2016 = vmatprep.subr.bf16.mxu0 %v1651
    %2017 = vmatpush1.bf16.msra.mxu0 %v1650
    %2018 = vmatprep.subr.bf16.mxu0 %v1655
    %2019 = vmatpush1.bf16.msra.mxu0 %v1654
    %2020 = vmatprep.subr.bf16.mxu0 %v1659
    %2021 = vmatpush1.bf16.msra.mxu0 %v1658
    %2022 = vmatprep.subr.bf16.mxu0 %v1663
    %2023 = vmatpush1.bf16.msra.mxu0 %v1662
    %2024 = vmatprep.subr.bf16.mxu0 %v1667
    %2025 = vmatpush1.bf16.msra.mxu0 %v1666
    %2026 = vmatprep.subr.bf16.mxu0 %v1671
    %2027 = vmatpush1.bf16.msra.mxu0 %v1670
    %2028 = vmatprep.subr.bf16.mxu0 %v1675
    %2029 = vmatpush1.bf16.msra.mxu0 %v1674
    %2030 = vmatprep.mubr.bf16.mxu0 %v1027
    %2031 = vmatmul.mubr.bf16.gmra.mrb[0].mxu0 %v1026
    %v2032 = vpop.f32.mrb[0].mxu0
    %v2033 = vadd.f32 %v1000, %v2032
    %v2034 = vpop.f32.mrb[0].mxu0
    %v2035 = vadd.f32 %v1004, %v2034
    %v2036 = vpop.f32.mrb[0].mxu0
    %v2037 = vpop.f32.mrb[0].mxu0
    %2038 = vdwg.mxu0
    %2039 = vmatprep.subr.bf16.mxu0 %v1679
    %2040 = vmatpush1.bf16.msra.mxu0 %v1678
    %2041 = vmatprep.subr.bf16.mxu0 %v1683
    %2042 = vmatpush1.bf16.msra.mxu0 %v1682
    %2043 = vmatprep.subr.bf16.mxu0 %v1687
    %2044 = vmatpush1.bf16.msra.mxu0 %v1686
    %2045 = vmatprep.subr.bf16.mxu0 %v1691
    %2046 = vmatpush1.bf16.msra.mxu0 %v1690
    %2047 = vmatprep.subr.bf16.mxu0 %v1695
    %2048 = vmatpush1.bf16.msra.mxu0 %v1694
    %2049 = vmatprep.subr.bf16.mxu0 %v1699
    %2050 = vmatpush1.bf16.msra.mxu0 %v1698
    %2051 = vmatprep.subr.bf16.mxu0 %v1703
    %2052 = vmatpush1.bf16.msra.mxu0 %v1702
    %2053 = vmatprep.subr.bf16.mxu0 %v1707
    %2054 = vmatpush1.bf16.msra.mxu0 %v1706
    %2055 = vmatprep.subr.bf16.mxu0 %v1711
    %2056 = vmatpush1.bf16.msra.mxu0 %v1710
    %2057 = vmatprep.subr.bf16.mxu0 %v1715
    %2058 = vmatpush1.bf16.msra.mxu0 %v1714
    %2059 = vmatprep.subr.bf16.mxu0 %v1719
    %2060 = vmatpush1.bf16.msra.mxu0 %v1718
    %2061 = vmatprep.subr.bf16.mxu0 %v1723
    %2062 = vmatpush1.bf16.msra.mxu0 %v1722
    %2063 = vmatprep.subr.bf16.mxu0 %v1727
    %2064 = vmatpush1.bf16.msra.mxu0 %v1726
    %2065 = vmatprep.subr.bf16.mxu0 %v1731
    %2066 = vmatpush1.bf16.msra.mxu0 %v1730
    %2067 = vmatprep.subr.bf16.mxu0 %v1735
    %2068 = vmatpush1.bf16.msra.mxu0 %v1734
    %2069 = vmatprep.subr.bf16.mxu0 %v1739
    %2070 = vmatpush1.bf16.msra.mxu0 %v1738
    %2071 = vmatprep.mubr.bf16.mxu0 %v1029
    %2072 = vmatmul.mubr.bf16.gmra.mrb[0].mxu0 %v1028
    %v2073 = vpop.f32.mrb[0].mxu0
    %v2074 = vadd.f32 %v2033, %v2073
    %v2075 = vpop.f32.mrb[0].mxu0
    %v2076 = vadd.f32 %v2035, %v2075
    %v2077 = vpop.f32.mrb[0].mxu0
    %v2078 = vpop.f32.mrb[0].mxu0
    %2079 = vdwg.mxu0
    %2080 = vmatprep.subr.bf16.mxu0 %v1743
    %2081 = vmatpush1.bf16.msra.mxu0 %v1742
    %2082 = vmatprep.subr.bf16.mxu0 %v1747
    %2083 = vmatpush1.bf16.msra.mxu0 %v1746
    %2084 = vmatprep.subr.bf16.mxu0 %v1751
    %2085 = vmatpush1.bf16.msra.mxu0 %v1750
    %2086 = vmatprep.subr.bf16.mxu0 %v1755
    %2087 = vmatpush1.bf16.msra.mxu0 %v1754
    %2088 = vmatprep.subr.bf16.mxu0 %v1759
    %2089 = vmatpush1.bf16.msra.mxu0 %v1758
    %2090 = vmatprep.subr.bf16.mxu0 %v1763
    %2091 = vmatpush1.bf16.msra.mxu0 %v1762
    %2092 = vmatprep.subr.bf16.mxu0 %v1767
    %2093 = vmatpush1.bf16.msra.mxu0 %v1766
    %2094 = vmatprep.subr.bf16.mxu0 %v1771
    %2095 = vmatpush1.bf16.msra.mxu0 %v1770
    %2096 = vmatprep.subr.bf16.mxu0 %v1775
    %2097 = vmatpush1.bf16.msra.mxu0 %v1774
    %2098 = vmatprep.subr.bf16.mxu0 %v1779
    %2099 = vmatpush1.bf16.msra.mxu0 %v1778
    %2100 = vmatprep.subr.bf16.mxu0 %v1783
    %2101 = vmatpush1.bf16.msra.mxu0 %v1782
    %2102 = vmatprep.subr.bf16.mxu0 %v1787
    %2103 = vmatpush1.bf16.msra.mxu0 %v1786
    %2104 = vmatprep.subr.bf16.mxu0 %v1791
    %2105 = vmatpush1.bf16.msra.mxu0 %v1790
    %2106 = vmatprep.subr.bf16.mxu0 %v1795
    %2107 = vmatpush1.bf16.msra.mxu0 %v1794
    %2108 = vmatprep.subr.bf16.mxu0 %v1799
    %2109 = vmatpush1.bf16.msra.mxu0 %v1798
    %2110 = vmatprep.subr.bf16.mxu0 %v1803
    %2111 = vmatpush1.bf16.msra.mxu0 %v1802
    %2112 = vmatprep.mubr.bf16.mxu0 %v1031
    %2113 = vmatmul.mubr.bf16.gmra.mrb[0].mxu0 %v1030
    %v2114 = vpop.f32.mrb[0].mxu0
    %v2115 = vadd.f32 %v2074, %v2114
    %v2116 = vpop.f32.mrb[0].mxu0
    %v2117 = vadd.f32 %v2076, %v2116
    %v2118 = vpop.f32.mrb[0].mxu0
    %v2119 = vpop.f32.mrb[0].mxu0
    %2120 = vdwg.mxu0
    %2121 = vmatprep.subr.bf16.mxu0 %v1617
    %2122 = vmatpush1.bf16.msra.mxu0 %v1616
    %2123 = vmatprep.subr.bf16.mxu0 %v1621
    %2124 = vmatpush1.bf16.msra.mxu0 %v1620
    %2125 = vmatprep.subr.bf16.mxu0 %v1625
    %2126 = vmatpush1.bf16.msra.mxu0 %v1624
    %2127 = vmatprep.subr.bf16.mxu0 %v1629
    %2128 = vmatpush1.bf16.msra.mxu0 %v1628
    %2129 = vmatprep.subr.bf16.mxu0 %v1633
    %2130 = vmatpush1.bf16.msra.mxu0 %v1632
    %2131 = vmatprep.subr.bf16.mxu0 %v1637
    %2132 = vmatpush1.bf16.msra.mxu0 %v1636
    %2133 = vmatprep.subr.bf16.mxu0 %v1641
    %2134 = vmatpush1.bf16.msra.mxu0 %v1640
    %2135 = vmatprep.subr.bf16.mxu0 %v1645
    %2136 = vmatpush1.bf16.msra.mxu0 %v1644
    %2137 = vmatprep.subr.bf16.mxu0 %v1649
    %2138 = vmatpush1.bf16.msra.mxu0 %v1648
    %2139 = vmatprep.subr.bf16.mxu0 %v1653
    %2140 = vmatpush1.bf16.msra.mxu0 %v1652
    %2141 = vmatprep.subr.bf16.mxu0 %v1657
    %2142 = vmatpush1.bf16.msra.mxu0 %v1656
    %2143 = vmatprep.subr.bf16.mxu0 %v1661
    %2144 = vmatpush1.bf16.msra.mxu0 %v1660
    %2145 = vmatprep.subr.bf16.mxu0 %v1665
    %2146 = vmatpush1.bf16.msra.mxu0 %v1664
    %2147 = vmatprep.subr.bf16.mxu0 %v1669
    %2148 = vmatpush1.bf16.msra.mxu0 %v1668
    %2149 = vmatprep.subr.bf16.mxu0 %v1673
    %2150 = vmatpush1.bf16.msra.mxu0 %v1672
    %2151 = vmatprep.subr.bf16.mxu0 %v1677
    %2152 = vmatpush1.bf16.msra.mxu0 %v1676
    %2153 = vmatprep.mubr.bf16.mxu0 %v1027
    %2154 = vmatmul.mubr.bf16.gmra.mrb[0].mxu0 %v1026
    %v2155 = vpop.f32.mrb[0].mxu0
    %v2156 = vadd.f32 %v1008, %v2155
    %v2157 = vpop.f32.mrb[0].mxu0
    %v2158 = vadd.f32 %v1012, %v2157
    %v2159 = vpop.f32.mrb[0].mxu0
    %v2160 = vpop.f32.mrb[0].mxu0
    %2161 = vdwg.mxu0
    %2162 = vmatprep.subr.bf16.mxu0 %v1681
    %2163 = vmatpush1.bf16.msra.mxu0 %v1680
    %2164 = vmatprep.subr.bf16.mxu0 %v1685
    %2165 = vmatpush1.bf16.msra.mxu0 %v1684
    %2166 = vmatprep.subr.bf16.mxu0 %v1689
    %2167 = vmatpush1.bf16.msra.mxu0 %v1688
    %2168 = vmatprep.subr.bf16.mxu0 %v1693
    %2169 = vmatpush1.bf16.msra.mxu0 %v1692
    %2170 = vmatprep.subr.bf16.mxu0 %v1697
    %2171 = vmatpush1.bf16.msra.mxu0 %v1696
    %2172 = vmatprep.subr.bf16.mxu0 %v1701
    %2173 = vmatpush1.bf16.msra.mxu0 %v1700
    %2174 = vmatprep.subr.bf16.mxu0 %v1705
    %2175 = vmatpush1.bf16.msra.mxu0 %v1704
    %2176 = vmatprep.subr.bf16.mxu0 %v1709
    %2177 = vmatpush1.bf16.msra.mxu0 %v1708
    %2178 = vmatprep.subr.bf16.mxu0 %v1713
    %2179 = vmatpush1.bf16.msra.mxu0 %v1712
    %2180 = vmatprep.subr.bf16.mxu0 %v1717
    %2181 = vmatpush1.bf16.msra.mxu0 %v1716
    %2182 = vmatprep.subr.bf16.mxu0 %v1721
    %2183 = vmatpush1.bf16.msra.mxu0 %v1720
    %2184 = vmatprep.subr.bf16.mxu0 %v1725
    %2185 = vmatpush1.bf16.msra.mxu0 %v1724
    %2186 = vmatprep.subr.bf16.mxu0 %v1729
    %2187 = vmatpush1.bf16.msra.mxu0 %v1728
    %2188 = vmatprep.subr.bf16.mxu0 %v1733
    %2189 = vmatpush1.bf16.msra.mxu0 %v1732
    %2190 = vmatprep.subr.bf16.mxu0 %v1737
    %2191 = vmatpush1.bf16.msra.mxu0 %v1736
    %2192 = vmatprep.subr.bf16.mxu0 %v1741
    %2193 = vmatpush1.bf16.msra.mxu0 %v1740
    %2194 = vmatprep.mubr.bf16.mxu0 %v1029
    %2195 = vmatmul.mubr.bf16.gmra.mrb[0].mxu0 %v1028
    %v2196 = vpop.f32.mrb[0].mxu0
    %v2197 = vadd.f32 %v2156, %v2196
    %v2198 = vpop.f32.mrb[0].mxu0
    %v2199 = vadd.f32 %v2158, %v2198
    %v2200 = vpop.f32.mrb[0].mxu0
    %v2201 = vpop.f32.mrb[0].mxu0
    %2202 = vdwg.mxu0
    %2203 = vmatprep.subr.bf16.mxu0 %v1745
    %2204 = vmatpush1.bf16.msra.mxu0 %v1744
    %2205 = vmatprep.subr.bf16.mxu0 %v1749
    %2206 = vmatpush1.bf16.msra.mxu0 %v1748
    %2207 = vmatprep.subr.bf16.mxu0 %v1753
    %2208 = vmatpush1.bf16.msra.mxu0 %v1752
    %2209 = vmatprep.subr.bf16.mxu0 %v1757
    %2210 = vmatpush1.bf16.msra.mxu0 %v1756
    %2211 = vmatprep.subr.bf16.mxu0 %v1761
    %2212 = vmatpush1.bf16.msra.mxu0 %v1760
    %2213 = vmatprep.subr.bf16.mxu0 %v1765
    %2214 = vmatpush1.bf16.msra.mxu0 %v1764
    %2215 = vmatprep.subr.bf16.mxu0 %v1769
    %2216 = vmatpush1.bf16.msra.mxu0 %v1768
    %2217 = vmatprep.subr.bf16.mxu0 %v1773
    %2218 = vmatpush1.bf16.msra.mxu0 %v1772
    %2219 = vmatprep.subr.bf16.mxu0 %v1777
    %2220 = vmatpush1.bf16.msra.mxu0 %v1776
    %2221 = vmatprep.subr.bf16.mxu0 %v1781
    %2222 = vmatpush1.bf16.msra.mxu0 %v1780
    %2223 = vmatprep.subr.bf16.mxu0 %v1785
    %2224 = vmatpush1.bf16.msra.mxu0 %v1784
    %2225 = vmatprep.subr.bf16.mxu0 %v1789
    %2226 = vmatpush1.bf16.msra.mxu0 %v1788
    %2227 = vmatprep.subr.bf16.mxu0 %v1793
    %2228 = vmatpush1.bf16.msra.mxu0 %v1792
    %2229 = vmatprep.subr.bf16.mxu0 %v1797
    %2230 = vmatpush1.bf16.msra.mxu0 %v1796
    %2231 = vmatprep.subr.bf16.mxu0 %v1801
    %2232 = vmatpush1.bf16.msra.mxu0 %v1800
    %2233 = vmatprep.subr.bf16.mxu0 %v1805
    %2234 = vmatpush1.bf16.msra.mxu0 %v1804
    %2235 = vmatprep.mubr.bf16.mxu0 %v1031
    %2236 = vmatmul.mubr.bf16.gmra.mrb[0].mxu0 %v1030
    %v2237 = vpop.f32.mrb[0].mxu0
    %v2238 = vadd.f32 %v2197, %v2237
    %v2239 = vpop.f32.mrb[0].mxu0
    %v2240 = vadd.f32 %v2199, %v2239
    %v2241 = vpop.f32.mrb[0].mxu0
    %v2242 = vpop.f32.mrb[0].mxu0
    %2243 = vdwg.mxu0
    %v2244 = vmax.f32 %v2115, 0.0
    %v2245 = vmax.f32 %v2117, 0.0
    %v2246 = vmax.f32 %v2238, 0.0
    %v2247 = vmax.f32 %v2240, 0.0
    %v2248 = vpack.c.bf16 %v2244, %v2244
    %v2249 = vpack.c.bf16 %v2245, %v2245
    %v2250 = vpack.c.bf16 %v2246, %v2246
    %v2251 = vpack.c.bf16 %v2247, %v2247
    %v2252 = vld [vmem:[#allocation6] sm:$0xff]
    %v2253 = vld [vmem:[#allocation6 + $0x8] sm:$0xff]
    %v2254 = vld [vmem:[#allocation6 + $0x10] sm:$0xff]
    %v2255 = vld [vmem:[#allocation6 + $0x18] sm:$0xff]
    %v2256 = vld [vmem:[#allocation6 + $0x20] sm:$0xff]
    %v2257 = vld [vmem:[#allocation6 + $0x28] sm:$0xff]
    %v2258 = vld [vmem:[#allocation6 + $0x30] sm:$0xff]
    %v2259 = vld [vmem:[#allocation6 + $0x38] sm:$0xff]
    %v2260 = vld [vmem:[#allocation6 + $0x40] sm:$0xff]
    %v2261 = vld [vmem:[#allocation6 + $0x48] sm:$0xff]
    %v2262 = vld [vmem:[#allocation6 + $0x50] sm:$0xff]
    %v2263 = vld [vmem:[#allocation6 + $0x58] sm:$0xff]
    %v2264 = vld [vmem:[#allocation6 + $0x60] sm:$0xff]
    %v2265 = vld [vmem:[#allocation6 + $0x68] sm:$0xff]
    %v2266 = vld [vmem:[#allocation6 + $0x70] sm:$0xff]
    %v2267 = vld [vmem:[#allocation6 + $0x78] sm:$0xff]
    %v2268 = vld [vmem:[#allocation6 + $0x80] sm:$0xff]
    %v2269 = vld [vmem:[#allocation6 + $0x88] sm:$0xff]
    %v2270 = vld [vmem:[#allocation6 + $0x90] sm:$0xff]
    %v2271 = vld [vmem:[#allocation6 + $0x98] sm:$0xff]
    %v2272 = vld [vmem:[#allocation6 + $0xa0] sm:$0xff]
    %v2273 = vld [vmem:[#allocation6 + $0xa8] sm:$0xff]
    %v2274 = vld [vmem:[#allocation6 + $0xb0] sm:$0xff]
    %v2275 = vld [vmem:[#allocation6 + $0xb8] sm:$0xff]
    %v2276 = vld [vmem:[#allocation6 + $0xc0] sm:$0xff]
    %v2277 = vld [vmem:[#allocation6 + $0xc8] sm:$0xff]
    %v2278 = vld [vmem:[#allocation6 + $0xd0] sm:$0xff]
    %v2279 = vld [vmem:[#allocation6 + $0xd8] sm:$0xff]
    %v2280 = vld [vmem:[#allocation6 + $0xe0] sm:$0xff]
    %v2281 = vld [vmem:[#allocation6 + $0xe8] sm:$0xff]
    %v2282 = vld [vmem:[#allocation6 + $0xf0] sm:$0xff]
    %v2283 = vld [vmem:[#allocation6 + $0xf8] sm:$0xff]
    %v2284 = vld [vmem:[#allocation6 + $0x100] sm:$0xff]
    %v2285 = vld [vmem:[#allocation6 + $0x108] sm:$0xff]
    %v2286 = vld [vmem:[#allocation6 + $0x110] sm:$0xff]
    %v2287 = vld [vmem:[#allocation6 + $0x118] sm:$0xff]
    %v2288 = vld [vmem:[#allocation6 + $0x120] sm:$0xff]
    %v2289 = vld [vmem:[#allocation6 + $0x128] sm:$0xff]
    %v2290 = vld [vmem:[#allocation6 + $0x130] sm:$0xff]
    %v2291 = vld [vmem:[#allocation6 + $0x138] sm:$0xff]
    %v2292 = vld [vmem:[#allocation6 + $0x140] sm:$0xff]
    %v2293 = vld [vmem:[#allocation6 + $0x148] sm:$0xff]
    %v2294 = vld [vmem:[#allocation6 + $0x150] sm:$0xff]
    %v2295 = vld [vmem:[#allocation6 + $0x158] sm:$0xff]
    %v2296 = vld [vmem:[#allocation6 + $0x160] sm:$0xff]
    %v2297 = vld [vmem:[#allocation6 + $0x168] sm:$0xff]
    %v2298 = vld [vmem:[#allocation6 + $0x170] sm:$0xff]
    %v2299 = vld [vmem:[#allocation6 + $0x178] sm:$0xff]
    %v2300 = vld [vmem:[#allocation6 + $0x180] sm:$0xff]
    %v2301 = vld [vmem:[#allocation6 + $0x188] sm:$0xff]
    %v2302 = vld [vmem:[#allocation6 + $0x190] sm:$0xff]
    %v2303 = vld [vmem:[#allocation6 + $0x198] sm:$0xff]
    %v2304 = vld [vmem:[#allocation6 + $0x1a0] sm:$0xff]
    %v2305 = vld [vmem:[#allocation6 + $0x1a8] sm:$0xff]
    %v2306 = vld [vmem:[#allocation6 + $0x1b0] sm:$0xff]
    %v2307 = vld [vmem:[#allocation6 + $0x1b8] sm:$0xff]
    %v2308 = vld [vmem:[#allocation6 + $0x1c0] sm:$0xff]
    %v2309 = vld [vmem:[#allocation6 + $0x1c8] sm:$0xff]
    %v2310 = vld [vmem:[#allocation6 + $0x1d0] sm:$0xff]
    %v2311 = vld [vmem:[#allocation6 + $0x1d8] sm:$0xff]
    %v2312 = vld [vmem:[#allocation6 + $0x1e0] sm:$0xff]
    %v2313 = vld [vmem:[#allocation6 + $0x1e8] sm:$0xff]
    %v2314 = vld [vmem:[#allocation6 + $0x1f0] sm:$0xff]
    %v2315 = vld [vmem:[#allocation6 + $0x1f8] sm:$0xff]
    %v2316 = vpack.c.bf16 %v794, %v794
    %v2317 = vpack.c.bf16 %v795, %v795
    %v2318 = vpack.c.bf16 %v796, %v796
    %v2319 = vpack.c.bf16 %v797, %v797
    %v2320 = vpack.c.bf16 %v798, %v798
    %v2321 = vpack.c.bf16 %v799, %v799
    %v2322 = vld [vmem:[#allocation7] sm:$0xff]
    %v2323 = vld [vmem:[#allocation7 + $0x8] sm:$0xff]
    %v2324 = vld [vmem:[#allocation7 + $0x10] sm:$0xff]
    %v2325 = vld [vmem:[#allocation7 + $0x18] sm:$0xff]
    %v2326 = vld [vmem:[#allocation7 + $0x20] sm:$0xff]
    %v2327 = vld [vmem:[#allocation7 + $0x28] sm:$0xff]
    %v2328 = vld [vmem:[#allocation7 + $0x30] sm:$0xff]
    %v2329 = vld [vmem:[#allocation7 + $0x38] sm:$0xff]
    %v2330 = vld [vmem:[#allocation7 + $0x40] sm:$0xff]
    %v2331 = vld [vmem:[#allocation7 + $0x48] sm:$0xff]
    %v2332 = vld [vmem:[#allocation7 + $0x50] sm:$0xff]
    %v2333 = vld [vmem:[#allocation7 + $0x58] sm:$0xff]
    %v2334 = vld [vmem:[#allocation7 + $0x60] sm:$0xff]
    %v2335 = vld [vmem:[#allocation7 + $0x68] sm:$0xff]
    %v2336 = vld [vmem:[#allocation7 + $0x70] sm:$0xff]
    %v2337 = vld [vmem:[#allocation7 + $0x78] sm:$0xff]
    %v2338 = vld [vmem:[#allocation7 + $0x80] sm:$0xff]
    %v2339 = vld [vmem:[#allocation7 + $0x88] sm:$0xff]
    %v2340 = vld [vmem:[#allocation7 + $0x90] sm:$0xff]
    %v2341 = vld [vmem:[#allocation7 + $0x98] sm:$0xff]
    %v2342 = vld [vmem:[#allocation7 + $0xa0] sm:$0xff]
    %v2343 = vld [vmem:[#allocation7 + $0xa8] sm:$0xff]
    %v2344 = vld [vmem:[#allocation7 + $0xb0] sm:$0xff]
    %v2345 = vld [vmem:[#allocation7 + $0xb8] sm:$0xff]
    %v2346 = vld [vmem:[#allocation7 + $0xc0] sm:$0xff]
    %v2347 = vld [vmem:[#allocation7 + $0xc8] sm:$0xff]
    %v2348 = vld [vmem:[#allocation7 + $0xd0] sm:$0xff]
    %v2349 = vld [vmem:[#allocation7 + $0xd8] sm:$0xff]
    %v2350 = vld [vmem:[#allocation7 + $0xe0] sm:$0xff]
    %v2351 = vld [vmem:[#allocation7 + $0xe8] sm:$0xff]
    %v2352 = vld [vmem:[#allocation7 + $0xf0] sm:$0xff]
    %v2353 = vld [vmem:[#allocation7 + $0xf8] sm:$0xff]
    %v2354 = vld [vmem:[#allocation7 + $0x100] sm:$0xff]
    %v2355 = vld [vmem:[#allocation7 + $0x108] sm:$0xff]
    %v2356 = vld [vmem:[#allocation7 + $0x110] sm:$0xff]
    %v2357 = vld [vmem:[#allocation7 + $0x118] sm:$0xff]
    %v2358 = vld [vmem:[#allocation7 + $0x120] sm:$0xff]
    %v2359 = vld [vmem:[#allocation7 + $0x128] sm:$0xff]
    %v2360 = vld [vmem:[#allocation7 + $0x130] sm:$0xff]
    %v2361 = vld [vmem:[#allocation7 + $0x138] sm:$0xff]
    %v2362 = vld [vmem:[#allocation7 + $0x140] sm:$0xff]
    %v2363 = vld [vmem:[#allocation7 + $0x148] sm:$0xff]
    %v2364 = vld [vmem:[#allocation7 + $0x150] sm:$0xff]
    %v2365 = vld [vmem:[#allocation7 + $0x158] sm:$0xff]
    %v2366 = vld [vmem:[#allocation7 + $0x160] sm:$0xff]
    %v2367 = vld [vmem:[#allocation7 + $0x168] sm:$0xff]
    %v2368 = vld [vmem:[#allocation7 + $0x170] sm:$0xff]
    %v2369 = vld [vmem:[#allocation7 + $0x178] sm:$0xff]
    %v2370 = vld [vmem:[#allocation7 + $0x180] sm:$0xff]
    %v2371 = vld [vmem:[#allocation7 + $0x188] sm:$0xff]
    %v2372 = vld [vmem:[#allocation7 + $0x190] sm:$0xff]
    %v2373 = vld [vmem:[#allocation7 + $0x198] sm:$0xff]
    %v2374 = vld [vmem:[#allocation7 + $0x1a0] sm:$0xff]
    %v2375 = vld [vmem:[#allocation7 + $0x1a8] sm:$0xff]
    %v2376 = vld [vmem:[#allocation7 + $0x1b0] sm:$0xff]
    %v2377 = vld [vmem:[#allocation7 + $0x1b8] sm:$0xff]
    %v2378 = vld [vmem:[#allocation7 + $0x1c0] sm:$0xff]
    %v2379 = vld [vmem:[#allocation7 + $0x1c8] sm:$0xff]
    %v2380 = vld [vmem:[#allocation7 + $0x1d0] sm:$0xff]
    %v2381 = vld [vmem:[#allocation7 + $0x1d8] sm:$0xff]
    %v2382 = vld [vmem:[#allocation7 + $0x1e0] sm:$0xff]
    %v2383 = vld [vmem:[#allocation7 + $0x1e8] sm:$0xff]
    %v2384 = vld [vmem:[#allocation7 + $0x1f0] sm:$0xff]
    %v2385 = vld [vmem:[#allocation7 + $0x1f8] sm:$0xff]
    %v2386 = vld [vmem:[#allocation7 + $0x200] sm:$0xff]
    %v2387 = vld [vmem:[#allocation7 + $0x208] sm:$0xff]
    %v2388 = vld [vmem:[#allocation7 + $0x210] sm:$0xff]
    %v2389 = vld [vmem:[#allocation7 + $0x218] sm:$0xff]
    %v2390 = vld [vmem:[#allocation7 + $0x220] sm:$0xff]
    %v2391 = vld [vmem:[#allocation7 + $0x228] sm:$0xff]
    %v2392 = vld [vmem:[#allocation7 + $0x230] sm:$0xff]
    %v2393 = vld [vmem:[#allocation7 + $0x238] sm:$0xff]
    %v2394 = vld [vmem:[#allocation7 + $0x240] sm:$0xff]
    %v2395 = vld [vmem:[#allocation7 + $0x248] sm:$0xff]
    %v2396 = vld [vmem:[#allocation7 + $0x250] sm:$0xff]
    %v2397 = vld [vmem:[#allocation7 + $0x258] sm:$0xff]
    %v2398 = vld [vmem:[#allocation7 + $0x260] sm:$0xff]
    %v2399 = vld [vmem:[#allocation7 + $0x268] sm:$0xff]
    %v2400 = vld [vmem:[#allocation7 + $0x270] sm:$0xff]
    %v2401 = vld [vmem:[#allocation7 + $0x278] sm:$0xff]
    %v2402 = vld [vmem:[#allocation7 + $0x280] sm:$0xff]
    %v2403 = vld [vmem:[#allocation7 + $0x288] sm:$0xff]
    %v2404 = vld [vmem:[#allocation7 + $0x290] sm:$0xff]
    %v2405 = vld [vmem:[#allocation7 + $0x298] sm:$0xff]
    %v2406 = vld [vmem:[#allocation7 + $0x2a0] sm:$0xff]
    %v2407 = vld [vmem:[#allocation7 + $0x2a8] sm:$0xff]
    %v2408 = vld [vmem:[#allocation7 + $0x2b0] sm:$0xff]
    %v2409 = vld [vmem:[#allocation7 + $0x2b8] sm:$0xff]
    %v2410 = vld [vmem:[#allocation7 + $0x2c0] sm:$0xff]
    %v2411 = vld [vmem:[#allocation7 + $0x2c8] sm:$0xff]
    %v2412 = vld [vmem:[#allocation7 + $0x2d0] sm:$0xff]
    %v2413 = vld [vmem:[#allocation7 + $0x2d8] sm:$0xff]
    %v2414 = vld [vmem:[#allocation7 + $0x2e0] sm:$0xff]
    %v2415 = vld [vmem:[#allocation7 + $0x2e8] sm:$0xff]
    %v2416 = vld [vmem:[#allocation7 + $0x2f0] sm:$0xff]
    %v2417 = vld [vmem:[#allocation7 + $0x2f8] sm:$0xff]
    %v2514 = vunpack.c.l.b16 %v2322
    %v2515 = vunpack.c.h.b16 %v2322
    %v2516 = vunpack.c.l.b16 %v2323
    %v2517 = vunpack.c.h.b16 %v2323
    %v2518 = vunpack.c.l.b16 %v2324
    %v2519 = vunpack.c.h.b16 %v2324
    %v2520 = vunpack.c.l.b16 %v2325
    %v2521 = vunpack.c.h.b16 %v2325
    %v2522 = vunpack.c.l.b16 %v2326
    %v2523 = vunpack.c.h.b16 %v2326
    %v2524 = vunpack.c.l.b16 %v2327
    %v2525 = vunpack.c.h.b16 %v2327
    %v2526 = vunpack.c.l.b16 %v2328
    %v2527 = vunpack.c.h.b16 %v2328
    %v2528 = vunpack.c.l.b16 %v2329
    %v2529 = vunpack.c.h.b16 %v2329
    %v2530 = vunpack.c.l.b16 %v2330
    %v2531 = vunpack.c.h.b16 %v2330
    %v2532 = vunpack.c.l.b16 %v2331
    %v2533 = vunpack.c.h.b16 %v2331
    %v2534 = vunpack.c.l.b16 %v2332
    %v2535 = vunpack.c.h.b16 %v2332
    %v2536 = vunpack.c.l.b16 %v2333
    %v2537 = vunpack.c.h.b16 %v2333
    %v2538 = vunpack.c.l.b16 %v2334
    %v2539 = vunpack.c.h.b16 %v2334
    %v2540 = vunpack.c.l.b16 %v2335
    %v2541 = vunpack.c.h.b16 %v2335
    %v2542 = vunpack.c.l.b16 %v2336
    %v2543 = vunpack.c.h.b16 %v2336
    %v2544 = vunpack.c.l.b16 %v2337
    %v2545 = vunpack.c.h.b16 %v2337
    %v2546 = vunpack.c.l.b16 %v2338
    %v2547 = vunpack.c.h.b16 %v2338
    %v2548 = vunpack.c.l.b16 %v2339
    %v2549 = vunpack.c.h.b16 %v2339
    %v2550 = vunpack.c.l.b16 %v2340
    %v2551 = vunpack.c.h.b16 %v2340
    %v2552 = vunpack.c.l.b16 %v2341
    %v2553 = vunpack.c.h.b16 %v2341
    %v2554 = vunpack.c.l.b16 %v2342
    %v2555 = vunpack.c.h.b16 %v2342
    %v2556 = vunpack.c.l.b16 %v2343
    %v2557 = vunpack.c.h.b16 %v2343
    %v2558 = vunpack.c.l.b16 %v2344
    %v2559 = vunpack.c.h.b16 %v2344
    %v2560 = vunpack.c.l.b16 %v2345
    %v2561 = vunpack.c.h.b16 %v2345
    %v2562 = vunpack.c.l.b16 %v2346
    %v2563 = vunpack.c.h.b16 %v2346
    %v2564 = vunpack.c.l.b16 %v2347
    %v2565 = vunpack.c.h.b16 %v2347
    %v2566 = vunpack.c.l.b16 %v2348
    %v2567 = vunpack.c.h.b16 %v2348
    %v2568 = vunpack.c.l.b16 %v2349
    %v2569 = vunpack.c.h.b16 %v2349
    %v2570 = vunpack.c.l.b16 %v2350
    %v2571 = vunpack.c.h.b16 %v2350
    %v2572 = vunpack.c.l.b16 %v2351
    %v2573 = vunpack.c.h.b16 %v2351
    %v2574 = vunpack.c.l.b16 %v2352
    %v2575 = vunpack.c.h.b16 %v2352
    %v2576 = vunpack.c.l.b16 %v2353
    %v2577 = vunpack.c.h.b16 %v2353
    %v2578 = vunpack.c.l.b16 %v2354
    %v2579 = vunpack.c.h.b16 %v2354
    %v2580 = vunpack.c.l.b16 %v2355
    %v2581 = vunpack.c.h.b16 %v2355
    %v2582 = vunpack.c.l.b16 %v2356
    %v2583 = vunpack.c.h.b16 %v2356
    %v2584 = vunpack.c.l.b16 %v2357
    %v2585 = vunpack.c.h.b16 %v2357
    %v2586 = vunpack.c.l.b16 %v2358
    %v2587 = vunpack.c.h.b16 %v2358
    %v2588 = vunpack.c.l.b16 %v2359
    %v2589 = vunpack.c.h.b16 %v2359
    %v2590 = vunpack.c.l.b16 %v2360
    %v2591 = vunpack.c.h.b16 %v2360
    %v2592 = vunpack.c.l.b16 %v2361
    %v2593 = vunpack.c.h.b16 %v2361
    %v2594 = vunpack.c.l.b16 %v2362
    %v2595 = vunpack.c.h.b16 %v2362
    %v2596 = vunpack.c.l.b16 %v2363
    %v2597 = vunpack.c.h.b16 %v2363
    %v2598 = vunpack.c.l.b16 %v2364
    %v2599 = vunpack.c.h.b16 %v2364
    %v2600 = vunpack.c.l.b16 %v2365
    %v2601 = vunpack.c.h.b16 %v2365
    %v2602 = vunpack.c.l.b16 %v2366
    %v2603 = vunpack.c.h.b16 %v2366
    %v2604 = vunpack.c.l.b16 %v2367
    %v2605 = vunpack.c.h.b16 %v2367
    %v2606 = vunpack.c.l.b16 %v2368
    %v2607 = vunpack.c.h.b16 %v2368
    %v2608 = vunpack.c.l.b16 %v2369
    %v2609 = vunpack.c.h.b16 %v2369
    %v2610 = vunpack.c.l.b16 %v2370
    %v2611 = vunpack.c.h.b16 %v2370
    %v2612 = vunpack.c.l.b16 %v2371
    %v2613 = vunpack.c.h.b16 %v2371
    %v2614 = vunpack.c.l.b16 %v2372
    %v2615 = vunpack.c.h.b16 %v2372
    %v2616 = vunpack.c.l.b16 %v2373
    %v2617 = vunpack.c.h.b16 %v2373
    %v2618 = vunpack.c.l.b16 %v2374
    %v2619 = vunpack.c.h.b16 %v2374
    %v2620 = vunpack.c.l.b16 %v2375
    %v2621 = vunpack.c.h.b16 %v2375
    %v2622 = vunpack.c.l.b16 %v2376
    %v2623 = vunpack.c.h.b16 %v2376
    %v2624 = vunpack.c.l.b16 %v2377
    %v2625 = vunpack.c.h.b16 %v2377
    %v2626 = vunpack.c.l.b16 %v2378
    %v2627 = vunpack.c.h.b16 %v2378
    %v2628 = vunpack.c.l.b16 %v2379
    %v2629 = vunpack.c.h.b16 %v2379
    %v2630 = vunpack.c.l.b16 %v2380
    %v2631 = vunpack.c.h.b16 %v2380
    %v2632 = vunpack.c.l.b16 %v2381
    %v2633 = vunpack.c.h.b16 %v2381
    %v2634 = vunpack.c.l.b16 %v2382
    %v2635 = vunpack.c.h.b16 %v2382
    %v2636 = vunpack.c.l.b16 %v2383
    %v2637 = vunpack.c.h.b16 %v2383
    %v2638 = vunpack.c.l.b16 %v2384
    %v2639 = vunpack.c.h.b16 %v2384
    %v2640 = vunpack.c.l.b16 %v2385
    %v2641 = vunpack.c.h.b16 %v2385
    %v2642 = vunpack.c.l.b16 %v2386
    %v2643 = vunpack.c.h.b16 %v2386
    %v2644 = vunpack.c.l.b16 %v2387
    %v2645 = vunpack.c.h.b16 %v2387
    %v2646 = vunpack.c.l.b16 %v2388
    %v2647 = vunpack.c.h.b16 %v2388
    %v2648 = vunpack.c.l.b16 %v2389
    %v2649 = vunpack.c.h.b16 %v2389
    %v2650 = vunpack.c.l.b16 %v2390
    %v2651 = vunpack.c.h.b16 %v2390
    %v2652 = vunpack.c.l.b16 %v2391
    %v2653 = vunpack.c.h.b16 %v2391
    %v2654 = vunpack.c.l.b16 %v2392
    %v2655 = vunpack.c.h.b16 %v2392
    %v2656 = vunpack.c.l.b16 %v2393
    %v2657 = vunpack.c.h.b16 %v2393
    %v2658 = vunpack.c.l.b16 %v2394
    %v2659 = vunpack.c.h.b16 %v2394
    %v2660 = vunpack.c.l.b16 %v2395
    %v2661 = vunpack.c.h.b16 %v2395
    %v2662 = vunpack.c.l.b16 %v2396
    %v2663 = vunpack.c.h.b16 %v2396
    %v2664 = vunpack.c.l.b16 %v2397
    %v2665 = vunpack.c.h.b16 %v2397
    %v2666 = vunpack.c.l.b16 %v2398
    %v2667 = vunpack.c.h.b16 %v2398
    %v2668 = vunpack.c.l.b16 %v2399
    %v2669 = vunpack.c.h.b16 %v2399
    %v2670 = vunpack.c.l.b16 %v2400
    %v2671 = vunpack.c.h.b16 %v2400
    %v2672 = vunpack.c.l.b16 %v2401
    %v2673 = vunpack.c.h.b16 %v2401
    %v2674 = vunpack.c.l.b16 %v2402
    %v2675 = vunpack.c.h.b16 %v2402
    %v2676 = vunpack.c.l.b16 %v2403
    %v2677 = vunpack.c.h.b16 %v2403
    %v2678 = vunpack.c.l.b16 %v2404
    %v2679 = vunpack.c.h.b16 %v2404
    %v2680 = vunpack.c.l.b16 %v2405
    %v2681 = vunpack.c.h.b16 %v2405
    %v2682 = vunpack.c.l.b16 %v2406
    %v2683 = vunpack.c.h.b16 %v2406
    %v2684 = vunpack.c.l.b16 %v2407
    %v2685 = vunpack.c.h.b16 %v2407
    %v2686 = vunpack.c.l.b16 %v2408
    %v2687 = vunpack.c.h.b16 %v2408
    %v2688 = vunpack.c.l.b16 %v2409
    %v2689 = vunpack.c.h.b16 %v2409
    %v2690 = vunpack.c.l.b16 %v2410
    %v2691 = vunpack.c.h.b16 %v2410
    %v2692 = vunpack.c.l.b16 %v2411
    %v2693 = vunpack.c.h.b16 %v2411
    %v2694 = vunpack.c.l.b16 %v2412
    %v2695 = vunpack.c.h.b16 %v2412
    %v2696 = vunpack.c.l.b16 %v2413
    %v2697 = vunpack.c.h.b16 %v2413
    %v2698 = vunpack.c.l.b16 %v2414
    %v2699 = vunpack.c.h.b16 %v2414
    %v2700 = vunpack.c.l.b16 %v2415
    %v2701 = vunpack.c.h.b16 %v2415
    %v2702 = vunpack.c.l.b16 %v2416
    %v2703 = vunpack.c.h.b16 %v2416
    %v2704 = vunpack.c.l.b16 %v2417
    %v2705 = vunpack.c.h.b16 %v2417
    %v2706 = vpack.c.b16 %v2516, %v2514
    %v2707 = vpack.c.b16 %v2517, %v2515
    %v2708 = vpack.c.b16 %v2520, %v2518
    %v2709 = vpack.c.b16 %v2521, %v2519
    %v2710 = vpack.c.b16 %v2524, %v2522
    %v2711 = vpack.c.b16 %v2525, %v2523
    %v2712 = vpack.c.b16 %v2528, %v2526
    %v2713 = vpack.c.b16 %v2529, %v2527
    %v2714 = vpack.c.b16 %v2532, %v2530
    %v2715 = vpack.c.b16 %v2533, %v2531
    %v2716 = vpack.c.b16 %v2536, %v2534
    %v2717 = vpack.c.b16 %v2537, %v2535
    %v2718 = vpack.c.b16 %v2540, %v2538
    %v2719 = vpack.c.b16 %v2541, %v2539
    %v2720 = vpack.c.b16 %v2544, %v2542
    %v2721 = vpack.c.b16 %v2545, %v2543
    %v2722 = vpack.c.b16 %v2548, %v2546
    %v2723 = vpack.c.b16 %v2549, %v2547
    %v2724 = vpack.c.b16 %v2552, %v2550
    %v2725 = vpack.c.b16 %v2553, %v2551
    %v2726 = vpack.c.b16 %v2556, %v2554
    %v2727 = vpack.c.b16 %v2557, %v2555
    %v2728 = vpack.c.b16 %v2560, %v2558
    %v2729 = vpack.c.b16 %v2561, %v2559
    %v2730 = vpack.c.b16 %v2564, %v2562
    %v2731 = vpack.c.b16 %v2565, %v2563
    %v2732 = vpack.c.b16 %v2568, %v2566
    %v2733 = vpack.c.b16 %v2569, %v2567
    %v2734 = vpack.c.b16 %v2572, %v2570
    %v2735 = vpack.c.b16 %v2573, %v2571
    %v2736 = vpack.c.b16 %v2576, %v2574
    %v2737 = vpack.c.b16 %v2577, %v2575
    %v2738 = vpack.c.b16 %v2580, %v2578
    %v2739 = vpack.c.b16 %v2581, %v2579
    %v2740 = vpack.c.b16 %v2584, %v2582
    %v2741 = vpack.c.b16 %v2585, %v2583
    %v2742 = vpack.c.b16 %v2588, %v2586
    %v2743 = vpack.c.b16 %v2589, %v2587
    %v2744 = vpack.c.b16 %v2592, %v2590
    %v2745 = vpack.c.b16 %v2593, %v2591
    %v2746 = vpack.c.b16 %v2596, %v2594
    %v2747 = vpack.c.b16 %v2597, %v2595
    %v2748 = vpack.c.b16 %v2600, %v2598
    %v2749 = vpack.c.b16 %v2601, %v2599
    %v2750 = vpack.c.b16 %v2604, %v2602
    %v2751 = vpack.c.b16 %v2605, %v2603
    %v2752 = vpack.c.b16 %v2608, %v2606
    %v2753 = vpack.c.b16 %v2609, %v2607
    %v2754 = vpack.c.b16 %v2612, %v2610
    %v2755 = vpack.c.b16 %v2613, %v2611
    %v2756 = vpack.c.b16 %v2616, %v2614
    %v2757 = vpack.c.b16 %v2617, %v2615
    %v2758 = vpack.c.b16 %v2620, %v2618
    %v2759 = vpack.c.b16 %v2621, %v2619
    %v2760 = vpack.c.b16 %v2624, %v2622
    %v2761 = vpack.c.b16 %v2625, %v2623
    %v2762 = vpack.c.b16 %v2628, %v2626
    %v2763 = vpack.c.b16 %v2629, %v2627
    %v2764 = vpack.c.b16 %v2632, %v2630
    %v2765 = vpack.c.b16 %v2633, %v2631
    %v2766 = vpack.c.b16 %v2636, %v2634
    %v2767 = vpack.c.b16 %v2637, %v2635
    %v2768 = vpack.c.b16 %v2640, %v2638
    %v2769 = vpack.c.b16 %v2641, %v2639
    %v2770 = vpack.c.b16 %v2644, %v2642
    %v2771 = vpack.c.b16 %v2645, %v2643
    %v2772 = vpack.c.b16 %v2648, %v2646
    %v2773 = vpack.c.b16 %v2649, %v2647
    %v2774 = vpack.c.b16 %v2652, %v2650
    %v2775 = vpack.c.b16 %v2653, %v2651
    %v2776 = vpack.c.b16 %v2656, %v2654
    %v2777 = vpack.c.b16 %v2657, %v2655
    %v2778 = vpack.c.b16 %v2660, %v2658
    %v2779 = vpack.c.b16 %v2661, %v2659
    %v2780 = vpack.c.b16 %v2664, %v2662
    %v2781 = vpack.c.b16 %v2665, %v2663
    %v2782 = vpack.c.b16 %v2668, %v2666
    %v2783 = vpack.c.b16 %v2669, %v2667
    %v2784 = vpack.c.b16 %v2672, %v2670
    %v2785 = vpack.c.b16 %v2673, %v2671
    %v2786 = vpack.c.b16 %v2676, %v2674
    %v2787 = vpack.c.b16 %v2677, %v2675
    %v2788 = vpack.c.b16 %v2680, %v2678
    %v2789 = vpack.c.b16 %v2681, %v2679
    %v2790 = vpack.c.b16 %v2684, %v2682
    %v2791 = vpack.c.b16 %v2685, %v2683
    %v2792 = vpack.c.b16 %v2688, %v2686
    %v2793 = vpack.c.b16 %v2689, %v2687
    %v2794 = vpack.c.b16 %v2692, %v2690
    %v2795 = vpack.c.b16 %v2693, %v2691
    %v2796 = vpack.c.b16 %v2696, %v2694
    %v2797 = vpack.c.b16 %v2697, %v2695
    %v2798 = vpack.c.b16 %v2700, %v2698
    %v2799 = vpack.c.b16 %v2701, %v2699
    %v2800 = vpack.c.b16 %v2704, %v2702
    %v2801 = vpack.c.b16 %v2705, %v2703
    %2898 = vmatprep.subr.bf16.mxu0 %v2707
    %2899 = vmatpush1.bf16.msra.mxu0 %v2706
    %2900 = vmatprep.subr.bf16.mxu0 %v2709
    %2901 = vmatpush1.bf16.msra.mxu0 %v2708
    %2902 = vmatprep.subr.bf16.mxu0 %v2711
    %2903 = vmatpush1.bf16.msra.mxu0 %v2710
    %2904 = vmatprep.subr.bf16.mxu0 %v2713
    %2905 = vmatpush1.bf16.msra.mxu0 %v2712
    %2906 = vmatprep.subr.bf16.mxu0 %v2715
    %2907 = vmatpush1.bf16.msra.mxu0 %v2714
    %2908 = vmatprep.subr.bf16.mxu0 %v2717
    %2909 = vmatpush1.bf16.msra.mxu0 %v2716
    %2910 = vmatprep.subr.bf16.mxu0 %v2719
    %2911 = vmatpush1.bf16.msra.mxu0 %v2718
    %2912 = vmatprep.subr.bf16.mxu0 %v2721
    %2913 = vmatpush1.bf16.msra.mxu0 %v2720
    %2914 = vmatprep.subr.bf16.mxu0 %v2723
    %2915 = vmatpush1.bf16.msra.mxu0 %v2722
    %2916 = vmatprep.subr.bf16.mxu0 %v2725
    %2917 = vmatpush1.bf16.msra.mxu0 %v2724
    %2918 = vmatprep.subr.bf16.mxu0 %v2727
    %2919 = vmatpush1.bf16.msra.mxu0 %v2726
    %2920 = vmatprep.subr.bf16.mxu0 %v2729
    %2921 = vmatpush1.bf16.msra.mxu0 %v2728
    %2922 = vmatprep.subr.bf16.mxu0 %v2731
    %2923 = vmatpush1.bf16.msra.mxu0 %v2730
    %2924 = vmatprep.subr.bf16.mxu0 %v2733
    %2925 = vmatpush1.bf16.msra.mxu0 %v2732
    %2926 = vmatprep.subr.bf16.mxu0 %v2735
    %2927 = vmatpush1.bf16.msra.mxu0 %v2734
    %2928 = vmatprep.subr.bf16.mxu0 %v2737
    %2929 = vmatpush1.bf16.msra.mxu0 %v2736
    %2930 = vmatprep.mubr.bf16.mxu0 %v2317
    %2931 = vmatmul.mubr.bf16.gmra.mrb[0].mxu0 %v2316
    %v2932 = vpop.f32.mrb[0].mxu0
    %v2933 = vadd.f32 0.0, %v2932
    %v2934 = vpop.f32.mrb[0].mxu0
    %v2935 = vadd.f32 0.0, %v2934
    %v2936 = vpop.f32.mrb[0].mxu0
    %v2937 = vpop.f32.mrb[0].mxu0
    %2938 = vdwg.mxu0
    %2939 = vmatprep.subr.bf16.mxu0 %v2739
    %2940 = vmatpush1.bf16.msra.mxu0 %v2738
    %2941 = vmatprep.subr.bf16.mxu0 %v2741
    %2942 = vmatpush1.bf16.msra.mxu0 %v2740
    %2943 = vmatprep.subr.bf16.mxu0 %v2743
    %2944 = vmatpush1.bf16.msra.mxu0 %v2742
    %2945 = vmatprep.subr.bf16.mxu0 %v2745
    %2946 = vmatpush1.bf16.msra.mxu0 %v2744
    %2947 = vmatprep.subr.bf16.mxu0 %v2747
    %2948 = vmatpush1.bf16.msra.mxu0 %v2746
    %2949 = vmatprep.subr.bf16.mxu0 %v2749
    %2950 = vmatpush1.bf16.msra.mxu0 %v2748
    %2951 = vmatprep.subr.bf16.mxu0 %v2751
    %2952 = vmatpush1.bf16.msra.mxu0 %v2750
    %2953 = vmatprep.subr.bf16.mxu0 %v2753
    %2954 = vmatpush1.bf16.msra.mxu0 %v2752
    %2955 = vmatprep.subr.bf16.mxu0 %v2755
    %2956 = vmatpush1.bf16.msra.mxu0 %v2754
    %2957 = vmatprep.subr.bf16.mxu0 %v2757
    %2958 = vmatpush1.bf16.msra.mxu0 %v2756
    %2959 = vmatprep.subr.bf16.mxu0 %v2759
    %2960 = vmatpush1.bf16.msra.mxu0 %v2758
    %2961 = vmatprep.subr.bf16.mxu0 %v2761
    %2962 = vmatpush1.bf16.msra.mxu0 %v2760
    %2963 = vmatprep.subr.bf16.mxu0 %v2763
    %2964 = vmatpush1.bf16.msra.mxu0 %v2762
    %2965 = vmatprep.subr.bf16.mxu0 %v2765
    %2966 = vmatpush1.bf16.msra.mxu0 %v2764
    %2967 = vmatprep.subr.bf16.mxu0 %v2767
    %2968 = vmatpush1.bf16.msra.mxu0 %v2766
    %2969 = vmatprep.subr.bf16.mxu0 %v2769
    %2970 = vmatpush1.bf16.msra.mxu0 %v2768
    %2971 = vmatprep.mubr.bf16.mxu0 %v2319
    %2972 = vmatmul.mubr.bf16.gmra.mrb[0].mxu0 %v2318
    %v2973 = vpop.f32.mrb[0].mxu0
    %v2974 = vadd.f32 %v2933, %v2973
    %v2975 = vpop.f32.mrb[0].mxu0
    %v2976 = vadd.f32 %v2935, %v2975
    %v2977 = vpop.f32.mrb[0].mxu0
    %v2978 = vpop.f32.mrb[0].mxu0
    %2979 = vdwg.mxu0
    %2980 = vmatprep.subr.bf16.mxu0 %v2771
    %2981 = vmatpush1.bf16.msra.mxu0 %v2770
    %2982 = vmatprep.subr.bf16.mxu0 %v2773
    %2983 = vmatpush1.bf16.msra.mxu0 %v2772
    %2984 = vmatprep.subr.bf16.mxu0 %v2775
    %2985 = vmatpush1.bf16.msra.mxu0 %v2774
    %2986 = vmatprep.subr.bf16.mxu0 %v2777
    %2987 = vmatpush1.bf16.msra.mxu0 %v2776
    %2988 = vmatprep.subr.bf16.mxu0 %v2779
    %2989 = vmatpush1.bf16.msra.mxu0 %v2778
    %2990 = vmatprep.subr.bf16.mxu0 %v2781
    %2991 = vmatpush1.bf16.msra.mxu0 %v2780
    %2992 = vmatprep.subr.bf16.mxu0 %v2783
    %2993 = vmatpush1.bf16.msra.mxu0 %v2782
    %2994 = vmatprep.subr.bf16.mxu0 %v2785
    %2995 = vmatpush1.bf16.msra.mxu0 %v2784
    %2996 = vmatprep.subr.bf16.mxu0 %v2787
    %2997 = vmatpush1.bf16.msra.mxu0 %v2786
    %2998 = vmatprep.subr.bf16.mxu0 %v2789
    %2999 = vmatpush1.bf16.msra.mxu0 %v2788
    %3000 = vmatprep.subr.bf16.mxu0 %v2791
    %3001 = vmatpush1.bf16.msra.mxu0 %v2790
    %3002 = vmatprep.subr.bf16.mxu0 %v2793
    %3003 = vmatpush1.bf16.msra.mxu0 %v2792
    %3004 = vmatprep.subr.bf16.mxu0 %v2795
    %3005 = vmatpush1.bf16.msra.mxu0 %v2794
    %3006 = vmatprep.subr.bf16.mxu0 %v2797
    %3007 = vmatpush1.bf16.msra.mxu0 %v2796
    %3008 = vmatprep.subr.bf16.mxu0 %v2799
    %3009 = vmatpush1.bf16.msra.mxu0 %v2798
    %3010 = vmatprep.subr.bf16.mxu0 %v2801
    %3011 = vmatpush1.bf16.msra.mxu0 %v2800
    %3012 = vmatprep.mubr.bf16.mxu0 %v2321
    %3013 = vmatmul.mubr.bf16.gmra.mrb[0].mxu0 %v2320
    %v3014 = vpop.f32.mrb[0].mxu0
    %v3015 = vadd.f32 %v2974, %v3014
    %v3016 = vpop.f32.mrb[0].mxu0
    %v3017 = vadd.f32 %v2976, %v3016
    %v3018 = vpop.f32.mrb[0].mxu0
    %v3019 = vpop.f32.mrb[0].mxu0
    %3020 = vdwg.mxu0
    %v3085 = vunpack.c.l.b16 %v2252
    %v3086 = vunpack.c.h.b16 %v2252
    %v3087 = vunpack.c.l.b16 %v2253
    %v3088 = vunpack.c.h.b16 %v2253
    %v3089 = vunpack.c.l.b16 %v2254
    %v3090 = vunpack.c.h.b16 %v2254
    %v3091 = vunpack.c.l.b16 %v2255
    %v3092 = vunpack.c.h.b16 %v2255
    %v3093 = vunpack.c.l.b16 %v2256
    %v3094 = vunpack.c.h.b16 %v2256
    %v3095 = vunpack.c.l.b16 %v2257
    %v3096 = vunpack.c.h.b16 %v2257
    %v3097 = vunpack.c.l.b16 %v2258
    %v3098 = vunpack.c.h.b16 %v2258
    %v3099 = vunpack.c.l.b16 %v2259
    %v3100 = vunpack.c.h.b16 %v2259
    %v3101 = vunpack.c.l.b16 %v2260
    %v3102 = vunpack.c.h.b16 %v2260
    %v3103 = vunpack.c.l.b16 %v2261
    %v3104 = vunpack.c.h.b16 %v2261
    %v3105 = vunpack.c.l.b16 %v2262
    %v3106 = vunpack.c.h.b16 %v2262
    %v3107 = vunpack.c.l.b16 %v2263
    %v3108 = vunpack.c.h.b16 %v2263
    %v3109 = vunpack.c.l.b16 %v2264
    %v3110 = vunpack.c.h.b16 %v2264
    %v3111 = vunpack.c.l.b16 %v2265
    %v3112 = vunpack.c.h.b16 %v2265
    %v3113 = vunpack.c.l.b16 %v2266
    %v3114 = vunpack.c.h.b16 %v2266
    %v3115 = vunpack.c.l.b16 %v2267
    %v3116 = vunpack.c.h.b16 %v2267
    %v3117 = vunpack.c.l.b16 %v2268
    %v3118 = vunpack.c.h.b16 %v2268
    %v3119 = vunpack.c.l.b16 %v2269
    %v3120 = vunpack.c.h.b16 %v2269
    %v3121 = vunpack.c.l.b16 %v2270
    %v3122 = vunpack.c.h.b16 %v2270
    %v3123 = vunpack.c.l.b16 %v2271
    %v3124 = vunpack.c.h.b16 %v2271
    %v3125 = vunpack.c.l.b16 %v2272
    %v3126 = vunpack.c.h.b16 %v2272
    %v3127 = vunpack.c.l.b16 %v2273
    %v3128 = vunpack.c.h.b16 %v2273
    %v3129 = vunpack.c.l.b16 %v2274
    %v3130 = vunpack.c.h.b16 %v2274
    %v3131 = vunpack.c.l.b16 %v2275
    %v3132 = vunpack.c.h.b16 %v2275
    %v3133 = vunpack.c.l.b16 %v2276
    %v3134 = vunpack.c.h.b16 %v2276
    %v3135 = vunpack.c.l.b16 %v2277
    %v3136 = vunpack.c.h.b16 %v2277
    %v3137 = vunpack.c.l.b16 %v2278
    %v3138 = vunpack.c.h.b16 %v2278
    %v3139 = vunpack.c.l.b16 %v2279
    %v3140 = vunpack.c.h.b16 %v2279
    %v3141 = vunpack.c.l.b16 %v2280
    %v3142 = vunpack.c.h.b16 %v2280
    %v3143 = vunpack.c.l.b16 %v2281
    %v3144 = vunpack.c.h.b16 %v2281
    %v3145 = vunpack.c.l.b16 %v2282
    %v3146 = vunpack.c.h.b16 %v2282
    %v3147 = vunpack.c.l.b16 %v2283
    %v3148 = vunpack.c.h.b16 %v2283
    %v3149 = vunpack.c.l.b16 %v2284
    %v3150 = vunpack.c.h.b16 %v2284
    %v3151 = vunpack.c.l.b16 %v2285
    %v3152 = vunpack.c.h.b16 %v2285
    %v3153 = vunpack.c.l.b16 %v2286
    %v3154 = vunpack.c.h.b16 %v2286
    %v3155 = vunpack.c.l.b16 %v2287
    %v3156 = vunpack.c.h.b16 %v2287
    %v3157 = vunpack.c.l.b16 %v2288
    %v3158 = vunpack.c.h.b16 %v2288
    %v3159 = vunpack.c.l.b16 %v2289
    %v3160 = vunpack.c.h.b16 %v2289
    %v3161 = vunpack.c.l.b16 %v2290
    %v3162 = vunpack.c.h.b16 %v2290
    %v3163 = vunpack.c.l.b16 %v2291
    %v3164 = vunpack.c.h.b16 %v2291
    %v3165 = vunpack.c.l.b16 %v2292
    %v3166 = vunpack.c.h.b16 %v2292
    %v3167 = vunpack.c.l.b16 %v2293
    %v3168 = vunpack.c.h.b16 %v2293
    %v3169 = vunpack.c.l.b16 %v2294
    %v3170 = vunpack.c.h.b16 %v2294
    %v3171 = vunpack.c.l.b16 %v2295
    %v3172 = vunpack.c.h.b16 %v2295
    %v3173 = vunpack.c.l.b16 %v2296
    %v3174 = vunpack.c.h.b16 %v2296
    %v3175 = vunpack.c.l.b16 %v2297
    %v3176 = vunpack.c.h.b16 %v2297
    %v3177 = vunpack.c.l.b16 %v2298
    %v3178 = vunpack.c.h.b16 %v2298
    %v3179 = vunpack.c.l.b16 %v2299
    %v3180 = vunpack.c.h.b16 %v2299
    %v3181 = vunpack.c.l.b16 %v2300
    %v3182 = vunpack.c.h.b16 %v2300
    %v3183 = vunpack.c.l.b16 %v2301
    %v3184 = vunpack.c.h.b16 %v2301
    %v3185 = vunpack.c.l.b16 %v2302
    %v3186 = vunpack.c.h.b16 %v2302
    %v3187 = vunpack.c.l.b16 %v2303
    %v3188 = vunpack.c.h.b16 %v2303
    %v3189 = vunpack.c.l.b16 %v2304
    %v3190 = vunpack.c.h.b16 %v2304
    %v3191 = vunpack.c.l.b16 %v2305
    %v3192 = vunpack.c.h.b16 %v2305
    %v3193 = vunpack.c.l.b16 %v2306
    %v3194 = vunpack.c.h.b16 %v2306
    %v3195 = vunpack.c.l.b16 %v2307
    %v3196 = vunpack.c.h.b16 %v2307
    %v3197 = vunpack.c.l.b16 %v2308
    %v3198 = vunpack.c.h.b16 %v2308
    %v3199 = vunpack.c.l.b16 %v2309
    %v3200 = vunpack.c.h.b16 %v2309
    %v3201 = vunpack.c.l.b16 %v2310
    %v3202 = vunpack.c.h.b16 %v2310
    %v3203 = vunpack.c.l.b16 %v2311
    %v3204 = vunpack.c.h.b16 %v2311
    %v3205 = vunpack.c.l.b16 %v2312
    %v3206 = vunpack.c.h.b16 %v2312
    %v3207 = vunpack.c.l.b16 %v2313
    %v3208 = vunpack.c.h.b16 %v2313
    %v3209 = vunpack.c.l.b16 %v2314
    %v3210 = vunpack.c.h.b16 %v2314
    %v3211 = vunpack.c.l.b16 %v2315
    %v3212 = vunpack.c.h.b16 %v2315
    %v3213 = vpack.c.b16 %v3087, %v3085
    %v3214 = vpack.c.b16 %v3088, %v3086
    %v3215 = vpack.c.b16 %v3091, %v3089
    %v3216 = vpack.c.b16 %v3092, %v3090
    %v3217 = vpack.c.b16 %v3095, %v3093
    %v3218 = vpack.c.b16 %v3096, %v3094
    %v3219 = vpack.c.b16 %v3099, %v3097
    %v3220 = vpack.c.b16 %v3100, %v3098
    %v3221 = vpack.c.b16 %v3103, %v3101
    %v3222 = vpack.c.b16 %v3104, %v3102
    %v3223 = vpack.c.b16 %v3107, %v3105
    %v3224 = vpack.c.b16 %v3108, %v3106
    %v3225 = vpack.c.b16 %v3111, %v3109
    %v3226 = vpack.c.b16 %v3112, %v3110
    %v3227 = vpack.c.b16 %v3115, %v3113
    %v3228 = vpack.c.b16 %v3116, %v3114
    %v3229 = vpack.c.b16 %v3119, %v3117
    %v3230 = vpack.c.b16 %v3120, %v3118
    %v3231 = vpack.c.b16 %v3123, %v3121
    %v3232 = vpack.c.b16 %v3124, %v3122
    %v3233 = vpack.c.b16 %v3127, %v3125
    %v3234 = vpack.c.b16 %v3128, %v3126
    %v3235 = vpack.c.b16 %v3131, %v3129
    %v3236 = vpack.c.b16 %v3132, %v3130
    %v3237 = vpack.c.b16 %v3135, %v3133
    %v3238 = vpack.c.b16 %v3136, %v3134
    %v3239 = vpack.c.b16 %v3139, %v3137
    %v3240 = vpack.c.b16 %v3140, %v3138
    %v3241 = vpack.c.b16 %v3143, %v3141
    %v3242 = vpack.c.b16 %v3144, %v3142
    %v3243 = vpack.c.b16 %v3147, %v3145
    %v3244 = vpack.c.b16 %v3148, %v3146
    %v3245 = vpack.c.b16 %v3151, %v3149
    %v3246 = vpack.c.b16 %v3152, %v3150
    %v3247 = vpack.c.b16 %v3155, %v3153
    %v3248 = vpack.c.b16 %v3156, %v3154
    %v3249 = vpack.c.b16 %v3159, %v3157
    %v3250 = vpack.c.b16 %v3160, %v3158
    %v3251 = vpack.c.b16 %v3163, %v3161
    %v3252 = vpack.c.b16 %v3164, %v3162
    %v3253 = vpack.c.b16 %v3167, %v3165
    %v3254 = vpack.c.b16 %v3168, %v3166
    %v3255 = vpack.c.b16 %v3171, %v3169
    %v3256 = vpack.c.b16 %v3172, %v3170
    %v3257 = vpack.c.b16 %v3175, %v3173
    %v3258 = vpack.c.b16 %v3176, %v3174
    %v3259 = vpack.c.b16 %v3179, %v3177
    %v3260 = vpack.c.b16 %v3180, %v3178
    %v3261 = vpack.c.b16 %v3183, %v3181
    %v3262 = vpack.c.b16 %v3184, %v3182
    %v3263 = vpack.c.b16 %v3187, %v3185
    %v3264 = vpack.c.b16 %v3188, %v3186
    %v3265 = vpack.c.b16 %v3191, %v3189
    %v3266 = vpack.c.b16 %v3192, %v3190
    %v3267 = vpack.c.b16 %v3195, %v3193
    %v3268 = vpack.c.b16 %v3196, %v3194
    %v3269 = vpack.c.b16 %v3199, %v3197
    %v3270 = vpack.c.b16 %v3200, %v3198
    %v3271 = vpack.c.b16 %v3203, %v3201
    %v3272 = vpack.c.b16 %v3204, %v3202
    %v3273 = vpack.c.b16 %v3207, %v3205
    %v3274 = vpack.c.b16 %v3208, %v3206
    %v3275 = vpack.c.b16 %v3211, %v3209
    %v3276 = vpack.c.b16 %v3212, %v3210
    %3341 = vmatprep.subr.bf16.mxu0 %v3214
    %3342 = vmatpush1.bf16.msra.mxu0 %v3213
    %3343 = vmatprep.subr.bf16.mxu0 %v3216
    %3344 = vmatpush1.bf16.msra.mxu0 %v3215
    %3345 = vmatprep.subr.bf16.mxu0 %v3218
    %3346 = vmatpush1.bf16.msra.mxu0 %v3217
    %3347 = vmatprep.subr.bf16.mxu0 %v3220
    %3348 = vmatpush1.bf16.msra.mxu0 %v3219
    %3349 = vmatprep.subr.bf16.mxu0 %v3222
    %3350 = vmatpush1.bf16.msra.mxu0 %v3221
    %3351 = vmatprep.subr.bf16.mxu0 %v3224
    %3352 = vmatpush1.bf16.msra.mxu0 %v3223
    %3353 = vmatprep.subr.bf16.mxu0 %v3226
    %3354 = vmatpush1.bf16.msra.mxu0 %v3225
    %3355 = vmatprep.subr.bf16.mxu0 %v3228
    %3356 = vmatpush1.bf16.msra.mxu0 %v3227
    %3357 = vmatprep.subr.bf16.mxu0 %v3230
    %3358 = vmatpush1.bf16.msra.mxu0 %v3229
    %3359 = vmatprep.subr.bf16.mxu0 %v3232
    %3360 = vmatpush1.bf16.msra.mxu0 %v3231
    %3361 = vmatprep.subr.bf16.mxu0 %v3234
    %3362 = vmatpush1.bf16.msra.mxu0 %v3233
    %3363 = vmatprep.subr.bf16.mxu0 %v3236
    %3364 = vmatpush1.bf16.msra.mxu0 %v3235
    %3365 = vmatprep.subr.bf16.mxu0 %v3238
    %3366 = vmatpush1.bf16.msra.mxu0 %v3237
    %3367 = vmatprep.subr.bf16.mxu0 %v3240
    %3368 = vmatpush1.bf16.msra.mxu0 %v3239
    %3369 = vmatprep.subr.bf16.mxu0 %v3242
    %3370 = vmatpush1.bf16.msra.mxu0 %v3241
    %3371 = vmatprep.subr.bf16.mxu0 %v3244
    %3372 = vmatpush1.bf16.msra.mxu0 %v3243
    %3373 = vmatprep.mubr.bf16.mxu0 %v2249
    %3374 = vmatmul.mubr.bf16.gmra.mrb[0].mxu0 %v2248
    %v3375 = vpop.f32.mrb[0].mxu0
    %v3376 = vadd.f32 %v3015, %v3375
    %v3377 = vpop.f32.mrb[0].mxu0
    %v3378 = vadd.f32 %v3017, %v3377
    %v3379 = vpop.f32.mrb[0].mxu0
    %v3380 = vpop.f32.mrb[0].mxu0
    %3381 = vdwg.mxu0
    %3382 = vmatprep.subr.bf16.mxu0 %v3246
    %3383 = vmatpush1.bf16.msra.mxu0 %v3245
    %3384 = vmatprep.subr.bf16.mxu0 %v3248
    %3385 = vmatpush1.bf16.msra.mxu0 %v3247
    %3386 = vmatprep.subr.bf16.mxu0 %v3250
    %3387 = vmatpush1.bf16.msra.mxu0 %v3249
    %3388 = vmatprep.subr.bf16.mxu0 %v3252
    %3389 = vmatpush1.bf16.msra.mxu0 %v3251
    %3390 = vmatprep.subr.bf16.mxu0 %v3254
    %3391 = vmatpush1.bf16.msra.mxu0 %v3253
    %3392 = vmatprep.subr.bf16.mxu0 %v3256
    %3393 = vmatpush1.bf16.msra.mxu0 %v3255
    %3394 = vmatprep.subr.bf16.mxu0 %v3258
    %3395 = vmatpush1.bf16.msra.mxu0 %v3257
    %3396 = vmatprep.subr.bf16.mxu0 %v3260
    %3397 = vmatpush1.bf16.msra.mxu0 %v3259
    %3398 = vmatprep.subr.bf16.mxu0 %v3262
    %3399 = vmatpush1.bf16.msra.mxu0 %v3261
    %3400 = vmatprep.subr.bf16.mxu0 %v3264
    %3401 = vmatpush1.bf16.msra.mxu0 %v3263
    %3402 = vmatprep.subr.bf16.mxu0 %v3266
    %3403 = vmatpush1.bf16.msra.mxu0 %v3265
    %3404 = vmatprep.subr.bf16.mxu0 %v3268
    %3405 = vmatpush1.bf16.msra.mxu0 %v3267
    %3406 = vmatprep.subr.bf16.mxu0 %v3270
    %3407 = vmatpush1.bf16.msra.mxu0 %v3269
    %3408 = vmatprep.subr.bf16.mxu0 %v3272
    %3409 = vmatpush1.bf16.msra.mxu0 %v3271
    %3410 = vmatprep.subr.bf16.mxu0 %v3274
    %3411 = vmatpush1.bf16.msra.mxu0 %v3273
    %3412 = vmatprep.subr.bf16.mxu0 %v3276
    %3413 = vmatpush1.bf16.msra.mxu0 %v3275
    %3414 = vmatprep.mubr.bf16.mxu0 %v2251
    %3415 = vmatmul.mubr.bf16.gmra.mrb[0].mxu0 %v2250
    %v3416 = vpop.f32.mrb[0].mxu0
    %v3417 = vadd.f32 %v3376, %v3416
    %v3418 = vpop.f32.mrb[0].mxu0
    %v3419 = vadd.f32 %v3378, %v3418
    %v3420 = vpop.f32.mrb[0].mxu0
    %v3421 = vpop.f32.mrb[0].mxu0
    %3422 = vdwg.mxu0
    %v3423 = vld [vmem:[%s9] sm:$0x3]
    %v3425 = vlaneseq
    %v3426 = vshrl.u32 %v3425, 7
    %v3427 = vsub.s32 0, %v3426
    %v3428 = vrot.slane %v3423, %v3427
    %v3429 = vlaneseq
    %v3430 = vshrl.u32 %v3429, 7
    %v3431 = vsub.s32 1, %v3430
    %v3432 = vrot.slane %v3423, %v3431
    %v3435 = vadd.f32 %v3417, %v3428
    %v3436 = vadd.f32 %v3419, %v3432
    %v3437 = vmax.f32 %v3435, 0.0
    %v3438 = vmax.f32 %v3436, 0.0
    %v3439 = vpack.c.bf16 %v3437, %v3437
    %v3440 = vpack.c.bf16 %v3438, %v3438
    %v3441 = vld [vmem:[%s10] sm:$0xf]
    %v3442 = vld [vmem:[%s10 + $0x4] sm:$0xf]
    %v3443 = vld [vmem:[%s10 + $0x8] sm:$0xf]
    %v3444 = vld [vmem:[%s10 + $0xc] sm:$0xf]
    %v3445 = vld [vmem:[%s10 + $0x10] sm:$0xf]
    %v3446 = vld [vmem:[%s10 + $0x14] sm:$0xf]
    %v3447 = vld [vmem:[%s10 + $0x18] sm:$0xf]
    %v3448 = vld [vmem:[%s10 + $0x1c] sm:$0xf]
    %v3449 = vld [vmem:[%s10 + $0x20] sm:$0xf]
    %v3450 = vld [vmem:[%s10 + $0x24] sm:$0xf]
    %v3451 = vld [vmem:[%s10 + $0x28] sm:$0xf]
    %v3452 = vld [vmem:[%s10 + $0x2c] sm:$0xf]
    %v3453 = vld [vmem:[%s10 + $0x30] sm:$0xf]
    %v3454 = vld [vmem:[%s10 + $0x34] sm:$0xf]
    %v3455 = vld [vmem:[%s10 + $0x38] sm:$0xf]
    %v3456 = vld [vmem:[%s10 + $0x3c] sm:$0xf]
    %v3457 = vld [vmem:[%s10 + $0x40] sm:$0xf]
    %v3458 = vld [vmem:[%s10 + $0x44] sm:$0xf]
    %v3459 = vld [vmem:[%s10 + $0x48] sm:$0xf]
    %v3460 = vld [vmem:[%s10 + $0x4c] sm:$0xf]
    %v3461 = vld [vmem:[%s10 + $0x50] sm:$0xf]
    %v3462 = vld [vmem:[%s10 + $0x54] sm:$0xf]
    %v3463 = vld [vmem:[%s10 + $0x58] sm:$0xf]
    %v3464 = vld [vmem:[%s10 + $0x5c] sm:$0xf]
    %v3465 = vld [vmem:[%s10 + $0x60] sm:$0xf]
    %v3466 = vld [vmem:[%s10 + $0x64] sm:$0xf]
    %v3467 = vld [vmem:[%s10 + $0x68] sm:$0xf]
    %v3468 = vld [vmem:[%s10 + $0x6c] sm:$0xf]
    %v3469 = vld [vmem:[%s10 + $0x70] sm:$0xf]
    %v3470 = vld [vmem:[%s10 + $0x74] sm:$0xf]
    %v3471 = vld [vmem:[%s10 + $0x78] sm:$0xf]
    %v3472 = vld [vmem:[%s10 + $0x7c] sm:$0xf]
    %v3473 = vld [vmem:[%s11] sm:$0x1]
    %v3475 = vlaneseq
    %v3476 = vshrl.u32 %v3475, 7
    %v3477 = vsub.s32 0, %v3476
    %v3478 = vrot.slane %v3473, %v3477
    %v3512 = vunpack.c.l.b16 %v3441
    %v3513 = vunpack.c.l.b16 %v3442
    %v3514 = vunpack.c.l.b16 %v3443
    %v3515 = vunpack.c.l.b16 %v3444
    %v3516 = vunpack.c.l.b16 %v3445
    %v3517 = vunpack.c.l.b16 %v3446
    %v3518 = vunpack.c.l.b16 %v3447
    %v3519 = vunpack.c.l.b16 %v3448
    %v3520 = vunpack.c.l.b16 %v3449
    %v3521 = vunpack.c.l.b16 %v3450
    %v3522 = vunpack.c.l.b16 %v3451
    %v3523 = vunpack.c.l.b16 %v3452
    %v3524 = vunpack.c.l.b16 %v3453
    %v3525 = vunpack.c.l.b16 %v3454
    %v3526 = vunpack.c.l.b16 %v3455
    %v3527 = vunpack.c.l.b16 %v3456
    %v3528 = vunpack.c.l.b16 %v3457
    %v3529 = vunpack.c.l.b16 %v3458
    %v3530 = vunpack.c.l.b16 %v3459
    %v3531 = vunpack.c.l.b16 %v3460
    %v3532 = vunpack.c.l.b16 %v3461
    %v3533 = vunpack.c.l.b16 %v3462
    %v3534 = vunpack.c.l.b16 %v3463
    %v3535 = vunpack.c.l.b16 %v3464
    %v3536 = vunpack.c.l.b16 %v3465
    %v3537 = vunpack.c.l.b16 %v3466
    %v3538 = vunpack.c.l.b16 %v3467
    %v3539 = vunpack.c.l.b16 %v3468
    %v3540 = vunpack.c.l.b16 %v3469
    %v3541 = vunpack.c.l.b16 %v3470
    %v3542 = vunpack.c.l.b16 %v3471
    %v3543 = vunpack.c.l.b16 %v3472
    %v3544 = vpack.c.b16 %v3513, %v3512
    %v3545 = vpack.c.b16 %v3515, %v3514
    %v3546 = vpack.c.b16 %v3517, %v3516
    %v3547 = vpack.c.b16 %v3519, %v3518
    %v3548 = vpack.c.b16 %v3521, %v3520
    %v3549 = vpack.c.b16 %v3523, %v3522
    %v3550 = vpack.c.b16 %v3525, %v3524
    %v3551 = vpack.c.b16 %v3527, %v3526
    %v3552 = vpack.c.b16 %v3529, %v3528
    %v3553 = vpack.c.b16 %v3531, %v3530
    %v3554 = vpack.c.b16 %v3533, %v3532
    %v3555 = vpack.c.b16 %v3535, %v3534
    %v3556 = vpack.c.b16 %v3537, %v3536
    %v3557 = vpack.c.b16 %v3539, %v3538
    %v3558 = vpack.c.b16 %v3541, %v3540
    %v3559 = vpack.c.b16 %v3543, %v3542
    %3576 = vmatprep.subr.bf16.mxu0 0
    %3577 = vmatpush1.bf16.msra.mxu0 %v3544
    %3578 = vmatprep.subr.bf16.mxu0 0
    %3579 = vmatpush1.bf16.msra.mxu0 %v3545
    %3580 = vmatprep.subr.bf16.mxu0 0
    %3581 = vmatpush1.bf16.msra.mxu0 %v3546
    %3582 = vmatprep.subr.bf16.mxu0 0
    %3583 = vmatpush1.bf16.msra.mxu0 %v3547
    %3584 = vmatprep.subr.bf16.mxu0 0
    %3585 = vmatpush1.bf16.msra.mxu0 %v3548
    %3586 = vmatprep.subr.bf16.mxu0 0
    %3587 = vmatpush1.bf16.msra.mxu0 %v3549
    %3588 = vmatprep.subr.bf16.mxu0 0
    %3589 = vmatpush1.bf16.msra.mxu0 %v3550
    %3590 = vmatprep.subr.bf16.mxu0 0
    %3591 = vmatpush1.bf16.msra.mxu0 %v3551
    %3592 = vmatprep.subr.bf16.mxu0 0
    %3593 = vmatpush1.bf16.msra.mxu0 %v3552
    %3594 = vmatprep.subr.bf16.mxu0 0
    %3595 = vmatpush1.bf16.msra.mxu0 %v3553
    %3596 = vmatprep.subr.bf16.mxu0 0
    %3597 = vmatpush1.bf16.msra.mxu0 %v3554
    %3598 = vmatprep.subr.bf16.mxu0 0
    %3599 = vmatpush1.bf16.msra.mxu0 %v3555
    %3600 = vmatprep.subr.bf16.mxu0 0
    %3601 = vmatpush1.bf16.msra.mxu0 %v3556
    %3602 = vmatprep.subr.bf16.mxu0 0
    %3603 = vmatpush1.bf16.msra.mxu0 %v3557
    %3604 = vmatprep.subr.bf16.mxu0 0
    %3605 = vmatpush1.bf16.msra.mxu0 %v3558
    %3606 = vmatprep.subr.bf16.mxu0 0
    %3607 = vmatpush1.bf16.msra.mxu0 %v3559
    %3608 = vmatprep.mubr.bf16.mxu0 %v3440
    %3609 = vmatmul.mubr.bf16.gmra.mrb[0].mxu0 %v3439
    %v3610 = vpop.f32.mrb[0].mxu0
    %v3611 = vadd.f32 %v3478, %v3610
    %v3612 = vpop.f32.mrb[0].mxu0
    %v3613 = vpop.f32.mrb[0].mxu0
    %v3614 = vpop.f32.mrb[0].mxu0
    %3615 = vdwg.mxu0
    %3616 = vst [vmem:[%s12] sm:$0xff] %v3611
    // Predicated region
    $region66: #{hybrid_model_forward.1} parent=1 // pred_check
      _
    $region67: #{hybrid_model_forward.1} parent=1 // pred_check_branch
      %3618 = sbr.rel (0) target = $region69
    $region68: #{hybrid_model_forward.1} parent=1 // pred_region
      _
    $region69: #{hybrid_model_forward.1} parent=1 // pred_fallthru
      _
    // Predicated region
    $region70: #{hybrid_model_forward.1} parent=1 // pred_check
      _
    $region71: #{hybrid_model_forward.1} parent=1 // pred_check_branch
      %3620 = sbr.rel (0) target = $region73
    $region72: #{hybrid_model_forward.1} parent=1 // pred_region
      _
    $region73: #{hybrid_model_forward.1} parent=1 // pred_fallthru
      _
    %3621 = vsyncpa [#allocation3], 1
    %3622 = vsyncpa [#allocation5], 1
    %3623 = vsyncpa [#allocation8], 1

</llo_original>
